<compile_context>
chip_gen: v7x
topology: tpu7x:2x2x1
jax: 0.10.0
libtpu: 0.0.40
codegen_flags: <defaults>
</compile_context>

<pallas_src>
import functools
import math

import jax
import jax.numpy as jnp
from jax.experimental import pallas as pl
from jax.experimental.pallas import tpu as pltpu


def conv_block_kernel(x_ref, w_ref, o_ref, *, K, W_pad, W_out, H_out, eps):
    # x_ref: (N, C_in, S_padded)  reflect-padded input, spatial dims flattened,
    #                             right-padded by K-1 so every tap slice is in-bounds
    # w_ref: (K*K, C_out, C_in)   per-tap weight slabs
    # o_ref: (N, C_out, L)        "wide" conv output, L = H_out*W_pad; the W_pad-W_out
    #                             garbage columns per row are cropped in the wrapper
    N = x_ref.shape[0]
    C_out = o_ref.shape[1]
    L = o_ref.shape[-1]
    HW = H_out * W_out
    inv_hw = jnp.float32(1.0 / HW)

    # Validity mask over the wide layout: column j of each W_pad-row is a real
    # output iff j < W_out.  Built once, shared by all batch elements.
    col = jax.lax.broadcasted_iota(jnp.int32, (1, L), 1) % W_pad
    mask = (col < W_out).astype(jnp.float32)                      # (1, L)

    for n in range(N):  # static unroll: batch fused into one grid step
        # Conv2d (stride=1, dilation=1) as K*K shifted-window MXU matmuls,
        # accumulated in f32 vregs.
        acc = jnp.zeros((C_out, L), jnp.float32)
        for ky in range(K):
            for kx in range(K):
                t = ky * K + kx
                off = ky * W_pad + kx
                w_t = w_ref[t]                                     # (C_out, C_in)
                x_t = x_ref[n, :, off:off + L]                     # (C_in, L)
                acc = acc + jnp.dot(w_t, x_t,
                                    preferred_element_type=jnp.float32)

        # InstanceNorm2d(affine=False): biased stats over the HW valid positions
        # only (garbage columns masked out).  Two-pass variance for robustness.
        mean = jnp.sum(acc * mask, axis=-1, keepdims=True) * inv_hw
        cen = acc - mean
        var = jnp.sum(cen * cen * mask, axis=-1, keepdims=True) * inv_hw
        y = cen * jax.lax.rsqrt(var + eps)                         # EUP rsqrt

        # ReLU
        y = jnp.maximum(y, 0.0)

        o_ref[n] = y.astype(o_ref.dtype)


def _vmem_block_bytes(shape, dtype):
    """Bytes of one pipeline buffer with trailing two dims padded to TPU tiles."""
    itemsize = jnp.dtype(dtype).itemsize
    sub_tile = 8 * max(1, 4 // itemsize)        # 8 (f32), 16 (bf16), 32 (int8)
    lead = math.prod(shape[:-2]) if len(shape) > 2 else 1
    sub = -(-shape[-2] // sub_tile) * sub_tile
    lane = -(-shape[-1] // 128) * 128
    return lead * sub * lane * itemsize


def convolution_block(x, w, b, *, padding=1, eps=1e-5,
                      compute_dtype=jnp.float32):
    """x: (N, C_in, H, W) NCHW; w: (C_out, C_in, K, K); b: (C_out,).

    Matches ConvolutionBlock(conv='conv2d', norm='instance', activ='relu',
    pad='reflect', padding=padding).forward(x).
    The conv bias is cancelled exactly by InstanceNorm(affine=False), so it is
    not sent to the kernel (dead compute removed)."""
    del b  # mathematically a no-op under InstanceNorm(affine=False)

    N, C_in, H, W = x.shape
    C_out, _, K, K2 = w.shape
    assert K == K2, "square kernels only"

    # ReflectionPad2d + spatial flatten (pure memory glue, plain JAX; no 9x im2col).
    x_pad = jnp.pad(x, ((0, 0), (0, 0), (padding, padding), (padding, padding)),
                    mode="reflect")
    H_pad, W_pad = H + 2 * padding, W + 2 * padding
    H_out, W_out = H_pad - K + 1, W_pad - K + 1
    L = H_out * W_pad                       # wide-output columns per batch elem
    S = H_pad * W_pad
    S_padded = S + (K - 1)                  # keeps the last tap's slice in-bounds

    x_flat = x_pad.reshape(N, C_in, S)
    x_flat = jnp.pad(x_flat, ((0, 0), (0, 0), (0, S_padded - S)))
    w_taps = jnp.transpose(w, (2, 3, 0, 1)).reshape(K * K, C_out, C_in)

    # Optional bf16 MXU operands (v6e/v7x); InstanceNorm/ReLU math stays f32.
    x_flat = x_flat.astype(compute_dtype)
    w_taps = w_taps.astype(compute_dtype)

    out_dtype = x.dtype
    out_shape = (N, C_out, L)

    kernel = functools.partial(conv_block_kernel, K=K, W_pad=W_pad,
                               W_out=W_out, H_out=H_out, eps=eps)

    # Exact scoped-VMEM budget: double-buffered input/weight/output blocks plus
    # fixed headroom for compiler-internal scratch (acc stays in vregs).
    vmem_limit = int(
        2 * _vmem_block_bytes(x_flat.shape, x_flat.dtype)
        + 2 * _vmem_block_bytes(w_taps.shape, w_taps.dtype)
        + 2 * _vmem_block_bytes(out_shape, out_dtype)
        + 2 * 1024 * 1024)

    out_wide = pl.pallas_call(
        kernel,
        out_shape=jax.ShapeDtypeStruct(out_shape, out_dtype),
        grid_spec=pltpu.PrefetchScalarGridSpec(
            num_scalar_prefetch=0,
            grid=(1,),          # batch fused: one step, no per-step pipeline overhead
            in_specs=[
                pl.BlockSpec((N, C_in, S_padded), lambda i: (0, 0, 0)),
                pl.BlockSpec((K * K, C_out, C_in), lambda i: (0, 0, 0)),
            ],
            out_specs=pl.BlockSpec((N, C_out, L), lambda i: (0, 0, 0)),
        ),
        compiler_params=pltpu.CompilerParams(
            dimension_semantics=("arbitrary",),
            vmem_limit_bytes=vmem_limit),
    )(x_flat, w_taps)

    # Crop the wide output's per-row garbage columns and restore NCHW (plain JAX).
    out = out_wide.reshape(N, C_out, H_out, W_pad)[:, :, :, :W_out]
    return out


def _reference(x, w, b, *, padding=1, eps=1e-5):
    """Pure-JAX reference matching the PyTorch forward pass (with bias)."""
    x_pad = jnp.pad(x, ((0, 0), (0, 0), (padding, padding), (padding, padding)),
                    mode="reflect")
    y = jax.lax.conv_general_dilated(
        x_pad, w, window_strides=(1, 1), padding="VALID",
        dimension_numbers=("NCHW", "OIHW", "NCHW"))
    y = y + b.reshape(1, -1, 1, 1)
    mean = jnp.mean(y, axis=(2, 3), keepdims=True)
    var = jnp.mean((y - mean) ** 2, axis=(2, 3), keepdims=True)
    y = (y - mean) * jax.lax.rsqrt(var + eps)
    return jnp.maximum(y, 0.0)


if __name__ == "__main__":
    key = jax.random.PRNGKey(0)
    kx, kw, kb = jax.random.split(key, 3)

    N, C_in, C_out, H, W, K = 2, 4, 8, 16, 16, 3
    padding = 1

    x = jax.random.normal(kx, (N, C_in, H, W), dtype=jnp.float32)
    fan_in = C_in * K * K
    bound = 1.0 / (fan_in ** 0.5)
    w = jax.random.uniform(kw, (C_out, C_in, K, K), dtype=jnp.float32,
                           minval=-bound, maxval=bound)
    b = jax.random.uniform(kb, (C_out,), dtype=jnp.float32,
                           minval=-bound, maxval=bound)

    out = convolution_block(x, w, b, padding=padding)
    out = jax.block_until_ready(out)

    ref = _reference(x, w, b, padding=padding)
    assert out.shape == (N, C_out, H, W), out.shape
    assert jnp.max(jnp.abs(out - ref)) < 2e-4

    print("KERNEL_OK")
</pallas_src>

<mosaic_0001>
module attributes {stable_mosaic.version = 11 : i64} {
  func.func @conv_block_kernel(%arg0: i32, %arg1: memref<2x4x326xf32, #tpu.memory_space<vmem>>, %arg2: memref<9x8x4xf32, #tpu.memory_space<vmem>>, %arg3: memref<2x8x288xf32, #tpu.memory_space<vmem>>) attributes {dimension_semantics = [#tpu.dimension_semantics<arbitrary>], iteration_bounds = array<i64: 1>, scalar_prefetch = 0 : i64, scratch_operands = 0 : i64, tpu.core_type = #tpu.core_type<tc>, window_params = [{pipeline_mode = #tpu.pipeline_mode<synchronous>, transform_indices = @transform_0, window_bounds = array<i64: 2, 4, 326>}, {pipeline_mode = #tpu.pipeline_mode<synchronous>, transform_indices = @transform_1, window_bounds = array<i64: 9, 8, 4>}, {pipeline_mode = #tpu.pipeline_mode<synchronous>, transform_indices = @transform_2, window_bounds = array<i64: 2, 8, 288>}]} {
    %0 = tpu.iota {dimensions = array<i32: 1>} : vector<1x288xi32>
    %c18_i32 = arith.constant 18 : i32
    %c0_i32 = arith.constant 0 : i32
    %1 = arith.cmpi eq, %c18_i32, %c0_i32 : i32
    %c1_i32 = arith.constant 1 : i32
    %2 = arith.select %1, %c1_i32, %c18_i32 : i32
    %3 = vector.broadcast %2 : i32 to vector<1x288xi32>
    %4 = arith.remsi %0, %3 : vector<1x288xi32>
    %c0_i32_0 = arith.constant 0 : i32
    %5 = vector.broadcast %c0_i32_0 : i32 to vector<1x288xi32>
    %6 = arith.cmpi ne, %4, %5 : vector<1x288xi32>
    %c0_i32_1 = arith.constant 0 : i32
    %7 = vector.broadcast %c0_i32_1 : i32 to vector<1x288xi32>
    %8 = arith.cmpi slt, %4, %7 : vector<1x288xi32>
    %c0_i32_2 = arith.constant 0 : i32
    %9 = arith.cmpi slt, %2, %c0_i32_2 : i32
    %10 = vector.broadcast %9 : i1 to vector<1x288xi1>
    %11 = vector.broadcast %10 : vector<1x288xi1> to vector<1x288xi1>
    %12 = arith.xori %8, %11 : vector<1x288xi1>
    %13 = arith.andi %12, %6 : vector<1x288xi1>
    %14 = vector.broadcast %2 : i32 to vector<1x288xi32>
    %15 = arith.addi %4, %14 : vector<1x288xi32>
    %16 = arith.select %13, %15, %4 : vector<1x288xi1>, vector<1x288xi32>
    %c16_i32 = arith.constant 16 : i32
    %17 = vector.broadcast %c16_i32 : i32 to vector<1x288xi32>
    %18 = arith.cmpi slt, %16, %17 : vector<1x288xi32>
    %19 = arith.extui %18 : vector<1x288xi1> to vector<1x288xi32>
    %20 = arith.sitofp %19 : vector<1x288xi32> to vector<1x288xf32>
    %cst = arith.constant 0.000000e+00 : f32
    %21 = vector.broadcast %cst : f32 to vector<8x288xf32>
    %c0 = arith.constant 0 : index
    %c0_3 = arith.constant 0 : index
    %c0_4 = arith.constant 0 : index
    %22 = vector.load %arg2[%c0, %c0_3, %c0_4] : memref<9x8x4xf32, #tpu.memory_space<vmem>>, vector<1x8x4xf32>
    %23 = vector.shape_cast %22 : vector<1x8x4xf32> to vector<8x4xf32>
    %c0_5 = arith.constant 0 : index
    %c0_6 = arith.constant 0 : index
    %c0_7 = arith.constant 0 : index
    %24 = vector.load %arg1[%c0_5, %c0_6, %c0_7] : memref<2x4x326xf32, #tpu.memory_space<vmem>>, vector<1x4x288xf32>
    %25 = vector.shape_cast %24 : vector<1x4x288xf32> to vector<4x288xf32>
    %cst_8 = arith.constant dense<0.000000e+00> : vector<8x288xf32>
    %26 = tpu.matmul %23, %25, %cst_8 {dimension_numbers = #tpu.dot_dimension_numbers<[1], [0], [0], [1], [0, 0, 1, 1], [], []>} : vector<8x4xf32>, vector<4x288xf32>, vector<8x288xf32> -> vector<8x288xf32>
    %27 = arith.addf %21, %26 : vector<8x288xf32>
    %c1 = arith.constant 1 : index
    %c0_9 = arith.constant 0 : index
    %c0_10 = arith.constant 0 : index
    %28 = vector.load %arg2[%c1, %c0_9, %c0_10] : memref<9x8x4xf32, #tpu.memory_space<vmem>>, vector<1x8x4xf32>
    %29 = vector.shape_cast %28 : vector<1x8x4xf32> to vector<8x4xf32>
    %c0_11 = arith.constant 0 : index
    %c0_12 = arith.constant 0 : index
    %c1_13 = arith.constant 1 : index
    %30 = vector.load %arg1[%c0_11, %c0_12, %c1_13] : memref<2x4x326xf32, #tpu.memory_space<vmem>>, vector<1x4x288xf32>
    %31 = vector.shape_cast %30 : vector<1x4x288xf32> to vector<4x288xf32>
    %cst_14 = arith.constant dense<0.000000e+00> : vector<8x288xf32>
    %32 = tpu.matmul %29, %31, %cst_14 {dimension_numbers = #tpu.dot_dimension_numbers<[1], [0], [0], [1], [0, 0, 1, 1], [], []>} : vector<8x4xf32>, vector<4x288xf32>, vector<8x288xf32> -> vector<8x288xf32>
    %33 = arith.addf %27, %32 : vector<8x288xf32>
    %c2 = arith.constant 2 : index
    %c0_15 = arith.constant 0 : index
    %c0_16 = arith.constant 0 : index
    %34 = vector.load %arg2[%c2, %c0_15, %c0_16] : memref<9x8x4xf32, #tpu.memory_space<vmem>>, vector<1x8x4xf32>
    %35 = vector.shape_cast %34 : vector<1x8x4xf32> to vector<8x4xf32>
    %c0_17 = arith.constant 0 : index
    %c0_18 = arith.constant 0 : index
    %c2_19 = arith.constant 2 : index
    %36 = vector.load %arg1[%c0_17, %c0_18, %c2_19] : memref<2x4x326xf32, #tpu.memory_space<vmem>>, vector<1x4x288xf32>
    %37 = vector.shape_cast %36 : vector<1x4x288xf32> to vector<4x288xf32>
    %cst_20 = arith.constant dense<0.000000e+00> : vector<8x288xf32>
    %38 = tpu.matmul %35, %37, %cst_20 {dimension_numbers = #tpu.dot_dimension_numbers<[1], [0], [0], [1], [0, 0, 1, 1], [], []>} : vector<8x4xf32>, vector<4x288xf32>, vector<8x288xf32> -> vector<8x288xf32>
    %39 = arith.addf %33, %38 : vector<8x288xf32>
    %c3 = arith.constant 3 : index
    %c0_21 = arith.constant 0 : index
    %c0_22 = arith.constant 0 : index
    %40 = vector.load %arg2[%c3, %c0_21, %c0_22] : memref<9x8x4xf32, #tpu.memory_space<vmem>>, vector<1x8x4xf32>
    %41 = vector.shape_cast %40 : vector<1x8x4xf32> to vector<8x4xf32>
    %c0_23 = arith.constant 0 : index
    %c0_24 = arith.constant 0 : index
    %c18 = arith.constant 18 : index
    %42 = vector.load %arg1[%c0_23, %c0_24, %c18] : memref<2x4x326xf32, #tpu.memory_space<vmem>>, vector<1x4x288xf32>
    %43 = vector.shape_cast %42 : vector<1x4x288xf32> to vector<4x288xf32>
    %cst_25 = arith.constant dense<0.000000e+00> : vector<8x288xf32>
    %44 = tpu.matmul %41, %43, %cst_25 {dimension_numbers = #tpu.dot_dimension_numbers<[1], [0], [0], [1], [0, 0, 1, 1], [], []>} : vector<8x4xf32>, vector<4x288xf32>, vector<8x288xf32> -> vector<8x288xf32>
    %45 = arith.addf %39, %44 : vector<8x288xf32>
    %c4 = arith.constant 4 : index
    %c0_26 = arith.constant 0 : index
    %c0_27 = arith.constant 0 : index
    %46 = vector.load %arg2[%c4, %c0_26, %c0_27] : memref<9x8x4xf32, #tpu.memory_space<vmem>>, vector<1x8x4xf32>
    %47 = vector.shape_cast %46 : vector<1x8x4xf32> to vector<8x4xf32>
    %c0_28 = arith.constant 0 : index
    %c0_29 = arith.constant 0 : index
    %c19 = arith.constant 19 : index
    %48 = vector.load %arg1[%c0_28, %c0_29, %c19] : memref<2x4x326xf32, #tpu.memory_space<vmem>>, vector<1x4x288xf32>
    %49 = vector.shape_cast %48 : vector<1x4x288xf32> to vector<4x288xf32>
    %cst_30 = arith.constant dense<0.000000e+00> : vector<8x288xf32>
    %50 = tpu.matmul %47, %49, %cst_30 {dimension_numbers = #tpu.dot_dimension_numbers<[1], [0], [0], [1], [0, 0, 1, 1], [], []>} : vector<8x4xf32>, vector<4x288xf32>, vector<8x288xf32> -> vector<8x288xf32>
    %51 = arith.addf %45, %50 : vector<8x288xf32>
    %c5 = arith.constant 5 : index
    %c0_31 = arith.constant 0 : index
    %c0_32 = arith.constant 0 : index
    %52 = vector.load %arg2[%c5, %c0_31, %c0_32] : memref<9x8x4xf32, #tpu.memory_space<vmem>>, vector<1x8x4xf32>
    %53 = vector.shape_cast %52 : vector<1x8x4xf32> to vector<8x4xf32>
    %c0_33 = arith.constant 0 : index
    %c0_34 = arith.constant 0 : index
    %c20 = arith.constant 20 : index
    %54 = vector.load %arg1[%c0_33, %c0_34, %c20] : memref<2x4x326xf32, #tpu.memory_space<vmem>>, vector<1x4x288xf32>
    %55 = vector.shape_cast %54 : vector<1x4x288xf32> to vector<4x288xf32>
    %cst_35 = arith.constant dense<0.000000e+00> : vector<8x288xf32>
    %56 = tpu.matmul %53, %55, %cst_35 {dimension_numbers = #tpu.dot_dimension_numbers<[1], [0], [0], [1], [0, 0, 1, 1], [], []>} : vector<8x4xf32>, vector<4x288xf32>, vector<8x288xf32> -> vector<8x288xf32>
    %57 = arith.addf %51, %56 : vector<8x288xf32>
    %c6 = arith.constant 6 : index
    %c0_36 = arith.constant 0 : index
    %c0_37 = arith.constant 0 : index
    %58 = vector.load %arg2[%c6, %c0_36, %c0_37] : memref<9x8x4xf32, #tpu.memory_space<vmem>>, vector<1x8x4xf32>
    %59 = vector.shape_cast %58 : vector<1x8x4xf32> to vector<8x4xf32>
    %c0_38 = arith.constant 0 : index
    %c0_39 = arith.constant 0 : index
    %c36 = arith.constant 36 : index
    %60 = vector.load %arg1[%c0_38, %c0_39, %c36] : memref<2x4x326xf32, #tpu.memory_space<vmem>>, vector<1x4x288xf32>
    %61 = vector.shape_cast %60 : vector<1x4x288xf32> to vector<4x288xf32>
    %cst_40 = arith.constant dense<0.000000e+00> : vector<8x288xf32>
    %62 = tpu.matmul %59, %61, %cst_40 {dimension_numbers = #tpu.dot_dimension_numbers<[1], [0], [0], [1], [0, 0, 1, 1], [], []>} : vector<8x4xf32>, vector<4x288xf32>, vector<8x288xf32> -> vector<8x288xf32>
    %63 = arith.addf %57, %62 : vector<8x288xf32>
    %c7 = arith.constant 7 : index
    %c0_41 = arith.constant 0 : index
    %c0_42 = arith.constant 0 : index
    %64 = vector.load %arg2[%c7, %c0_41, %c0_42] : memref<9x8x4xf32, #tpu.memory_space<vmem>>, vector<1x8x4xf32>
    %65 = vector.shape_cast %64 : vector<1x8x4xf32> to vector<8x4xf32>
    %c0_43 = arith.constant 0 : index
    %c0_44 = arith.constant 0 : index
    %c37 = arith.constant 37 : index
    %66 = vector.load %arg1[%c0_43, %c0_44, %c37] : memref<2x4x326xf32, #tpu.memory_space<vmem>>, vector<1x4x288xf32>
    %67 = vector.shape_cast %66 : vector<1x4x288xf32> to vector<4x288xf32>
    %cst_45 = arith.constant dense<0.000000e+00> : vector<8x288xf32>
    %68 = tpu.matmul %65, %67, %cst_45 {dimension_numbers = #tpu.dot_dimension_numbers<[1], [0], [0], [1], [0, 0, 1, 1], [], []>} : vector<8x4xf32>, vector<4x288xf32>, vector<8x288xf32> -> vector<8x288xf32>
    %69 = arith.addf %63, %68 : vector<8x288xf32>
    %c8 = arith.constant 8 : index
    %c0_46 = arith.constant 0 : index
    %c0_47 = arith.constant 0 : index
    %70 = vector.load %arg2[%c8, %c0_46, %c0_47] : memref<9x8x4xf32, #tpu.memory_space<vmem>>, vector<1x8x4xf32>
    %71 = vector.shape_cast %70 : vector<1x8x4xf32> to vector<8x4xf32>
    %c0_48 = arith.constant 0 : index
    %c0_49 = arith.constant 0 : index
    %c38 = arith.constant 38 : index
    %72 = vector.load %arg1[%c0_48, %c0_49, %c38] : memref<2x4x326xf32, #tpu.memory_space<vmem>>, vector<1x4x288xf32>
    %73 = vector.shape_cast %72 : vector<1x4x288xf32> to vector<4x288xf32>
    %cst_50 = arith.constant dense<0.000000e+00> : vector<8x288xf32>
    %74 = tpu.matmul %71, %73, %cst_50 {dimension_numbers = #tpu.dot_dimension_numbers<[1], [0], [0], [1], [0, 0, 1, 1], [], []>} : vector<8x4xf32>, vector<4x288xf32>, vector<8x288xf32> -> vector<8x288xf32>
    %75 = arith.addf %69, %74 : vector<8x288xf32>
    %76 = vector.broadcast %20 : vector<1x288xf32> to vector<8x288xf32>
    %77 = arith.mulf %75, %76 : vector<8x288xf32>
    %cst_51 = arith.constant dense<0.000000e+00> : vector<8xf32>
    %78 = vector.multi_reduction <add>, %77, %cst_51 [1] : vector<8x288xf32> to vector<8xf32>
    %79 = vector.shape_cast %78 : vector<8xf32> to vector<8x1xf32>
    %cst_52 = arith.constant 3.906250e-03 : f32
    %80 = vector.broadcast %cst_52 : f32 to vector<8x1xf32>
    %81 = arith.mulf %79, %80 : vector<8x1xf32>
    %82 = vector.broadcast %81 : vector<8x1xf32> to vector<8x288xf32>
    %83 = arith.subf %75, %82 : vector<8x288xf32>
    %84 = arith.mulf %83, %83 : vector<8x288xf32>
    %85 = vector.broadcast %20 : vector<1x288xf32> to vector<8x288xf32>
    %86 = arith.mulf %84, %85 : vector<8x288xf32>
    %cst_53 = arith.constant dense<0.000000e+00> : vector<8xf32>
    %87 = vector.multi_reduction <add>, %86, %cst_53 [1] : vector<8x288xf32> to vector<8xf32>
    %88 = vector.shape_cast %87 : vector<8xf32> to vector<8x1xf32>
    %cst_54 = arith.constant 3.906250e-03 : f32
    %89 = vector.broadcast %cst_54 : f32 to vector<8x1xf32>
    %90 = arith.mulf %88, %89 : vector<8x1xf32>
    %cst_55 = arith.constant 9.99999974E-6 : f32
    %91 = vector.broadcast %cst_55 : f32 to vector<8x1xf32>
    %92 = arith.addf %90, %91 : vector<8x1xf32>
    %93 = math.rsqrt %92 : vector<8x1xf32>
    %94 = vector.broadcast %93 : vector<8x1xf32> to vector<8x288xf32>
    %95 = arith.mulf %83, %94 : vector<8x288xf32>
    %cst_56 = arith.constant 0.000000e+00 : f32
    %96 = vector.broadcast %cst_56 : f32 to vector<8x288xf32>
    %97 = arith.maximumf %95, %96 : vector<8x288xf32>
    %c0_57 = arith.constant 0 : index
    %c0_58 = arith.constant 0 : index
    %c0_59 = arith.constant 0 : index
    %98 = vector.load %arg3[%c0_57, %c0_58, %c0_59] : memref<2x8x288xf32, #tpu.memory_space<vmem>>, vector<1x8x288xf32>
    %99 = vector.shape_cast %98 : vector<1x8x288xf32> to vector<8x288xf32>
    %100 = vector.shape_cast %97 : vector<8x288xf32> to vector<1x8x288xf32>
    tpu.vector_store %arg3[%c0_57, %c0_58, %c0_59], %100 {strides = array<i32>} : memref<2x8x288xf32, #tpu.memory_space<vmem>>, vector<1x8x288xf32>,
    %cst_60 = arith.constant 0.000000e+00 : f32
    %101 = vector.broadcast %cst_60 : f32 to vector<8x288xf32>
    %c0_61 = arith.constant 0 : index
    %c0_62 = arith.constant 0 : index
    %c0_63 = arith.constant 0 : index
    %102 = vector.load %arg2[%c0_61, %c0_62, %c0_63] : memref<9x8x4xf32, #tpu.memory_space<vmem>>, vector<1x8x4xf32>
    %103 = vector.shape_cast %102 : vector<1x8x4xf32> to vector<8x4xf32>
    %c1_64 = arith.constant 1 : index
    %c0_65 = arith.constant 0 : index
    %c0_66 = arith.constant 0 : index
    %104 = vector.load %arg1[%c1_64, %c0_65, %c0_66] : memref<2x4x326xf32, #tpu.memory_space<vmem>>, vector<1x4x288xf32>
    %105 = vector.shape_cast %104 : vector<1x4x288xf32> to vector<4x288xf32>
    %cst_67 = arith.constant dense<0.000000e+00> : vector<8x288xf32>
    %106 = tpu.matmul %103, %105, %cst_67 {dimension_numbers = #tpu.dot_dimension_numbers<[1], [0], [0], [1], [0, 0, 1, 1], [], []>} : vector<8x4xf32>, vector<4x288xf32>, vector<8x288xf32> -> vector<8x288xf32>
    %107 = arith.addf %101, %106 : vector<8x288xf32>
    %c1_68 = arith.constant 1 : index
    %c0_69 = arith.constant 0 : index
    %c0_70 = arith.constant 0 : index
    %108 = vector.load %arg2[%c1_68, %c0_69, %c0_70] : memref<9x8x4xf32, #tpu.memory_space<vmem>>, vector<1x8x4xf32>
    %109 = vector.shape_cast %108 : vector<1x8x4xf32> to vector<8x4xf32>
    %c1_71 = arith.constant 1 : index
    %c0_72 = arith.constant 0 : index
    %c1_73 = arith.constant 1 : index
    %110 = vector.load %arg1[%c1_71, %c0_72, %c1_73] : memref<2x4x326xf32, #tpu.memory_space<vmem>>, vector<1x4x288xf32>
    %111 = vector.shape_cast %110 : vector<1x4x288xf32> to vector<4x288xf32>
    %cst_74 = arith.constant dense<0.000000e+00> : vector<8x288xf32>
    %112 = tpu.matmul %109, %111, %cst_74 {dimension_numbers = #tpu.dot_dimension_numbers<[1], [0], [0], [1], [0, 0, 1, 1], [], []>} : vector<8x4xf32>, vector<4x288xf32>, vector<8x288xf32> -> vector<8x288xf32>
    %113 = arith.addf %107, %112 : vector<8x288xf32>
    %c2_75 = arith.constant 2 : index
    %c0_76 = arith.constant 0 : index
    %c0_77 = arith.constant 0 : index
    %114 = vector.load %arg2[%c2_75, %c0_76, %c0_77] : memref<9x8x4xf32, #tpu.memory_space<vmem>>, vector<1x8x4xf32>
    %115 = vector.shape_cast %114 : vector<1x8x4xf32> to vector<8x4xf32>
    %c1_78 = arith.constant 1 : index
    %c0_79 = arith.constant 0 : index
    %c2_80 = arith.constant 2 : index
    %116 = vector.load %arg1[%c1_78, %c0_79, %c2_80] : memref<2x4x326xf32, #tpu.memory_space<vmem>>, vector<1x4x288xf32>
    %117 = vector.shape_cast %116 : vector<1x4x288xf32> to vector<4x288xf32>
    %cst_81 = arith.constant dense<0.000000e+00> : vector<8x288xf32>
    %118 = tpu.matmul %115, %117, %cst_81 {dimension_numbers = #tpu.dot_dimension_numbers<[1], [0], [0], [1], [0, 0, 1, 1], [], []>} : vector<8x4xf32>, vector<4x288xf32>, vector<8x288xf32> -> vector<8x288xf32>
    %119 = arith.addf %113, %118 : vector<8x288xf32>
    %c3_82 = arith.constant 3 : index
    %c0_83 = arith.constant 0 : index
    %c0_84 = arith.constant 0 : index
    %120 = vector.load %arg2[%c3_82, %c0_83, %c0_84] : memref<9x8x4xf32, #tpu.memory_space<vmem>>, vector<1x8x4xf32>
    %121 = vector.shape_cast %120 : vector<1x8x4xf32> to vector<8x4xf32>
    %c1_85 = arith.constant 1 : index
    %c0_86 = arith.constant 0 : index
    %c18_87 = arith.constant 18 : index
    %122 = vector.load %arg1[%c1_85, %c0_86, %c18_87] : memref<2x4x326xf32, #tpu.memory_space<vmem>>, vector<1x4x288xf32>
    %123 = vector.shape_cast %122 : vector<1x4x288xf32> to vector<4x288xf32>
    %cst_88 = arith.constant dense<0.000000e+00> : vector<8x288xf32>
    %124 = tpu.matmul %121, %123, %cst_88 {dimension_numbers = #tpu.dot_dimension_numbers<[1], [0], [0], [1], [0, 0, 1, 1], [], []>} : vector<8x4xf32>, vector<4x288xf32>, vector<8x288xf32> -> vector<8x288xf32>
    %125 = arith.addf %119, %124 : vector<8x288xf32>
    %c4_89 = arith.constant 4 : index
    %c0_90 = arith.constant 0 : index
    %c0_91 = arith.constant 0 : index
    %126 = vector.load %arg2[%c4_89, %c0_90, %c0_91] : memref<9x8x4xf32, #tpu.memory_space<vmem>>, vector<1x8x4xf32>
    %127 = vector.shape_cast %126 : vector<1x8x4xf32> to vector<8x4xf32>
    %c1_92 = arith.constant 1 : index
    %c0_93 = arith.constant 0 : index
    %c19_94 = arith.constant 19 : index
    %128 = vector.load %arg1[%c1_92, %c0_93, %c19_94] : memref<2x4x326xf32, #tpu.memory_space<vmem>>, vector<1x4x288xf32>
    %129 = vector.shape_cast %128 : vector<1x4x288xf32> to vector<4x288xf32>
    %cst_95 = arith.constant dense<0.000000e+00> : vector<8x288xf32>
    %130 = tpu.matmul %127, %129, %cst_95 {dimension_numbers = #tpu.dot_dimension_numbers<[1], [0], [0], [1], [0, 0, 1, 1], [], []>} : vector<8x4xf32>, vector<4x288xf32>, vector<8x288xf32> -> vector<8x288xf32>
    %131 = arith.addf %125, %130 : vector<8x288xf32>
    %c5_96 = arith.constant 5 : index
    %c0_97 = arith.constant 0 : index
    %c0_98 = arith.constant 0 : index
    %132 = vector.load %arg2[%c5_96, %c0_97, %c0_98] : memref<9x8x4xf32, #tpu.memory_space<vmem>>, vector<1x8x4xf32>
    %133 = vector.shape_cast %132 : vector<1x8x4xf32> to vector<8x4xf32>
    %c1_99 = arith.constant 1 : index
    %c0_100 = arith.constant 0 : index
    %c20_101 = arith.constant 20 : index
    %134 = vector.load %arg1[%c1_99, %c0_100, %c20_101] : memref<2x4x326xf32, #tpu.memory_space<vmem>>, vector<1x4x288xf32>
    %135 = vector.shape_cast %134 : vector<1x4x288xf32> to vector<4x288xf32>
    %cst_102 = arith.constant dense<0.000000e+00> : vector<8x288xf32>
    %136 = tpu.matmul %133, %135, %cst_102 {dimension_numbers = #tpu.dot_dimension_numbers<[1], [0], [0], [1], [0, 0, 1, 1], [], []>} : vector<8x4xf32>, vector<4x288xf32>, vector<8x288xf32> -> vector<8x288xf32>
    %137 = arith.addf %131, %136 : vector<8x288xf32>
    %c6_103 = arith.constant 6 : index
    %c0_104 = arith.constant 0 : index
    %c0_105 = arith.constant 0 : index
    %138 = vector.load %arg2[%c6_103, %c0_104, %c0_105] : memref<9x8x4xf32, #tpu.memory_space<vmem>>, vector<1x8x4xf32>
    %139 = vector.shape_cast %138 : vector<1x8x4xf32> to vector<8x4xf32>
    %c1_106 = arith.constant 1 : index
    %c0_107 = arith.constant 0 : index
    %c36_108 = arith.constant 36 : index
    %140 = vector.load %arg1[%c1_106, %c0_107, %c36_108] : memref<2x4x326xf32, #tpu.memory_space<vmem>>, vector<1x4x288xf32>
    %141 = vector.shape_cast %140 : vector<1x4x288xf32> to vector<4x288xf32>
    %cst_109 = arith.constant dense<0.000000e+00> : vector<8x288xf32>
    %142 = tpu.matmul %139, %141, %cst_109 {dimension_numbers = #tpu.dot_dimension_numbers<[1], [0], [0], [1], [0, 0, 1, 1], [], []>} : vector<8x4xf32>, vector<4x288xf32>, vector<8x288xf32> -> vector<8x288xf32>
    %143 = arith.addf %137, %142 : vector<8x288xf32>
    %c7_110 = arith.constant 7 : index
    %c0_111 = arith.constant 0 : index
    %c0_112 = arith.constant 0 : index
    %144 = vector.load %arg2[%c7_110, %c0_111, %c0_112] : memref<9x8x4xf32, #tpu.memory_space<vmem>>, vector<1x8x4xf32>
    %145 = vector.shape_cast %144 : vector<1x8x4xf32> to vector<8x4xf32>
    %c1_113 = arith.constant 1 : index
    %c0_114 = arith.constant 0 : index
    %c37_115 = arith.constant 37 : index
    %146 = vector.load %arg1[%c1_113, %c0_114, %c37_115] : memref<2x4x326xf32, #tpu.memory_space<vmem>>, vector<1x4x288xf32>
    %147 = vector.shape_cast %146 : vector<1x4x288xf32> to vector<4x288xf32>
    %cst_116 = arith.constant dense<0.000000e+00> : vector<8x288xf32>
    %148 = tpu.matmul %145, %147, %cst_116 {dimension_numbers = #tpu.dot_dimension_numbers<[1], [0], [0], [1], [0, 0, 1, 1], [], []>} : vector<8x4xf32>, vector<4x288xf32>, vector<8x288xf32> -> vector<8x288xf32>
    %149 = arith.addf %143, %148 : vector<8x288xf32>
    %c8_117 = arith.constant 8 : index
    %c0_118 = arith.constant 0 : index
    %c0_119 = arith.constant 0 : index
    %150 = vector.load %arg2[%c8_117, %c0_118, %c0_119] : memref<9x8x4xf32, #tpu.memory_space<vmem>>, vector<1x8x4xf32>
    %151 = vector.shape_cast %150 : vector<1x8x4xf32> to vector<8x4xf32>
    %c1_120 = arith.constant 1 : index
    %c0_121 = arith.constant 0 : index
    %c38_122 = arith.constant 38 : index
    %152 = vector.load %arg1[%c1_120, %c0_121, %c38_122] : memref<2x4x326xf32, #tpu.memory_space<vmem>>, vector<1x4x288xf32>
    %153 = vector.shape_cast %152 : vector<1x4x288xf32> to vector<4x288xf32>
    %cst_123 = arith.constant dense<0.000000e+00> : vector<8x288xf32>
    %154 = tpu.matmul %151, %153, %cst_123 {dimension_numbers = #tpu.dot_dimension_numbers<[1], [0], [0], [1], [0, 0, 1, 1], [], []>} : vector<8x4xf32>, vector<4x288xf32>, vector<8x288xf32> -> vector<8x288xf32>
    %155 = arith.addf %149, %154 : vector<8x288xf32>
    %156 = vector.broadcast %20 : vector<1x288xf32> to vector<8x288xf32>
    %157 = arith.mulf %155, %156 : vector<8x288xf32>
    %cst_124 = arith.constant dense<0.000000e+00> : vector<8xf32>
    %158 = vector.multi_reduction <add>, %157, %cst_124 [1] : vector<8x288xf32> to vector<8xf32>
    %159 = vector.shape_cast %158 : vector<8xf32> to vector<8x1xf32>
    %cst_125 = arith.constant 3.906250e-03 : f32
    %160 = vector.broadcast %cst_125 : f32 to vector<8x1xf32>
    %161 = arith.mulf %159, %160 : vector<8x1xf32>
    %162 = vector.broadcast %161 : vector<8x1xf32> to vector<8x288xf32>
    %163 = arith.subf %155, %162 : vector<8x288xf32>
    %164 = arith.mulf %163, %163 : vector<8x288xf32>
    %165 = vector.broadcast %20 : vector<1x288xf32> to vector<8x288xf32>
    %166 = arith.mulf %164, %165 : vector<8x288xf32>
    %cst_126 = arith.constant dense<0.000000e+00> : vector<8xf32>
    %167 = vector.multi_reduction <add>, %166, %cst_126 [1] : vector<8x288xf32> to vector<8xf32>
    %168 = vector.shape_cast %167 : vector<8xf32> to vector<8x1xf32>
    %cst_127 = arith.constant 3.906250e-03 : f32
    %169 = vector.broadcast %cst_127 : f32 to vector<8x1xf32>
    %170 = arith.mulf %168, %169 : vector<8x1xf32>
    %cst_128 = arith.constant 9.99999974E-6 : f32
    %171 = vector.broadcast %cst_128 : f32 to vector<8x1xf32>
    %172 = arith.addf %170, %171 : vector<8x1xf32>
    %173 = math.rsqrt %172 : vector<8x1xf32>
    %174 = vector.broadcast %173 : vector<8x1xf32> to vector<8x288xf32>
    %175 = arith.mulf %163, %174 : vector<8x288xf32>
    %cst_129 = arith.constant 0.000000e+00 : f32
    %176 = vector.broadcast %cst_129 : f32 to vector<8x288xf32>
    %177 = arith.maximumf %175, %176 : vector<8x288xf32>
    %c1_130 = arith.constant 1 : index
    %c0_131 = arith.constant 0 : index
    %c0_132 = arith.constant 0 : index
    %178 = vector.load %arg3[%c1_130, %c0_131, %c0_132] : memref<2x8x288xf32, #tpu.memory_space<vmem>>, vector<1x8x288xf32>
    %179 = vector.shape_cast %178 : vector<1x8x288xf32> to vector<8x288xf32>
    %180 = vector.shape_cast %177 : vector<8x288xf32> to vector<1x8x288xf32>
    tpu.vector_store %arg3[%c1_130, %c0_131, %c0_132], %180 {strides = array<i32>} : memref<2x8x288xf32, #tpu.memory_space<vmem>>, vector<1x8x288xf32>,
    return
  }
  func.func @transform_0(%arg0: i32) -> (i32, i32, i32) {
    %c0_i32 = arith.constant 0 : i32
    %c0_i32_0 = arith.constant 0 : i32
    %c0_i32_1 = arith.constant 0 : i32
    %c0_i32_2 = arith.constant 0 : i32
    return %c0_i32, %c0_i32_0, %c0_i32_1 : i32, i32, i32
  }
  func.func @transform_1(%arg0: i32) -> (i32, i32, i32) {
    %c0_i32 = arith.constant 0 : i32
    %c0_i32_0 = arith.constant 0 : i32
    %c0_i32_1 = arith.constant 0 : i32
    %c0_i32_2 = arith.constant 0 : i32
    return %c0_i32, %c0_i32_0, %c0_i32_1 : i32, i32, i32
  }
  func.func @transform_2(%arg0: i32) -> (i32, i32, i32) {
    %c0_i32 = arith.constant 0 : i32
    %c0_i32_0 = arith.constant 0 : i32
    %c0_i32_1 = arith.constant 0 : i32
    %c0_i32_2 = arith.constant 0 : i32
    return %c0_i32, %c0_i32_0, %c0_i32_1 : i32, i32, i32
  }
}

</mosaic_0001>

<llo_original>
// kernel: tpu_custom_call.1
$region0: #{tpu_custom_call.1}
  #allocation0 [shape = 'u32[]', space=smem, size = 0x4, offset = 0x4, fixed_abs, tag = 'smem constant byte address 0x4 - core index']
  #allocation1 [shape = 'u32[144,128]{1,0:T(1,128)}', space=vmem, size = 0x12000, scoped, tag = 'internal scratch']
  %s0 = inlined_call_operand.vmem [shape: f32[2,4,326], index: 0, kind: input, shape index: {}]
  %s1 = inlined_call_operand.vmem [shape: f32[9,8,4], index: 1, kind: input, shape index: {}]
  %s2 = inlined_call_operand.hbm [shape: f32[2,8,288], index: 2, kind: output, shape index: {}]
  %s3 = sld [smem:[#allocation0]]
  $region18: #{tpu_custom_call.1} parent=0
    _
  %s5 = ssub.s32 1, %s3
  %s6 = scalar_select 0, %s5, %s3
  $region1: #{tpu_custom_call.1} parent=0
    #allocation2 [shape = 'u8[24576]{0}', space=vmem, size = 0x6000, scoped, tag = 'output window, operand 0, single buffered']
    #allocation3 [shape = 's32[1]{0}', space=sflag, size = 0x4, scoped, tag = 'scoped memory for tpu_custom_call.1']
    %7 = vsyncpa [#allocation3], 0
    // Predicated region
    $region2: #{tpu_custom_call.1} parent=1 // pred_check
      _
    $region3: #{tpu_custom_call.1} parent=1 // pred_check_branch
      %9 = sbr.rel (0) target = $region5
    $region4: #{tpu_custom_call.1} parent=1 // pred_region
      _
    $region5: #{tpu_custom_call.1} parent=1 // pred_fallthru
      _
    // Predicated region
    $region6: #{tpu_custom_call.1} parent=1 // pred_check
      _
    $region7: #{tpu_custom_call.1} parent=1 // pred_check_branch
      %11 = sbr.rel (0) target = $region9
    $region8: #{tpu_custom_call.1} parent=1 // pred_region
      _
    $region9: #{tpu_custom_call.1} parent=1 // pred_fallthru
      _
    %v12 = vlaneseq
    %v13 = vand.u32 %v12, 127
    %v14 = vadd.s32 %v13, 128
    %v15 = vadd.s32 %v13, 256
    %vm16 = vcmp.lt.s32.totalorder %v13, 0
    %v17 = vsub.s32 0, %v13
    %v18 = vsel %vm16, %v17, %v13
    %v19 = vmul.u32.u64.compose %v18, 3817748708
    %v20 = vextract.low.u32 %v19
    %v21 = vextract.high.u32 %v19
    %v22 = vshrl.u32 %v21, 4
    %v23 = vmul.u32 %v22, 18
    %v24 = vsub.s32 %v18, %v23
    %v25 = vsub.s32 0, %v24
    %v26 = vsel %vm16, %v25, %v24
    %vm27 = vcmp.lt.s32.totalorder %v14, 0
    %v28 = vsub.s32 0, %v14
    %v29 = vsel %vm27, %v28, %v14
    %v30 = vmul.u32.u64.compose %v29, 3817748708
    %v31 = vextract.low.u32 %v30
    %v32 = vextract.high.u32 %v30
    %v33 = vshrl.u32 %v32, 4
    %v34 = vmul.u32 %v33, 18
    %v35 = vsub.s32 %v29, %v34
    %v36 = vsub.s32 0, %v35
    %v37 = vsel %vm27, %v36, %v35
    %vm38 = vcmp.lt.s32.totalorder %v15, 0
    %v39 = vsub.s32 0, %v15
    %v40 = vsel %vm38, %v39, %v15
    %v41 = vmul.u32.u64.compose %v40, 3817748708
    %v42 = vextract.low.u32 %v41
    %v43 = vextract.high.u32 %v41
    %v44 = vshrl.u32 %v43, 4
    %v45 = vmul.u32 %v44, 18
    %v46 = vsub.s32 %v40, %v45
    %v47 = vsub.s32 0, %v46
    %v48 = vsel %vm38, %v47, %v46
    %vm49 = vcmp.ne.s32.totalorder %v26, 0
    %vm50 = vcmp.ne.s32.totalorder %v37, 0
    %vm51 = vcmp.ne.s32.totalorder %v48, 0
    %vm52 = vcmp.lt.s32.totalorder %v26, 0
    %vm53 = vcmp.lt.s32.totalorder %v37, 0
    %vm54 = vcmp.lt.s32.totalorder %v48, 0
    %vm55 = vmand %vm52, %vm49
    %vm56 = vmand %vm53, %vm50
    %vm57 = vmand %vm54, %vm51
    %v58 = vadd.s32 %v26, 18
    %v59 = vadd.s32 %v37, 18
    %v60 = vadd.s32 %v48, 18
    %v61 = vsel %vm55, %v58, %v26
    %v62 = vsel %vm56, %v59, %v37
    %v63 = vsel %vm57, %v60, %v48
    %vm64 = vcmp.lt.s32.totalorder %v61, 16
    %vm65 = vcmp.lt.s32.totalorder %v62, 16
    %vm66 = vcmp.lt.s32.totalorder %v63, 16
    %v67 = vsel %vm64, 1, 0
    %v68 = vsel %vm65, 1, 0
    %v69 = vsel %vm66, 1, 0
    %v70 = vcvt.s32.f32 %v67
    %v71 = vcvt.s32.f32 %v68
    %v72 = vcvt.s32.f32 %v69
    %v73 = vld [vmem:[%s1] sm:$0xff]
    %v74 = vld [vmem:[%s0] sm:$0xff]
    %v75 = vld [vmem:[%s0 + $0x8] sm:$0xf]
    %s76 = scalar_lea.vmem %s1, 8
    %v77 = vld [vmem:[%s76] sm:$0xff]
    %v80 = vcombine.high %v74, %v74
    %81 = vrot.lane.b32.xlu0 %v74, 127
    %v82 = vpop.permute.xlu0 %81
    %83 = vrot.lane.b32.xlu0 %v80, 127
    %v84 = vpop.permute.xlu0 %83
    %85 = vrot.lane.b32.xlu0 %v75, 127
    %v86 = vpop.permute.xlu0 %85
    %vm87 = vcmask 1039360
    %v88 = vsel %vm87, %v82, %v84
    %v89 = vsel %vm87, %v84, %v86
    %vm90 = vcmask 31744
    %v92 = vsel %vm90, %v77, 0
    %vm94 = vcmask 1043456
    %v95 = vsel %vm94, %v88, 0
    %v97 = vsel %vm94, %v89, 0
    %v99 = vsel %vm94, %v86, 0
    %101 = vmatprep.subr.mxu0 %v97
    %102 = vmatpush1.msra.mxu0 %v95
    %103 = vmatprep.subr.mxu0 0.0
    %104 = vmatpush1.msra.mxu0 0.0
    %105 = vmatprep.subr.mxu0 0.0
    %106 = vmatpush1.msra.mxu0 0.0
    %107 = vmatprep.subr.mxu0 0.0
    %108 = vmatpush1.msra.mxu0 0.0
    %109 = vmatprep.subr.mxu0 0.0
    %110 = vmatpush1.msra.mxu0 0.0
    %111 = vmatprep.subr.mxu0 0.0
    %112 = vmatpush1.msra.mxu0 0.0
    %113 = vmatprep.subr.mxu0 0.0
    %114 = vmatpush1.msra.mxu0 0.0
    %115 = vmatprep.subr.mxu0 0.0
    %116 = vmatpush1.msra.mxu0 0.0
    %117 = vmatprep.subr.mxu0 0.0
    %118 = vmatpush1.msra.mxu0 0.0
    %119 = vmatprep.subr.mxu0 0.0
    %120 = vmatpush1.msra.mxu0 0.0
    %121 = vmatprep.subr.mxu0 0.0
    %122 = vmatpush1.msra.mxu0 0.0
    %123 = vmatprep.subr.mxu0 0.0
    %124 = vmatpush1.msra.mxu0 0.0
    %125 = vmatprep.subr.mxu0 0.0
    %126 = vmatpush1.msra.mxu0 0.0
    %127 = vmatprep.subr.mxu0 0.0
    %128 = vmatpush1.msra.mxu0 0.0
    %129 = vmatprep.subr.mxu0 0.0
    %130 = vmatpush1.msra.mxu0 0.0
    %131 = vmatprep.subr.mxu0 0.0
    %132 = vmatpush1.msra.mxu0 0.0
    %133 = vmatprep.subr.mxu0 0.0
    %134 = vmatpush1.msra.mxu0 0.0
    %135 = vmatprep.subr.mxu0 0.0
    %136 = vmatpush1.msra.mxu0 0.0
    %137 = vmatprep.subr.mxu0 0.0
    %138 = vmatpush1.msra.mxu0 0.0
    %139 = vmatprep.subr.mxu0 0.0
    %140 = vmatpush1.msra.mxu0 0.0
    %141 = vmatprep.subr.mxu0 0.0
    %142 = vmatpush1.msra.mxu0 0.0
    %143 = vmatprep.subr.mxu0 0.0
    %144 = vmatpush1.msra.mxu0 0.0
    %145 = vmatprep.subr.mxu0 0.0
    %146 = vmatpush1.msra.mxu0 0.0
    %147 = vmatprep.subr.mxu0 0.0
    %148 = vmatpush1.msra.mxu0 0.0
    %149 = vmatprep.subr.mxu0 0.0
    %150 = vmatpush1.msra.mxu0 0.0
    %151 = vmatprep.subr.mxu0 0.0
    %152 = vmatpush1.msra.mxu0 0.0
    %153 = vmatprep.subr.mxu0 0.0
    %154 = vmatpush1.msra.mxu0 0.0
    %155 = vmatprep.subr.mxu0 0.0
    %156 = vmatpush1.msra.mxu0 0.0
    %157 = vmatprep.subr.mxu0 0.0
    %158 = vmatpush1.msra.mxu0 0.0
    %159 = vmatprep.subr.mxu0 0.0
    %160 = vmatpush1.msra.mxu0 0.0
    %161 = vmatprep.subr.mxu0 0.0
    %162 = vmatpush1.msra.mxu0 0.0
    %163 = vmatprep.subr.mxu0 0.0
    %164 = vmatpush1.msra.mxu0 0.0
    %165 = vmatprep.mubr.f32.mxu0 0.0
    %166 = vmatmul.mubr.f32.gmra.mrb[0].mxu0 %v92
    %v167 = vpop.f32.mrb[0].mxu0
    %v168 = vadd.f32 0.0, %v167
    %v169 = vpop.f32.mrb[0].mxu0
    %v170 = vadd.f32 0.0, %v169
    %171 = vdwg.mxu0
    %172 = vmatprep.subr.mxu0 0.0
    %173 = vmatpush1.msra.mxu0 %v99
    %174 = vmatprep.subr.mxu0 0.0
    %175 = vmatpush1.msra.mxu0 0.0
    %176 = vmatprep.subr.mxu0 0.0
    %177 = vmatpush1.msra.mxu0 0.0
    %178 = vmatprep.subr.mxu0 0.0
    %179 = vmatpush1.msra.mxu0 0.0
    %180 = vmatprep.subr.mxu0 0.0
    %181 = vmatpush1.msra.mxu0 0.0
    %182 = vmatprep.subr.mxu0 0.0
    %183 = vmatpush1.msra.mxu0 0.0
    %184 = vmatprep.subr.mxu0 0.0
    %185 = vmatpush1.msra.mxu0 0.0
    %186 = vmatprep.subr.mxu0 0.0
    %187 = vmatpush1.msra.mxu0 0.0
    %188 = vmatprep.subr.mxu0 0.0
    %189 = vmatpush1.msra.mxu0 0.0
    %190 = vmatprep.subr.mxu0 0.0
    %191 = vmatpush1.msra.mxu0 0.0
    %192 = vmatprep.subr.mxu0 0.0
    %193 = vmatpush1.msra.mxu0 0.0
    %194 = vmatprep.subr.mxu0 0.0
    %195 = vmatpush1.msra.mxu0 0.0
    %196 = vmatprep.subr.mxu0 0.0
    %197 = vmatpush1.msra.mxu0 0.0
    %198 = vmatprep.subr.mxu0 0.0
    %199 = vmatpush1.msra.mxu0 0.0
    %200 = vmatprep.subr.mxu0 0.0
    %201 = vmatpush1.msra.mxu0 0.0
    %202 = vmatprep.subr.mxu0 0.0
    %203 = vmatpush1.msra.mxu0 0.0
    %204 = vmatprep.subr.mxu0 0.0
    %205 = vmatpush1.msra.mxu0 0.0
    %206 = vmatprep.subr.mxu0 0.0
    %207 = vmatpush1.msra.mxu0 0.0
    %208 = vmatprep.subr.mxu0 0.0
    %209 = vmatpush1.msra.mxu0 0.0
    %210 = vmatprep.subr.mxu0 0.0
    %211 = vmatpush1.msra.mxu0 0.0
    %212 = vmatprep.subr.mxu0 0.0
    %213 = vmatpush1.msra.mxu0 0.0
    %214 = vmatprep.subr.mxu0 0.0
    %215 = vmatpush1.msra.mxu0 0.0
    %216 = vmatprep.subr.mxu0 0.0
    %217 = vmatpush1.msra.mxu0 0.0
    %218 = vmatprep.subr.mxu0 0.0
    %219 = vmatpush1.msra.mxu0 0.0
    %220 = vmatprep.subr.mxu0 0.0
    %221 = vmatpush1.msra.mxu0 0.0
    %222 = vmatprep.subr.mxu0 0.0
    %223 = vmatpush1.msra.mxu0 0.0
    %224 = vmatprep.subr.mxu0 0.0
    %225 = vmatpush1.msra.mxu0 0.0
    %226 = vmatprep.subr.mxu0 0.0
    %227 = vmatpush1.msra.mxu0 0.0
    %228 = vmatprep.subr.mxu0 0.0
    %229 = vmatpush1.msra.mxu0 0.0
    %230 = vmatprep.subr.mxu0 0.0
    %231 = vmatpush1.msra.mxu0 0.0
    %232 = vmatprep.subr.mxu0 0.0
    %233 = vmatpush1.msra.mxu0 0.0
    %234 = vmatprep.subr.mxu0 0.0
    %235 = vmatpush1.msra.mxu0 0.0
    %236 = vmatprep.mubr.f32.mxu0 0.0
    %237 = vmatmul.mubr.f32.gmra.mrb[0].mxu0 %v92
    %v238 = vpop.f32.mrb[0].mxu0
    %v239 = vadd.f32 0.0, %v238
    %v240 = vpop.f32.mrb[0].mxu0
    %241 = vdwg.mxu0
    %v243 = vsel %vm90, %v73, 0
    %v245 = vsel %vm94, %v74, 0
    %v247 = vsel %vm94, %v80, 0
    %v249 = vsel %vm94, %v75, 0
    %251 = vmatprep.subr.mxu0 %v247
    %252 = vmatpush1.msra.mxu0 %v245
    %253 = vmatprep.subr.mxu0 0.0
    %254 = vmatpush1.msra.mxu0 0.0
    %255 = vmatprep.subr.mxu0 0.0
    %256 = vmatpush1.msra.mxu0 0.0
    %257 = vmatprep.subr.mxu0 0.0
    %258 = vmatpush1.msra.mxu0 0.0
    %259 = vmatprep.subr.mxu0 0.0
    %260 = vmatpush1.msra.mxu0 0.0
    %261 = vmatprep.subr.mxu0 0.0
    %262 = vmatpush1.msra.mxu0 0.0
    %263 = vmatprep.subr.mxu0 0.0
    %264 = vmatpush1.msra.mxu0 0.0
    %265 = vmatprep.subr.mxu0 0.0
    %266 = vmatpush1.msra.mxu0 0.0
    %267 = vmatprep.subr.mxu0 0.0
    %268 = vmatpush1.msra.mxu0 0.0
    %269 = vmatprep.subr.mxu0 0.0
    %270 = vmatpush1.msra.mxu0 0.0
    %271 = vmatprep.subr.mxu0 0.0
    %272 = vmatpush1.msra.mxu0 0.0
    %273 = vmatprep.subr.mxu0 0.0
    %274 = vmatpush1.msra.mxu0 0.0
    %275 = vmatprep.subr.mxu0 0.0
    %276 = vmatpush1.msra.mxu0 0.0
    %277 = vmatprep.subr.mxu0 0.0
    %278 = vmatpush1.msra.mxu0 0.0
    %279 = vmatprep.subr.mxu0 0.0
    %280 = vmatpush1.msra.mxu0 0.0
    %281 = vmatprep.subr.mxu0 0.0
    %282 = vmatpush1.msra.mxu0 0.0
    %283 = vmatprep.subr.mxu0 0.0
    %284 = vmatpush1.msra.mxu0 0.0
    %285 = vmatprep.subr.mxu0 0.0
    %286 = vmatpush1.msra.mxu0 0.0
    %287 = vmatprep.subr.mxu0 0.0
    %288 = vmatpush1.msra.mxu0 0.0
    %289 = vmatprep.subr.mxu0 0.0
    %290 = vmatpush1.msra.mxu0 0.0
    %291 = vmatprep.subr.mxu0 0.0
    %292 = vmatpush1.msra.mxu0 0.0
    %293 = vmatprep.subr.mxu0 0.0
    %294 = vmatpush1.msra.mxu0 0.0
    %295 = vmatprep.subr.mxu0 0.0
    %296 = vmatpush1.msra.mxu0 0.0
    %297 = vmatprep.subr.mxu0 0.0
    %298 = vmatpush1.msra.mxu0 0.0
    %299 = vmatprep.subr.mxu0 0.0
    %300 = vmatpush1.msra.mxu0 0.0
    %301 = vmatprep.subr.mxu0 0.0
    %302 = vmatpush1.msra.mxu0 0.0
    %303 = vmatprep.subr.mxu0 0.0
    %304 = vmatpush1.msra.mxu0 0.0
    %305 = vmatprep.subr.mxu0 0.0
    %306 = vmatpush1.msra.mxu0 0.0
    %307 = vmatprep.subr.mxu0 0.0
    %308 = vmatpush1.msra.mxu0 0.0
    %309 = vmatprep.subr.mxu0 0.0
    %310 = vmatpush1.msra.mxu0 0.0
    %311 = vmatprep.subr.mxu0 0.0
    %312 = vmatpush1.msra.mxu0 0.0
    %313 = vmatprep.subr.mxu0 0.0
    %314 = vmatpush1.msra.mxu0 0.0
    %315 = vmatprep.mubr.f32.mxu0 0.0
    %316 = vmatmul.mubr.f32.gmra.mrb[0].mxu0 %v243
    %v317 = vpop.f32.mrb[0].mxu0
    %v318 = vadd.f32 %v168, %v317
    %v319 = vpop.f32.mrb[0].mxu0
    %v320 = vadd.f32 %v170, %v319
    %321 = vdwg.mxu0
    %322 = vmatprep.subr.mxu0 0.0
    %323 = vmatpush1.msra.mxu0 %v249
    %324 = vmatprep.subr.mxu0 0.0
    %325 = vmatpush1.msra.mxu0 0.0
    %326 = vmatprep.subr.mxu0 0.0
    %327 = vmatpush1.msra.mxu0 0.0
    %328 = vmatprep.subr.mxu0 0.0
    %329 = vmatpush1.msra.mxu0 0.0
    %330 = vmatprep.subr.mxu0 0.0
    %331 = vmatpush1.msra.mxu0 0.0
    %332 = vmatprep.subr.mxu0 0.0
    %333 = vmatpush1.msra.mxu0 0.0
    %334 = vmatprep.subr.mxu0 0.0
    %335 = vmatpush1.msra.mxu0 0.0
    %336 = vmatprep.subr.mxu0 0.0
    %337 = vmatpush1.msra.mxu0 0.0
    %338 = vmatprep.subr.mxu0 0.0
    %339 = vmatpush1.msra.mxu0 0.0
    %340 = vmatprep.subr.mxu0 0.0
    %341 = vmatpush1.msra.mxu0 0.0
    %342 = vmatprep.subr.mxu0 0.0
    %343 = vmatpush1.msra.mxu0 0.0
    %344 = vmatprep.subr.mxu0 0.0
    %345 = vmatpush1.msra.mxu0 0.0
    %346 = vmatprep.subr.mxu0 0.0
    %347 = vmatpush1.msra.mxu0 0.0
    %348 = vmatprep.subr.mxu0 0.0
    %349 = vmatpush1.msra.mxu0 0.0
    %350 = vmatprep.subr.mxu0 0.0
    %351 = vmatpush1.msra.mxu0 0.0
    %352 = vmatprep.subr.mxu0 0.0
    %353 = vmatpush1.msra.mxu0 0.0
    %354 = vmatprep.subr.mxu0 0.0
    %355 = vmatpush1.msra.mxu0 0.0
    %356 = vmatprep.subr.mxu0 0.0
    %357 = vmatpush1.msra.mxu0 0.0
    %358 = vmatprep.subr.mxu0 0.0
    %359 = vmatpush1.msra.mxu0 0.0
    %360 = vmatprep.subr.mxu0 0.0
    %361 = vmatpush1.msra.mxu0 0.0
    %362 = vmatprep.subr.mxu0 0.0
    %363 = vmatpush1.msra.mxu0 0.0
    %364 = vmatprep.subr.mxu0 0.0
    %365 = vmatpush1.msra.mxu0 0.0
    %366 = vmatprep.subr.mxu0 0.0
    %367 = vmatpush1.msra.mxu0 0.0
    %368 = vmatprep.subr.mxu0 0.0
    %369 = vmatpush1.msra.mxu0 0.0
    %370 = vmatprep.subr.mxu0 0.0
    %371 = vmatpush1.msra.mxu0 0.0
    %372 = vmatprep.subr.mxu0 0.0
    %373 = vmatpush1.msra.mxu0 0.0
    %374 = vmatprep.subr.mxu0 0.0
    %375 = vmatpush1.msra.mxu0 0.0
    %376 = vmatprep.subr.mxu0 0.0
    %377 = vmatpush1.msra.mxu0 0.0
    %378 = vmatprep.subr.mxu0 0.0
    %379 = vmatpush1.msra.mxu0 0.0
    %380 = vmatprep.subr.mxu0 0.0
    %381 = vmatpush1.msra.mxu0 0.0
    %382 = vmatprep.subr.mxu0 0.0
    %383 = vmatpush1.msra.mxu0 0.0
    %384 = vmatprep.subr.mxu0 0.0
    %385 = vmatpush1.msra.mxu0 0.0
    %386 = vmatprep.mubr.f32.mxu0 0.0
    %387 = vmatmul.mubr.f32.gmra.mrb[0].mxu0 %v243
    %v388 = vpop.f32.mrb[0].mxu0
    %v389 = vadd.f32 %v239, %v388
    %v390 = vpop.f32.mrb[0].mxu0
    %391 = vdwg.mxu0
    %s392 = scalar_lea.vmem %s1, 16
    %v393 = vld [vmem:[%s392] sm:$0xff]
    %v394 = vld [vmem:[%s0] sm:$0xff]
    %v395 = vld [vmem:[%s0 + $0x8] sm:$0xf]
    %v398 = vcombine.high %v394, %v394
    %399 = vrot.lane.b32.xlu0 %v394, 126
    %v400 = vpop.permute.xlu0 %399
    %401 = vrot.lane.b32.xlu0 %v398, 126
    %v402 = vpop.permute.xlu0 %401
    %403 = vrot.lane.b32.xlu0 %v395, 126
    %v404 = vpop.permute.xlu0 %403
    %vm405 = vcmask 1031168
    %v406 = vsel %vm405, %v400, %v402
    %v407 = vsel %vm405, %v402, %v404
    %v409 = vsel %vm90, %v393, 0
    %v411 = vsel %vm94, %v406, 0
    %v413 = vsel %vm94, %v407, 0
    %v415 = vsel %vm94, %v404, 0
    %417 = vmatprep.subr.mxu0 %v413
    %418 = vmatpush1.msra.mxu0 %v411
    %419 = vmatprep.subr.mxu0 0.0
    %420 = vmatpush1.msra.mxu0 0.0
    %421 = vmatprep.subr.mxu0 0.0
    %422 = vmatpush1.msra.mxu0 0.0
    %423 = vmatprep.subr.mxu0 0.0
    %424 = vmatpush1.msra.mxu0 0.0
    %425 = vmatprep.subr.mxu0 0.0
    %426 = vmatpush1.msra.mxu0 0.0
    %427 = vmatprep.subr.mxu0 0.0
    %428 = vmatpush1.msra.mxu0 0.0
    %429 = vmatprep.subr.mxu0 0.0
    %430 = vmatpush1.msra.mxu0 0.0
    %431 = vmatprep.subr.mxu0 0.0
    %432 = vmatpush1.msra.mxu0 0.0
    %433 = vmatprep.subr.mxu0 0.0
    %434 = vmatpush1.msra.mxu0 0.0
    %435 = vmatprep.subr.mxu0 0.0
    %436 = vmatpush1.msra.mxu0 0.0
    %437 = vmatprep.subr.mxu0 0.0
    %438 = vmatpush1.msra.mxu0 0.0
    %439 = vmatprep.subr.mxu0 0.0
    %440 = vmatpush1.msra.mxu0 0.0
    %441 = vmatprep.subr.mxu0 0.0
    %442 = vmatpush1.msra.mxu0 0.0
    %443 = vmatprep.subr.mxu0 0.0
    %444 = vmatpush1.msra.mxu0 0.0
    %445 = vmatprep.subr.mxu0 0.0
    %446 = vmatpush1.msra.mxu0 0.0
    %447 = vmatprep.subr.mxu0 0.0
    %448 = vmatpush1.msra.mxu0 0.0
    %449 = vmatprep.subr.mxu0 0.0
    %450 = vmatpush1.msra.mxu0 0.0
    %451 = vmatprep.subr.mxu0 0.0
    %452 = vmatpush1.msra.mxu0 0.0
    %453 = vmatprep.subr.mxu0 0.0
    %454 = vmatpush1.msra.mxu0 0.0
    %455 = vmatprep.subr.mxu0 0.0
    %456 = vmatpush1.msra.mxu0 0.0
    %457 = vmatprep.subr.mxu0 0.0
    %458 = vmatpush1.msra.mxu0 0.0
    %459 = vmatprep.subr.mxu0 0.0
    %460 = vmatpush1.msra.mxu0 0.0
    %461 = vmatprep.subr.mxu0 0.0
    %462 = vmatpush1.msra.mxu0 0.0
    %463 = vmatprep.subr.mxu0 0.0
    %464 = vmatpush1.msra.mxu0 0.0
    %465 = vmatprep.subr.mxu0 0.0
    %466 = vmatpush1.msra.mxu0 0.0
    %467 = vmatprep.subr.mxu0 0.0
    %468 = vmatpush1.msra.mxu0 0.0
    %469 = vmatprep.subr.mxu0 0.0
    %470 = vmatpush1.msra.mxu0 0.0
    %471 = vmatprep.subr.mxu0 0.0
    %472 = vmatpush1.msra.mxu0 0.0
    %473 = vmatprep.subr.mxu0 0.0
    %474 = vmatpush1.msra.mxu0 0.0
    %475 = vmatprep.subr.mxu0 0.0
    %476 = vmatpush1.msra.mxu0 0.0
    %477 = vmatprep.subr.mxu0 0.0
    %478 = vmatpush1.msra.mxu0 0.0
    %479 = vmatprep.subr.mxu0 0.0
    %480 = vmatpush1.msra.mxu0 0.0
    %481 = vmatprep.mubr.f32.mxu0 0.0
    %482 = vmatmul.mubr.f32.gmra.mrb[0].mxu0 %v409
    %v483 = vpop.f32.mrb[0].mxu0
    %v484 = vadd.f32 0.0, %v483
    %v485 = vpop.f32.mrb[0].mxu0
    %v486 = vadd.f32 0.0, %v485
    %487 = vdwg.mxu0
    %488 = vmatprep.subr.mxu0 0.0
    %489 = vmatpush1.msra.mxu0 %v415
    %490 = vmatprep.subr.mxu0 0.0
    %491 = vmatpush1.msra.mxu0 0.0
    %492 = vmatprep.subr.mxu0 0.0
    %493 = vmatpush1.msra.mxu0 0.0
    %494 = vmatprep.subr.mxu0 0.0
    %495 = vmatpush1.msra.mxu0 0.0
    %496 = vmatprep.subr.mxu0 0.0
    %497 = vmatpush1.msra.mxu0 0.0
    %498 = vmatprep.subr.mxu0 0.0
    %499 = vmatpush1.msra.mxu0 0.0
    %500 = vmatprep.subr.mxu0 0.0
    %501 = vmatpush1.msra.mxu0 0.0
    %502 = vmatprep.subr.mxu0 0.0
    %503 = vmatpush1.msra.mxu0 0.0
    %504 = vmatprep.subr.mxu0 0.0
    %505 = vmatpush1.msra.mxu0 0.0
    %506 = vmatprep.subr.mxu0 0.0
    %507 = vmatpush1.msra.mxu0 0.0
    %508 = vmatprep.subr.mxu0 0.0
    %509 = vmatpush1.msra.mxu0 0.0
    %510 = vmatprep.subr.mxu0 0.0
    %511 = vmatpush1.msra.mxu0 0.0
    %512 = vmatprep.subr.mxu0 0.0
    %513 = vmatpush1.msra.mxu0 0.0
    %514 = vmatprep.subr.mxu0 0.0
    %515 = vmatpush1.msra.mxu0 0.0
    %516 = vmatprep.subr.mxu0 0.0
    %517 = vmatpush1.msra.mxu0 0.0
    %518 = vmatprep.subr.mxu0 0.0
    %519 = vmatpush1.msra.mxu0 0.0
    %520 = vmatprep.subr.mxu0 0.0
    %521 = vmatpush1.msra.mxu0 0.0
    %522 = vmatprep.subr.mxu0 0.0
    %523 = vmatpush1.msra.mxu0 0.0
    %524 = vmatprep.subr.mxu0 0.0
    %525 = vmatpush1.msra.mxu0 0.0
    %526 = vmatprep.subr.mxu0 0.0
    %527 = vmatpush1.msra.mxu0 0.0
    %528 = vmatprep.subr.mxu0 0.0
    %529 = vmatpush1.msra.mxu0 0.0
    %530 = vmatprep.subr.mxu0 0.0
    %531 = vmatpush1.msra.mxu0 0.0
    %532 = vmatprep.subr.mxu0 0.0
    %533 = vmatpush1.msra.mxu0 0.0
    %534 = vmatprep.subr.mxu0 0.0
    %535 = vmatpush1.msra.mxu0 0.0
    %536 = vmatprep.subr.mxu0 0.0
    %537 = vmatpush1.msra.mxu0 0.0
    %538 = vmatprep.subr.mxu0 0.0
    %539 = vmatpush1.msra.mxu0 0.0
    %540 = vmatprep.subr.mxu0 0.0
    %541 = vmatpush1.msra.mxu0 0.0
    %542 = vmatprep.subr.mxu0 0.0
    %543 = vmatpush1.msra.mxu0 0.0
    %544 = vmatprep.subr.mxu0 0.0
    %545 = vmatpush1.msra.mxu0 0.0
    %546 = vmatprep.subr.mxu0 0.0
    %547 = vmatpush1.msra.mxu0 0.0
    %548 = vmatprep.subr.mxu0 0.0
    %549 = vmatpush1.msra.mxu0 0.0
    %550 = vmatprep.subr.mxu0 0.0
    %551 = vmatpush1.msra.mxu0 0.0
    %552 = vmatprep.mubr.f32.mxu0 0.0
    %553 = vmatmul.mubr.f32.gmra.mrb[0].mxu0 %v409
    %v554 = vpop.f32.mrb[0].mxu0
    %v555 = vadd.f32 0.0, %v554
    %v556 = vpop.f32.mrb[0].mxu0
    %557 = vdwg.mxu0
    %v558 = vadd.f32 %v318, %v484
    %v559 = vadd.f32 %v320, %v486
    %v560 = vadd.f32 %v389, %v555
    %s561 = scalar_lea.vmem %s1, 24
    %v562 = vld [vmem:[%s561] sm:$0xff]
    %v563 = vld [vmem:[%s0] sm:$0xff]
    %v564 = vld [vmem:[%s0 + $0x8] sm:$0xf]
    %v567 = vcombine.high %v563, %v563
    %568 = vrot.lane.b32.xlu0 %v563, 110
    %v569 = vpop.permute.xlu0 %568
    %570 = vrot.lane.b32.xlu0 %v567, 110
    %v571 = vpop.permute.xlu0 %570
    %572 = vrot.lane.b32.xlu0 %v564, 110
    %v573 = vpop.permute.xlu0 %572
    %vm574 = vcmask 900096
    %v575 = vsel %vm574, %v569, %v571
    %v576 = vsel %vm574, %v571, %v573
    %v578 = vsel %vm90, %v562, 0
    %v580 = vsel %vm94, %v575, 0
    %v582 = vsel %vm94, %v576, 0
    %v584 = vsel %vm94, %v573, 0
    %586 = vmatprep.subr.mxu0 %v582
    %587 = vmatpush1.msra.mxu0 %v580
    %588 = vmatprep.subr.mxu0 0.0
    %589 = vmatpush1.msra.mxu0 0.0
    %590 = vmatprep.subr.mxu0 0.0
    %591 = vmatpush1.msra.mxu0 0.0
    %592 = vmatprep.subr.mxu0 0.0
    %593 = vmatpush1.msra.mxu0 0.0
    %594 = vmatprep.subr.mxu0 0.0
    %595 = vmatpush1.msra.mxu0 0.0
    %596 = vmatprep.subr.mxu0 0.0
    %597 = vmatpush1.msra.mxu0 0.0
    %598 = vmatprep.subr.mxu0 0.0
    %599 = vmatpush1.msra.mxu0 0.0
    %600 = vmatprep.subr.mxu0 0.0
    %601 = vmatpush1.msra.mxu0 0.0
    %602 = vmatprep.subr.mxu0 0.0
    %603 = vmatpush1.msra.mxu0 0.0
    %604 = vmatprep.subr.mxu0 0.0
    %605 = vmatpush1.msra.mxu0 0.0
    %606 = vmatprep.subr.mxu0 0.0
    %607 = vmatpush1.msra.mxu0 0.0
    %608 = vmatprep.subr.mxu0 0.0
    %609 = vmatpush1.msra.mxu0 0.0
    %610 = vmatprep.subr.mxu0 0.0
    %611 = vmatpush1.msra.mxu0 0.0
    %612 = vmatprep.subr.mxu0 0.0
    %613 = vmatpush1.msra.mxu0 0.0
    %614 = vmatprep.subr.mxu0 0.0
    %615 = vmatpush1.msra.mxu0 0.0
    %616 = vmatprep.subr.mxu0 0.0
    %617 = vmatpush1.msra.mxu0 0.0
    %618 = vmatprep.subr.mxu0 0.0
    %619 = vmatpush1.msra.mxu0 0.0
    %620 = vmatprep.subr.mxu0 0.0
    %621 = vmatpush1.msra.mxu0 0.0
    %622 = vmatprep.subr.mxu0 0.0
    %623 = vmatpush1.msra.mxu0 0.0
    %624 = vmatprep.subr.mxu0 0.0
    %625 = vmatpush1.msra.mxu0 0.0
    %626 = vmatprep.subr.mxu0 0.0
    %627 = vmatpush1.msra.mxu0 0.0
    %628 = vmatprep.subr.mxu0 0.0
    %629 = vmatpush1.msra.mxu0 0.0
    %630 = vmatprep.subr.mxu0 0.0
    %631 = vmatpush1.msra.mxu0 0.0
    %632 = vmatprep.subr.mxu0 0.0
    %633 = vmatpush1.msra.mxu0 0.0
    %634 = vmatprep.subr.mxu0 0.0
    %635 = vmatpush1.msra.mxu0 0.0
    %636 = vmatprep.subr.mxu0 0.0
    %637 = vmatpush1.msra.mxu0 0.0
    %638 = vmatprep.subr.mxu0 0.0
    %639 = vmatpush1.msra.mxu0 0.0
    %640 = vmatprep.subr.mxu0 0.0
    %641 = vmatpush1.msra.mxu0 0.0
    %642 = vmatprep.subr.mxu0 0.0
    %643 = vmatpush1.msra.mxu0 0.0
    %644 = vmatprep.subr.mxu0 0.0
    %645 = vmatpush1.msra.mxu0 0.0
    %646 = vmatprep.subr.mxu0 0.0
    %647 = vmatpush1.msra.mxu0 0.0
    %648 = vmatprep.subr.mxu0 0.0
    %649 = vmatpush1.msra.mxu0 0.0
    %650 = vmatprep.mubr.f32.mxu0 0.0
    %651 = vmatmul.mubr.f32.gmra.mrb[0].mxu0 %v578
    %v652 = vpop.f32.mrb[0].mxu0
    %v653 = vadd.f32 0.0, %v652
    %v654 = vpop.f32.mrb[0].mxu0
    %v655 = vadd.f32 0.0, %v654
    %656 = vdwg.mxu0
    %657 = vmatprep.subr.mxu0 0.0
    %658 = vmatpush1.msra.mxu0 %v584
    %659 = vmatprep.subr.mxu0 0.0
    %660 = vmatpush1.msra.mxu0 0.0
    %661 = vmatprep.subr.mxu0 0.0
    %662 = vmatpush1.msra.mxu0 0.0
    %663 = vmatprep.subr.mxu0 0.0
    %664 = vmatpush1.msra.mxu0 0.0
    %665 = vmatprep.subr.mxu0 0.0
    %666 = vmatpush1.msra.mxu0 0.0
    %667 = vmatprep.subr.mxu0 0.0
    %668 = vmatpush1.msra.mxu0 0.0
    %669 = vmatprep.subr.mxu0 0.0
    %670 = vmatpush1.msra.mxu0 0.0
    %671 = vmatprep.subr.mxu0 0.0
    %672 = vmatpush1.msra.mxu0 0.0
    %673 = vmatprep.subr.mxu0 0.0
    %674 = vmatpush1.msra.mxu0 0.0
    %675 = vmatprep.subr.mxu0 0.0
    %676 = vmatpush1.msra.mxu0 0.0
    %677 = vmatprep.subr.mxu0 0.0
    %678 = vmatpush1.msra.mxu0 0.0
    %679 = vmatprep.subr.mxu0 0.0
    %680 = vmatpush1.msra.mxu0 0.0
    %681 = vmatprep.subr.mxu0 0.0
    %682 = vmatpush1.msra.mxu0 0.0
    %683 = vmatprep.subr.mxu0 0.0
    %684 = vmatpush1.msra.mxu0 0.0
    %685 = vmatprep.subr.mxu0 0.0
    %686 = vmatpush1.msra.mxu0 0.0
    %687 = vmatprep.subr.mxu0 0.0
    %688 = vmatpush1.msra.mxu0 0.0
    %689 = vmatprep.subr.mxu0 0.0
    %690 = vmatpush1.msra.mxu0 0.0
    %691 = vmatprep.subr.mxu0 0.0
    %692 = vmatpush1.msra.mxu0 0.0
    %693 = vmatprep.subr.mxu0 0.0
    %694 = vmatpush1.msra.mxu0 0.0
    %695 = vmatprep.subr.mxu0 0.0
    %696 = vmatpush1.msra.mxu0 0.0
    %697 = vmatprep.subr.mxu0 0.0
    %698 = vmatpush1.msra.mxu0 0.0
    %699 = vmatprep.subr.mxu0 0.0
    %700 = vmatpush1.msra.mxu0 0.0
    %701 = vmatprep.subr.mxu0 0.0
    %702 = vmatpush1.msra.mxu0 0.0
    %703 = vmatprep.subr.mxu0 0.0
    %704 = vmatpush1.msra.mxu0 0.0
    %705 = vmatprep.subr.mxu0 0.0
    %706 = vmatpush1.msra.mxu0 0.0
    %707 = vmatprep.subr.mxu0 0.0
    %708 = vmatpush1.msra.mxu0 0.0
    %709 = vmatprep.subr.mxu0 0.0
    %710 = vmatpush1.msra.mxu0 0.0
    %711 = vmatprep.subr.mxu0 0.0
    %712 = vmatpush1.msra.mxu0 0.0
    %713 = vmatprep.subr.mxu0 0.0
    %714 = vmatpush1.msra.mxu0 0.0
    %715 = vmatprep.subr.mxu0 0.0
    %716 = vmatpush1.msra.mxu0 0.0
    %717 = vmatprep.subr.mxu0 0.0
    %718 = vmatpush1.msra.mxu0 0.0
    %719 = vmatprep.subr.mxu0 0.0
    %720 = vmatpush1.msra.mxu0 0.0
    %721 = vmatprep.mubr.f32.mxu0 0.0
    %722 = vmatmul.mubr.f32.gmra.mrb[0].mxu0 %v578
    %v723 = vpop.f32.mrb[0].mxu0
    %v724 = vadd.f32 0.0, %v723
    %v725 = vpop.f32.mrb[0].mxu0
    %726 = vdwg.mxu0
    %v727 = vadd.f32 %v558, %v653
    %v728 = vadd.f32 %v559, %v655
    %v729 = vadd.f32 %v560, %v724
    %s730 = scalar_lea.vmem %s1, 32
    %v731 = vld [vmem:[%s730] sm:$0xff]
    %v732 = vld [vmem:[%s0] sm:$0xff]
    %v733 = vld [vmem:[%s0 + $0x8] sm:$0xf]
    %v736 = vcombine.high %v732, %v732
    %737 = vrot.lane.b32.xlu0 %v732, 109
    %v738 = vpop.permute.xlu0 %737
    %739 = vrot.lane.b32.xlu0 %v736, 109
    %v740 = vpop.permute.xlu0 %739
    %741 = vrot.lane.b32.xlu0 %v733, 109
    %v742 = vpop.permute.xlu0 %741
    %vm743 = vcmask 891904
    %v744 = vsel %vm743, %v738, %v740
    %v745 = vsel %vm743, %v740, %v742
    %v747 = vsel %vm90, %v731, 0
    %v749 = vsel %vm94, %v744, 0
    %v751 = vsel %vm94, %v745, 0
    %v753 = vsel %vm94, %v742, 0
    %755 = vmatprep.subr.mxu0 %v751
    %756 = vmatpush1.msra.mxu0 %v749
    %757 = vmatprep.subr.mxu0 0.0
    %758 = vmatpush1.msra.mxu0 0.0
    %759 = vmatprep.subr.mxu0 0.0
    %760 = vmatpush1.msra.mxu0 0.0
    %761 = vmatprep.subr.mxu0 0.0
    %762 = vmatpush1.msra.mxu0 0.0
    %763 = vmatprep.subr.mxu0 0.0
    %764 = vmatpush1.msra.mxu0 0.0
    %765 = vmatprep.subr.mxu0 0.0
    %766 = vmatpush1.msra.mxu0 0.0
    %767 = vmatprep.subr.mxu0 0.0
    %768 = vmatpush1.msra.mxu0 0.0
    %769 = vmatprep.subr.mxu0 0.0
    %770 = vmatpush1.msra.mxu0 0.0
    %771 = vmatprep.subr.mxu0 0.0
    %772 = vmatpush1.msra.mxu0 0.0
    %773 = vmatprep.subr.mxu0 0.0
    %774 = vmatpush1.msra.mxu0 0.0
    %775 = vmatprep.subr.mxu0 0.0
    %776 = vmatpush1.msra.mxu0 0.0
    %777 = vmatprep.subr.mxu0 0.0
    %778 = vmatpush1.msra.mxu0 0.0
    %779 = vmatprep.subr.mxu0 0.0
    %780 = vmatpush1.msra.mxu0 0.0
    %781 = vmatprep.subr.mxu0 0.0
    %782 = vmatpush1.msra.mxu0 0.0
    %783 = vmatprep.subr.mxu0 0.0
    %784 = vmatpush1.msra.mxu0 0.0
    %785 = vmatprep.subr.mxu0 0.0
    %786 = vmatpush1.msra.mxu0 0.0
    %787 = vmatprep.subr.mxu0 0.0
    %788 = vmatpush1.msra.mxu0 0.0
    %789 = vmatprep.subr.mxu0 0.0
    %790 = vmatpush1.msra.mxu0 0.0
    %791 = vmatprep.subr.mxu0 0.0
    %792 = vmatpush1.msra.mxu0 0.0
    %793 = vmatprep.subr.mxu0 0.0
    %794 = vmatpush1.msra.mxu0 0.0
    %795 = vmatprep.subr.mxu0 0.0
    %796 = vmatpush1.msra.mxu0 0.0
    %797 = vmatprep.subr.mxu0 0.0
    %798 = vmatpush1.msra.mxu0 0.0
    %799 = vmatprep.subr.mxu0 0.0
    %800 = vmatpush1.msra.mxu0 0.0
    %801 = vmatprep.subr.mxu0 0.0
    %802 = vmatpush1.msra.mxu0 0.0
    %803 = vmatprep.subr.mxu0 0.0
    %804 = vmatpush1.msra.mxu0 0.0
    %805 = vmatprep.subr.mxu0 0.0
    %806 = vmatpush1.msra.mxu0 0.0
    %807 = vmatprep.subr.mxu0 0.0
    %808 = vmatpush1.msra.mxu0 0.0
    %809 = vmatprep.subr.mxu0 0.0
    %810 = vmatpush1.msra.mxu0 0.0
    %811 = vmatprep.subr.mxu0 0.0
    %812 = vmatpush1.msra.mxu0 0.0
    %813 = vmatprep.subr.mxu0 0.0
    %814 = vmatpush1.msra.mxu0 0.0
    %815 = vmatprep.subr.mxu0 0.0
    %816 = vmatpush1.msra.mxu0 0.0
    %817 = vmatprep.subr.mxu0 0.0
    %818 = vmatpush1.msra.mxu0 0.0
    %819 = vmatprep.mubr.f32.mxu0 0.0
    %820 = vmatmul.mubr.f32.gmra.mrb[0].mxu0 %v747
    %v821 = vpop.f32.mrb[0].mxu0
    %v822 = vadd.f32 0.0, %v821
    %v823 = vpop.f32.mrb[0].mxu0
    %v824 = vadd.f32 0.0, %v823
    %825 = vdwg.mxu0
    %826 = vmatprep.subr.mxu0 0.0
    %827 = vmatpush1.msra.mxu0 %v753
    %828 = vmatprep.subr.mxu0 0.0
    %829 = vmatpush1.msra.mxu0 0.0
    %830 = vmatprep.subr.mxu0 0.0
    %831 = vmatpush1.msra.mxu0 0.0
    %832 = vmatprep.subr.mxu0 0.0
    %833 = vmatpush1.msra.mxu0 0.0
    %834 = vmatprep.subr.mxu0 0.0
    %835 = vmatpush1.msra.mxu0 0.0
    %836 = vmatprep.subr.mxu0 0.0
    %837 = vmatpush1.msra.mxu0 0.0
    %838 = vmatprep.subr.mxu0 0.0
    %839 = vmatpush1.msra.mxu0 0.0
    %840 = vmatprep.subr.mxu0 0.0
    %841 = vmatpush1.msra.mxu0 0.0
    %842 = vmatprep.subr.mxu0 0.0
    %843 = vmatpush1.msra.mxu0 0.0
    %844 = vmatprep.subr.mxu0 0.0
    %845 = vmatpush1.msra.mxu0 0.0
    %846 = vmatprep.subr.mxu0 0.0
    %847 = vmatpush1.msra.mxu0 0.0
    %848 = vmatprep.subr.mxu0 0.0
    %849 = vmatpush1.msra.mxu0 0.0
    %850 = vmatprep.subr.mxu0 0.0
    %851 = vmatpush1.msra.mxu0 0.0
    %852 = vmatprep.subr.mxu0 0.0
    %853 = vmatpush1.msra.mxu0 0.0
    %854 = vmatprep.subr.mxu0 0.0
    %855 = vmatpush1.msra.mxu0 0.0
    %856 = vmatprep.subr.mxu0 0.0
    %857 = vmatpush1.msra.mxu0 0.0
    %858 = vmatprep.subr.mxu0 0.0
    %859 = vmatpush1.msra.mxu0 0.0
    %860 = vmatprep.subr.mxu0 0.0
    %861 = vmatpush1.msra.mxu0 0.0
    %862 = vmatprep.subr.mxu0 0.0
    %863 = vmatpush1.msra.mxu0 0.0
    %864 = vmatprep.subr.mxu0 0.0
    %865 = vmatpush1.msra.mxu0 0.0
    %866 = vmatprep.subr.mxu0 0.0
    %867 = vmatpush1.msra.mxu0 0.0
    %868 = vmatprep.subr.mxu0 0.0
    %869 = vmatpush1.msra.mxu0 0.0
    %870 = vmatprep.subr.mxu0 0.0
    %871 = vmatpush1.msra.mxu0 0.0
    %872 = vmatprep.subr.mxu0 0.0
    %873 = vmatpush1.msra.mxu0 0.0
    %874 = vmatprep.subr.mxu0 0.0
    %875 = vmatpush1.msra.mxu0 0.0
    %876 = vmatprep.subr.mxu0 0.0
    %877 = vmatpush1.msra.mxu0 0.0
    %878 = vmatprep.subr.mxu0 0.0
    %879 = vmatpush1.msra.mxu0 0.0
    %880 = vmatprep.subr.mxu0 0.0
    %881 = vmatpush1.msra.mxu0 0.0
    %882 = vmatprep.subr.mxu0 0.0
    %883 = vmatpush1.msra.mxu0 0.0
    %884 = vmatprep.subr.mxu0 0.0
    %885 = vmatpush1.msra.mxu0 0.0
    %886 = vmatprep.subr.mxu0 0.0
    %887 = vmatpush1.msra.mxu0 0.0
    %888 = vmatprep.subr.mxu0 0.0
    %889 = vmatpush1.msra.mxu0 0.0
    %890 = vmatprep.mubr.f32.mxu0 0.0
    %891 = vmatmul.mubr.f32.gmra.mrb[0].mxu0 %v747
    %v892 = vpop.f32.mrb[0].mxu0
    %v893 = vadd.f32 0.0, %v892
    %v894 = vpop.f32.mrb[0].mxu0
    %895 = vdwg.mxu0
    %v896 = vadd.f32 %v727, %v822
    %v897 = vadd.f32 %v728, %v824
    %v898 = vadd.f32 %v729, %v893
    %s899 = scalar_lea.vmem %s1, 40
    %v900 = vld [vmem:[%s899] sm:$0xff]
    %v901 = vld [vmem:[%s0] sm:$0xff]
    %v902 = vld [vmem:[%s0 + $0x8] sm:$0xf]
    %v905 = vcombine.high %v901, %v901
    %906 = vrot.lane.b32.xlu0 %v901, 108
    %v907 = vpop.permute.xlu0 %906
    %908 = vrot.lane.b32.xlu0 %v905, 108
    %v909 = vpop.permute.xlu0 %908
    %910 = vrot.lane.b32.xlu0 %v902, 108
    %v911 = vpop.permute.xlu0 %910
    %vm912 = vcmask 883712
    %v913 = vsel %vm912, %v907, %v909
    %v914 = vsel %vm912, %v909, %v911
    %v916 = vsel %vm90, %v900, 0
    %v918 = vsel %vm94, %v913, 0
    %v920 = vsel %vm94, %v914, 0
    %v922 = vsel %vm94, %v911, 0
    %924 = vmatprep.subr.mxu0 %v920
    %925 = vmatpush1.msra.mxu0 %v918
    %926 = vmatprep.subr.mxu0 0.0
    %927 = vmatpush1.msra.mxu0 0.0
    %928 = vmatprep.subr.mxu0 0.0
    %929 = vmatpush1.msra.mxu0 0.0
    %930 = vmatprep.subr.mxu0 0.0
    %931 = vmatpush1.msra.mxu0 0.0
    %932 = vmatprep.subr.mxu0 0.0
    %933 = vmatpush1.msra.mxu0 0.0
    %934 = vmatprep.subr.mxu0 0.0
    %935 = vmatpush1.msra.mxu0 0.0
    %936 = vmatprep.subr.mxu0 0.0
    %937 = vmatpush1.msra.mxu0 0.0
    %938 = vmatprep.subr.mxu0 0.0
    %939 = vmatpush1.msra.mxu0 0.0
    %940 = vmatprep.subr.mxu0 0.0
    %941 = vmatpush1.msra.mxu0 0.0
    %942 = vmatprep.subr.mxu0 0.0
    %943 = vmatpush1.msra.mxu0 0.0
    %944 = vmatprep.subr.mxu0 0.0
    %945 = vmatpush1.msra.mxu0 0.0
    %946 = vmatprep.subr.mxu0 0.0
    %947 = vmatpush1.msra.mxu0 0.0
    %948 = vmatprep.subr.mxu0 0.0
    %949 = vmatpush1.msra.mxu0 0.0
    %950 = vmatprep.subr.mxu0 0.0
    %951 = vmatpush1.msra.mxu0 0.0
    %952 = vmatprep.subr.mxu0 0.0
    %953 = vmatpush1.msra.mxu0 0.0
    %954 = vmatprep.subr.mxu0 0.0
    %955 = vmatpush1.msra.mxu0 0.0
    %956 = vmatprep.subr.mxu0 0.0
    %957 = vmatpush1.msra.mxu0 0.0
    %958 = vmatprep.subr.mxu0 0.0
    %959 = vmatpush1.msra.mxu0 0.0
    %960 = vmatprep.subr.mxu0 0.0
    %961 = vmatpush1.msra.mxu0 0.0
    %962 = vmatprep.subr.mxu0 0.0
    %963 = vmatpush1.msra.mxu0 0.0
    %964 = vmatprep.subr.mxu0 0.0
    %965 = vmatpush1.msra.mxu0 0.0
    %966 = vmatprep.subr.mxu0 0.0
    %967 = vmatpush1.msra.mxu0 0.0
    %968 = vmatprep.subr.mxu0 0.0
    %969 = vmatpush1.msra.mxu0 0.0
    %970 = vmatprep.subr.mxu0 0.0
    %971 = vmatpush1.msra.mxu0 0.0
    %972 = vmatprep.subr.mxu0 0.0
    %973 = vmatpush1.msra.mxu0 0.0
    %974 = vmatprep.subr.mxu0 0.0
    %975 = vmatpush1.msra.mxu0 0.0
    %976 = vmatprep.subr.mxu0 0.0
    %977 = vmatpush1.msra.mxu0 0.0
    %978 = vmatprep.subr.mxu0 0.0
    %979 = vmatpush1.msra.mxu0 0.0
    %980 = vmatprep.subr.mxu0 0.0
    %981 = vmatpush1.msra.mxu0 0.0
    %982 = vmatprep.subr.mxu0 0.0
    %983 = vmatpush1.msra.mxu0 0.0
    %984 = vmatprep.subr.mxu0 0.0
    %985 = vmatpush1.msra.mxu0 0.0
    %986 = vmatprep.subr.mxu0 0.0
    %987 = vmatpush1.msra.mxu0 0.0
    %988 = vmatprep.mubr.f32.mxu0 0.0
    %989 = vmatmul.mubr.f32.gmra.mrb[0].mxu0 %v916
    %v990 = vpop.f32.mrb[0].mxu0
    %v991 = vadd.f32 0.0, %v990
    %v992 = vpop.f32.mrb[0].mxu0
    %v993 = vadd.f32 0.0, %v992
    %994 = vdwg.mxu0
    %995 = vmatprep.subr.mxu0 0.0
    %996 = vmatpush1.msra.mxu0 %v922
    %997 = vmatprep.subr.mxu0 0.0
    %998 = vmatpush1.msra.mxu0 0.0
    %999 = vmatprep.subr.mxu0 0.0
    %1000 = vmatpush1.msra.mxu0 0.0
    %1001 = vmatprep.subr.mxu0 0.0
    %1002 = vmatpush1.msra.mxu0 0.0
    %1003 = vmatprep.subr.mxu0 0.0
    %1004 = vmatpush1.msra.mxu0 0.0
    %1005 = vmatprep.subr.mxu0 0.0
    %1006 = vmatpush1.msra.mxu0 0.0
    %1007 = vmatprep.subr.mxu0 0.0
    %1008 = vmatpush1.msra.mxu0 0.0
    %1009 = vmatprep.subr.mxu0 0.0
    %1010 = vmatpush1.msra.mxu0 0.0
    %1011 = vmatprep.subr.mxu0 0.0
    %1012 = vmatpush1.msra.mxu0 0.0
    %1013 = vmatprep.subr.mxu0 0.0
    %1014 = vmatpush1.msra.mxu0 0.0
    %1015 = vmatprep.subr.mxu0 0.0
    %1016 = vmatpush1.msra.mxu0 0.0
    %1017 = vmatprep.subr.mxu0 0.0
    %1018 = vmatpush1.msra.mxu0 0.0
    %1019 = vmatprep.subr.mxu0 0.0
    %1020 = vmatpush1.msra.mxu0 0.0
    %1021 = vmatprep.subr.mxu0 0.0
    %1022 = vmatpush1.msra.mxu0 0.0
    %1023 = vmatprep.subr.mxu0 0.0
    %1024 = vmatpush1.msra.mxu0 0.0
    %1025 = vmatprep.subr.mxu0 0.0
    %1026 = vmatpush1.msra.mxu0 0.0
    %1027 = vmatprep.subr.mxu0 0.0
    %1028 = vmatpush1.msra.mxu0 0.0
    %1029 = vmatprep.subr.mxu0 0.0
    %1030 = vmatpush1.msra.mxu0 0.0
    %1031 = vmatprep.subr.mxu0 0.0
    %1032 = vmatpush1.msra.mxu0 0.0
    %1033 = vmatprep.subr.mxu0 0.0
    %1034 = vmatpush1.msra.mxu0 0.0
    %1035 = vmatprep.subr.mxu0 0.0
    %1036 = vmatpush1.msra.mxu0 0.0
    %1037 = vmatprep.subr.mxu0 0.0
    %1038 = vmatpush1.msra.mxu0 0.0
    %1039 = vmatprep.subr.mxu0 0.0
    %1040 = vmatpush1.msra.mxu0 0.0
    %1041 = vmatprep.subr.mxu0 0.0
    %1042 = vmatpush1.msra.mxu0 0.0
    %1043 = vmatprep.subr.mxu0 0.0
    %1044 = vmatpush1.msra.mxu0 0.0
    %1045 = vmatprep.subr.mxu0 0.0
    %1046 = vmatpush1.msra.mxu0 0.0
    %1047 = vmatprep.subr.mxu0 0.0
    %1048 = vmatpush1.msra.mxu0 0.0
    %1049 = vmatprep.subr.mxu0 0.0
    %1050 = vmatpush1.msra.mxu0 0.0
    %1051 = vmatprep.subr.mxu0 0.0
    %1052 = vmatpush1.msra.mxu0 0.0
    %1053 = vmatprep.subr.mxu0 0.0
    %1054 = vmatpush1.msra.mxu0 0.0
    %1055 = vmatprep.subr.mxu0 0.0
    %1056 = vmatpush1.msra.mxu0 0.0
    %1057 = vmatprep.subr.mxu0 0.0
    %1058 = vmatpush1.msra.mxu0 0.0
    %1059 = vmatprep.mubr.f32.mxu0 0.0
    %1060 = vmatmul.mubr.f32.gmra.mrb[0].mxu0 %v916
    %v1061 = vpop.f32.mrb[0].mxu0
    %v1062 = vadd.f32 0.0, %v1061
    %v1063 = vpop.f32.mrb[0].mxu0
    %1064 = vdwg.mxu0
    %v1065 = vadd.f32 %v896, %v991
    %v1066 = vadd.f32 %v897, %v993
    %v1067 = vadd.f32 %v898, %v1062
    %s1068 = scalar_lea.vmem %s1, 48
    %v1069 = vld [vmem:[%s1068] sm:$0xff]
    %v1070 = vld [vmem:[%s0] sm:$0xff]
    %v1071 = vld [vmem:[%s0 + $0x8] sm:$0xf]
    %v1074 = vcombine.high %v1070, %v1070
    %1075 = vrot.lane.b32.xlu0 %v1070, 92
    %v1076 = vpop.permute.xlu0 %1075
    %1077 = vrot.lane.b32.xlu0 %v1074, 92
    %v1078 = vpop.permute.xlu0 %1077
    %1079 = vrot.lane.b32.xlu0 %v1071, 92
    %v1080 = vpop.permute.xlu0 %1079
    %vm1081 = vcmask 752640
    %v1082 = vsel %vm1081, %v1076, %v1078
    %v1083 = vsel %vm1081, %v1078, %v1080
    %v1085 = vsel %vm90, %v1069, 0
    %v1087 = vsel %vm94, %v1082, 0
    %v1089 = vsel %vm94, %v1083, 0
    %v1091 = vsel %vm94, %v1080, 0
    %1093 = vmatprep.subr.mxu0 %v1089
    %1094 = vmatpush1.msra.mxu0 %v1087
    %1095 = vmatprep.subr.mxu0 0.0
    %1096 = vmatpush1.msra.mxu0 0.0
    %1097 = vmatprep.subr.mxu0 0.0
    %1098 = vmatpush1.msra.mxu0 0.0
    %1099 = vmatprep.subr.mxu0 0.0
    %1100 = vmatpush1.msra.mxu0 0.0
    %1101 = vmatprep.subr.mxu0 0.0
    %1102 = vmatpush1.msra.mxu0 0.0
    %1103 = vmatprep.subr.mxu0 0.0
    %1104 = vmatpush1.msra.mxu0 0.0
    %1105 = vmatprep.subr.mxu0 0.0
    %1106 = vmatpush1.msra.mxu0 0.0
    %1107 = vmatprep.subr.mxu0 0.0
    %1108 = vmatpush1.msra.mxu0 0.0
    %1109 = vmatprep.subr.mxu0 0.0
    %1110 = vmatpush1.msra.mxu0 0.0
    %1111 = vmatprep.subr.mxu0 0.0
    %1112 = vmatpush1.msra.mxu0 0.0
    %1113 = vmatprep.subr.mxu0 0.0
    %1114 = vmatpush1.msra.mxu0 0.0
    %1115 = vmatprep.subr.mxu0 0.0
    %1116 = vmatpush1.msra.mxu0 0.0
    %1117 = vmatprep.subr.mxu0 0.0
    %1118 = vmatpush1.msra.mxu0 0.0
    %1119 = vmatprep.subr.mxu0 0.0
    %1120 = vmatpush1.msra.mxu0 0.0
    %1121 = vmatprep.subr.mxu0 0.0
    %1122 = vmatpush1.msra.mxu0 0.0
    %1123 = vmatprep.subr.mxu0 0.0
    %1124 = vmatpush1.msra.mxu0 0.0
    %1125 = vmatprep.subr.mxu0 0.0
    %1126 = vmatpush1.msra.mxu0 0.0
    %1127 = vmatprep.subr.mxu0 0.0
    %1128 = vmatpush1.msra.mxu0 0.0
    %1129 = vmatprep.subr.mxu0 0.0
    %1130 = vmatpush1.msra.mxu0 0.0
    %1131 = vmatprep.subr.mxu0 0.0
    %1132 = vmatpush1.msra.mxu0 0.0
    %1133 = vmatprep.subr.mxu0 0.0
    %1134 = vmatpush1.msra.mxu0 0.0
    %1135 = vmatprep.subr.mxu0 0.0
    %1136 = vmatpush1.msra.mxu0 0.0
    %1137 = vmatprep.subr.mxu0 0.0
    %1138 = vmatpush1.msra.mxu0 0.0
    %1139 = vmatprep.subr.mxu0 0.0
    %1140 = vmatpush1.msra.mxu0 0.0
    %1141 = vmatprep.subr.mxu0 0.0
    %1142 = vmatpush1.msra.mxu0 0.0
    %1143 = vmatprep.subr.mxu0 0.0
    %1144 = vmatpush1.msra.mxu0 0.0
    %1145 = vmatprep.subr.mxu0 0.0
    %1146 = vmatpush1.msra.mxu0 0.0
    %1147 = vmatprep.subr.mxu0 0.0
    %1148 = vmatpush1.msra.mxu0 0.0
    %1149 = vmatprep.subr.mxu0 0.0
    %1150 = vmatpush1.msra.mxu0 0.0
    %1151 = vmatprep.subr.mxu0 0.0
    %1152 = vmatpush1.msra.mxu0 0.0
    %1153 = vmatprep.subr.mxu0 0.0
    %1154 = vmatpush1.msra.mxu0 0.0
    %1155 = vmatprep.subr.mxu0 0.0
    %1156 = vmatpush1.msra.mxu0 0.0
    %1157 = vmatprep.mubr.f32.mxu0 0.0
    %1158 = vmatmul.mubr.f32.gmra.mrb[0].mxu0 %v1085
    %v1159 = vpop.f32.mrb[0].mxu0
    %v1160 = vadd.f32 0.0, %v1159
    %v1161 = vpop.f32.mrb[0].mxu0
    %v1162 = vadd.f32 0.0, %v1161
    %1163 = vdwg.mxu0
    %1164 = vmatprep.subr.mxu0 0.0
    %1165 = vmatpush1.msra.mxu0 %v1091
    %1166 = vmatprep.subr.mxu0 0.0
    %1167 = vmatpush1.msra.mxu0 0.0
    %1168 = vmatprep.subr.mxu0 0.0
    %1169 = vmatpush1.msra.mxu0 0.0
    %1170 = vmatprep.subr.mxu0 0.0
    %1171 = vmatpush1.msra.mxu0 0.0
    %1172 = vmatprep.subr.mxu0 0.0
    %1173 = vmatpush1.msra.mxu0 0.0
    %1174 = vmatprep.subr.mxu0 0.0
    %1175 = vmatpush1.msra.mxu0 0.0
    %1176 = vmatprep.subr.mxu0 0.0
    %1177 = vmatpush1.msra.mxu0 0.0
    %1178 = vmatprep.subr.mxu0 0.0
    %1179 = vmatpush1.msra.mxu0 0.0
    %1180 = vmatprep.subr.mxu0 0.0
    %1181 = vmatpush1.msra.mxu0 0.0
    %1182 = vmatprep.subr.mxu0 0.0
    %1183 = vmatpush1.msra.mxu0 0.0
    %1184 = vmatprep.subr.mxu0 0.0
    %1185 = vmatpush1.msra.mxu0 0.0
    %1186 = vmatprep.subr.mxu0 0.0
    %1187 = vmatpush1.msra.mxu0 0.0
    %1188 = vmatprep.subr.mxu0 0.0
    %1189 = vmatpush1.msra.mxu0 0.0
    %1190 = vmatprep.subr.mxu0 0.0
    %1191 = vmatpush1.msra.mxu0 0.0
    %1192 = vmatprep.subr.mxu0 0.0
    %1193 = vmatpush1.msra.mxu0 0.0
    %1194 = vmatprep.subr.mxu0 0.0
    %1195 = vmatpush1.msra.mxu0 0.0
    %1196 = vmatprep.subr.mxu0 0.0
    %1197 = vmatpush1.msra.mxu0 0.0
    %1198 = vmatprep.subr.mxu0 0.0
    %1199 = vmatpush1.msra.mxu0 0.0
    %1200 = vmatprep.subr.mxu0 0.0
    %1201 = vmatpush1.msra.mxu0 0.0
    %1202 = vmatprep.subr.mxu0 0.0
    %1203 = vmatpush1.msra.mxu0 0.0
    %1204 = vmatprep.subr.mxu0 0.0
    %1205 = vmatpush1.msra.mxu0 0.0
    %1206 = vmatprep.subr.mxu0 0.0
    %1207 = vmatpush1.msra.mxu0 0.0
    %1208 = vmatprep.subr.mxu0 0.0
    %1209 = vmatpush1.msra.mxu0 0.0
    %1210 = vmatprep.subr.mxu0 0.0
    %1211 = vmatpush1.msra.mxu0 0.0
    %1212 = vmatprep.subr.mxu0 0.0
    %1213 = vmatpush1.msra.mxu0 0.0
    %1214 = vmatprep.subr.mxu0 0.0
    %1215 = vmatpush1.msra.mxu0 0.0
    %1216 = vmatprep.subr.mxu0 0.0
    %1217 = vmatpush1.msra.mxu0 0.0
    %1218 = vmatprep.subr.mxu0 0.0
    %1219 = vmatpush1.msra.mxu0 0.0
    %1220 = vmatprep.subr.mxu0 0.0
    %1221 = vmatpush1.msra.mxu0 0.0
    %1222 = vmatprep.subr.mxu0 0.0
    %1223 = vmatpush1.msra.mxu0 0.0
    %1224 = vmatprep.subr.mxu0 0.0
    %1225 = vmatpush1.msra.mxu0 0.0
    %1226 = vmatprep.subr.mxu0 0.0
    %1227 = vmatpush1.msra.mxu0 0.0
    %1228 = vmatprep.mubr.f32.mxu0 0.0
    %1229 = vmatmul.mubr.f32.gmra.mrb[0].mxu0 %v1085
    %v1230 = vpop.f32.mrb[0].mxu0
    %v1231 = vadd.f32 0.0, %v1230
    %v1232 = vpop.f32.mrb[0].mxu0
    %1233 = vdwg.mxu0
    %v1234 = vadd.f32 %v1065, %v1160
    %v1235 = vadd.f32 %v1066, %v1162
    %v1236 = vadd.f32 %v1067, %v1231
    %s1237 = scalar_lea.vmem %s1, 56
    %v1238 = vld [vmem:[%s1237] sm:$0xff]
    %v1239 = vld [vmem:[%s0] sm:$0xff]
    %v1240 = vld [vmem:[%s0 + $0x8] sm:$0xf]
    %v1243 = vcombine.high %v1239, %v1239
    %1244 = vrot.lane.b32.xlu0 %v1239, 91
    %v1245 = vpop.permute.xlu0 %1244
    %1246 = vrot.lane.b32.xlu0 %v1243, 91
    %v1247 = vpop.permute.xlu0 %1246
    %1248 = vrot.lane.b32.xlu0 %v1240, 91
    %v1249 = vpop.permute.xlu0 %1248
    %vm1250 = vcmask 744448
    %v1251 = vsel %vm1250, %v1245, %v1247
    %v1252 = vsel %vm1250, %v1247, %v1249
    %v1254 = vsel %vm90, %v1238, 0
    %v1256 = vsel %vm94, %v1251, 0
    %v1258 = vsel %vm94, %v1252, 0
    %v1260 = vsel %vm94, %v1249, 0
    %1262 = vmatprep.subr.mxu0 %v1258
    %1263 = vmatpush1.msra.mxu0 %v1256
    %1264 = vmatprep.subr.mxu0 0.0
    %1265 = vmatpush1.msra.mxu0 0.0
    %1266 = vmatprep.subr.mxu0 0.0
    %1267 = vmatpush1.msra.mxu0 0.0
    %1268 = vmatprep.subr.mxu0 0.0
    %1269 = vmatpush1.msra.mxu0 0.0
    %1270 = vmatprep.subr.mxu0 0.0
    %1271 = vmatpush1.msra.mxu0 0.0
    %1272 = vmatprep.subr.mxu0 0.0
    %1273 = vmatpush1.msra.mxu0 0.0
    %1274 = vmatprep.subr.mxu0 0.0
    %1275 = vmatpush1.msra.mxu0 0.0
    %1276 = vmatprep.subr.mxu0 0.0
    %1277 = vmatpush1.msra.mxu0 0.0
    %1278 = vmatprep.subr.mxu0 0.0
    %1279 = vmatpush1.msra.mxu0 0.0
    %1280 = vmatprep.subr.mxu0 0.0
    %1281 = vmatpush1.msra.mxu0 0.0
    %1282 = vmatprep.subr.mxu0 0.0
    %1283 = vmatpush1.msra.mxu0 0.0
    %1284 = vmatprep.subr.mxu0 0.0
    %1285 = vmatpush1.msra.mxu0 0.0
    %1286 = vmatprep.subr.mxu0 0.0
    %1287 = vmatpush1.msra.mxu0 0.0
    %1288 = vmatprep.subr.mxu0 0.0
    %1289 = vmatpush1.msra.mxu0 0.0
    %1290 = vmatprep.subr.mxu0 0.0
    %1291 = vmatpush1.msra.mxu0 0.0
    %1292 = vmatprep.subr.mxu0 0.0
    %1293 = vmatpush1.msra.mxu0 0.0
    %1294 = vmatprep.subr.mxu0 0.0
    %1295 = vmatpush1.msra.mxu0 0.0
    %1296 = vmatprep.subr.mxu0 0.0
    %1297 = vmatpush1.msra.mxu0 0.0
    %1298 = vmatprep.subr.mxu0 0.0
    %1299 = vmatpush1.msra.mxu0 0.0
    %1300 = vmatprep.subr.mxu0 0.0
    %1301 = vmatpush1.msra.mxu0 0.0
    %1302 = vmatprep.subr.mxu0 0.0
    %1303 = vmatpush1.msra.mxu0 0.0
    %1304 = vmatprep.subr.mxu0 0.0
    %1305 = vmatpush1.msra.mxu0 0.0
    %1306 = vmatprep.subr.mxu0 0.0
    %1307 = vmatpush1.msra.mxu0 0.0
    %1308 = vmatprep.subr.mxu0 0.0
    %1309 = vmatpush1.msra.mxu0 0.0
    %1310 = vmatprep.subr.mxu0 0.0
    %1311 = vmatpush1.msra.mxu0 0.0
    %1312 = vmatprep.subr.mxu0 0.0
    %1313 = vmatpush1.msra.mxu0 0.0
    %1314 = vmatprep.subr.mxu0 0.0
    %1315 = vmatpush1.msra.mxu0 0.0
    %1316 = vmatprep.subr.mxu0 0.0
    %1317 = vmatpush1.msra.mxu0 0.0
    %1318 = vmatprep.subr.mxu0 0.0
    %1319 = vmatpush1.msra.mxu0 0.0
    %1320 = vmatprep.subr.mxu0 0.0
    %1321 = vmatpush1.msra.mxu0 0.0
    %1322 = vmatprep.subr.mxu0 0.0
    %1323 = vmatpush1.msra.mxu0 0.0
    %1324 = vmatprep.subr.mxu0 0.0
    %1325 = vmatpush1.msra.mxu0 0.0
    %1326 = vmatprep.mubr.f32.mxu0 0.0
    %1327 = vmatmul.mubr.f32.gmra.mrb[0].mxu0 %v1254
    %v1328 = vpop.f32.mrb[0].mxu0
    %v1329 = vadd.f32 0.0, %v1328
    %v1330 = vpop.f32.mrb[0].mxu0
    %v1331 = vadd.f32 0.0, %v1330
    %1332 = vdwg.mxu0
    %1333 = vmatprep.subr.mxu0 0.0
    %1334 = vmatpush1.msra.mxu0 %v1260
    %1335 = vmatprep.subr.mxu0 0.0
    %1336 = vmatpush1.msra.mxu0 0.0
    %1337 = vmatprep.subr.mxu0 0.0
    %1338 = vmatpush1.msra.mxu0 0.0
    %1339 = vmatprep.subr.mxu0 0.0
    %1340 = vmatpush1.msra.mxu0 0.0
    %1341 = vmatprep.subr.mxu0 0.0
    %1342 = vmatpush1.msra.mxu0 0.0
    %1343 = vmatprep.subr.mxu0 0.0
    %1344 = vmatpush1.msra.mxu0 0.0
    %1345 = vmatprep.subr.mxu0 0.0
    %1346 = vmatpush1.msra.mxu0 0.0
    %1347 = vmatprep.subr.mxu0 0.0
    %1348 = vmatpush1.msra.mxu0 0.0
    %1349 = vmatprep.subr.mxu0 0.0
    %1350 = vmatpush1.msra.mxu0 0.0
    %1351 = vmatprep.subr.mxu0 0.0
    %1352 = vmatpush1.msra.mxu0 0.0
    %1353 = vmatprep.subr.mxu0 0.0
    %1354 = vmatpush1.msra.mxu0 0.0
    %1355 = vmatprep.subr.mxu0 0.0
    %1356 = vmatpush1.msra.mxu0 0.0
    %1357 = vmatprep.subr.mxu0 0.0
    %1358 = vmatpush1.msra.mxu0 0.0
    %1359 = vmatprep.subr.mxu0 0.0
    %1360 = vmatpush1.msra.mxu0 0.0
    %1361 = vmatprep.subr.mxu0 0.0
    %1362 = vmatpush1.msra.mxu0 0.0
    %1363 = vmatprep.subr.mxu0 0.0
    %1364 = vmatpush1.msra.mxu0 0.0
    %1365 = vmatprep.subr.mxu0 0.0
    %1366 = vmatpush1.msra.mxu0 0.0
    %1367 = vmatprep.subr.mxu0 0.0
    %1368 = vmatpush1.msra.mxu0 0.0
    %1369 = vmatprep.subr.mxu0 0.0
    %1370 = vmatpush1.msra.mxu0 0.0
    %1371 = vmatprep.subr.mxu0 0.0
    %1372 = vmatpush1.msra.mxu0 0.0
    %1373 = vmatprep.subr.mxu0 0.0
    %1374 = vmatpush1.msra.mxu0 0.0
    %1375 = vmatprep.subr.mxu0 0.0
    %1376 = vmatpush1.msra.mxu0 0.0
    %1377 = vmatprep.subr.mxu0 0.0
    %1378 = vmatpush1.msra.mxu0 0.0
    %1379 = vmatprep.subr.mxu0 0.0
    %1380 = vmatpush1.msra.mxu0 0.0
    %1381 = vmatprep.subr.mxu0 0.0
    %1382 = vmatpush1.msra.mxu0 0.0
    %1383 = vmatprep.subr.mxu0 0.0
    %1384 = vmatpush1.msra.mxu0 0.0
    %1385 = vmatprep.subr.mxu0 0.0
    %1386 = vmatpush1.msra.mxu0 0.0
    %1387 = vmatprep.subr.mxu0 0.0
    %1388 = vmatpush1.msra.mxu0 0.0
    %1389 = vmatprep.subr.mxu0 0.0
    %1390 = vmatpush1.msra.mxu0 0.0
    %1391 = vmatprep.subr.mxu0 0.0
    %1392 = vmatpush1.msra.mxu0 0.0
    %1393 = vmatprep.subr.mxu0 0.0
    %1394 = vmatpush1.msra.mxu0 0.0
    %1395 = vmatprep.subr.mxu0 0.0
    %1396 = vmatpush1.msra.mxu0 0.0
    %1397 = vmatprep.mubr.f32.mxu0 0.0
    %1398 = vmatmul.mubr.f32.gmra.mrb[0].mxu0 %v1254
    %v1399 = vpop.f32.mrb[0].mxu0
    %v1400 = vadd.f32 0.0, %v1399
    %v1401 = vpop.f32.mrb[0].mxu0
    %1402 = vdwg.mxu0
    %v1403 = vadd.f32 %v1234, %v1329
    %v1404 = vadd.f32 %v1235, %v1331
    %v1405 = vadd.f32 %v1236, %v1400
    %s1406 = scalar_lea.vmem %s1, 64
    %v1407 = vld [vmem:[%s1406] sm:$0xff]
    %v1408 = vld [vmem:[%s0] sm:$0xff]
    %v1409 = vld [vmem:[%s0 + $0x8] sm:$0xf]
    %v1412 = vcombine.high %v1408, %v1408
    %1413 = vrot.lane.b32.xlu0 %v1408, 90
    %v1414 = vpop.permute.xlu0 %1413
    %1415 = vrot.lane.b32.xlu0 %v1412, 90
    %v1416 = vpop.permute.xlu0 %1415
    %1417 = vrot.lane.b32.xlu0 %v1409, 90
    %v1418 = vpop.permute.xlu0 %1417
    %vm1419 = vcmask 736256
    %v1420 = vsel %vm1419, %v1414, %v1416
    %v1421 = vsel %vm1419, %v1416, %v1418
    %v1423 = vsel %vm90, %v1407, 0
    %v1425 = vsel %vm94, %v1420, 0
    %v1427 = vsel %vm94, %v1421, 0
    %v1429 = vsel %vm94, %v1418, 0
    %1431 = vmatprep.subr.mxu0 %v1427
    %1432 = vmatpush1.msra.mxu0 %v1425
    %1433 = vmatprep.subr.mxu0 0.0
    %1434 = vmatpush1.msra.mxu0 0.0
    %1435 = vmatprep.subr.mxu0 0.0
    %1436 = vmatpush1.msra.mxu0 0.0
    %1437 = vmatprep.subr.mxu0 0.0
    %1438 = vmatpush1.msra.mxu0 0.0
    %1439 = vmatprep.subr.mxu0 0.0
    %1440 = vmatpush1.msra.mxu0 0.0
    %1441 = vmatprep.subr.mxu0 0.0
    %1442 = vmatpush1.msra.mxu0 0.0
    %1443 = vmatprep.subr.mxu0 0.0
    %1444 = vmatpush1.msra.mxu0 0.0
    %1445 = vmatprep.subr.mxu0 0.0
    %1446 = vmatpush1.msra.mxu0 0.0
    %1447 = vmatprep.subr.mxu0 0.0
    %1448 = vmatpush1.msra.mxu0 0.0
    %1449 = vmatprep.subr.mxu0 0.0
    %1450 = vmatpush1.msra.mxu0 0.0
    %1451 = vmatprep.subr.mxu0 0.0
    %1452 = vmatpush1.msra.mxu0 0.0
    %1453 = vmatprep.subr.mxu0 0.0
    %1454 = vmatpush1.msra.mxu0 0.0
    %1455 = vmatprep.subr.mxu0 0.0
    %1456 = vmatpush1.msra.mxu0 0.0
    %1457 = vmatprep.subr.mxu0 0.0
    %1458 = vmatpush1.msra.mxu0 0.0
    %1459 = vmatprep.subr.mxu0 0.0
    %1460 = vmatpush1.msra.mxu0 0.0
    %1461 = vmatprep.subr.mxu0 0.0
    %1462 = vmatpush1.msra.mxu0 0.0
    %1463 = vmatprep.subr.mxu0 0.0
    %1464 = vmatpush1.msra.mxu0 0.0
    %1465 = vmatprep.subr.mxu0 0.0
    %1466 = vmatpush1.msra.mxu0 0.0
    %1467 = vmatprep.subr.mxu0 0.0
    %1468 = vmatpush1.msra.mxu0 0.0
    %1469 = vmatprep.subr.mxu0 0.0
    %1470 = vmatpush1.msra.mxu0 0.0
    %1471 = vmatprep.subr.mxu0 0.0
    %1472 = vmatpush1.msra.mxu0 0.0
    %1473 = vmatprep.subr.mxu0 0.0
    %1474 = vmatpush1.msra.mxu0 0.0
    %1475 = vmatprep.subr.mxu0 0.0
    %1476 = vmatpush1.msra.mxu0 0.0
    %1477 = vmatprep.subr.mxu0 0.0
    %1478 = vmatpush1.msra.mxu0 0.0
    %1479 = vmatprep.subr.mxu0 0.0
    %1480 = vmatpush1.msra.mxu0 0.0
    %1481 = vmatprep.subr.mxu0 0.0
    %1482 = vmatpush1.msra.mxu0 0.0
    %1483 = vmatprep.subr.mxu0 0.0
    %1484 = vmatpush1.msra.mxu0 0.0
    %1485 = vmatprep.subr.mxu0 0.0
    %1486 = vmatpush1.msra.mxu0 0.0
    %1487 = vmatprep.subr.mxu0 0.0
    %1488 = vmatpush1.msra.mxu0 0.0
    %1489 = vmatprep.subr.mxu0 0.0
    %1490 = vmatpush1.msra.mxu0 0.0
    %1491 = vmatprep.subr.mxu0 0.0
    %1492 = vmatpush1.msra.mxu0 0.0
    %1493 = vmatprep.subr.mxu0 0.0
    %1494 = vmatpush1.msra.mxu0 0.0
    %1495 = vmatprep.mubr.f32.mxu0 0.0
    %1496 = vmatmul.mubr.f32.gmra.mrb[0].mxu0 %v1423
    %v1497 = vpop.f32.mrb[0].mxu0
    %v1498 = vadd.f32 0.0, %v1497
    %v1499 = vpop.f32.mrb[0].mxu0
    %v1500 = vadd.f32 0.0, %v1499
    %1501 = vdwg.mxu0
    %1502 = vmatprep.subr.mxu0 0.0
    %1503 = vmatpush1.msra.mxu0 %v1429
    %1504 = vmatprep.subr.mxu0 0.0
    %1505 = vmatpush1.msra.mxu0 0.0
    %1506 = vmatprep.subr.mxu0 0.0
    %1507 = vmatpush1.msra.mxu0 0.0
    %1508 = vmatprep.subr.mxu0 0.0
    %1509 = vmatpush1.msra.mxu0 0.0
    %1510 = vmatprep.subr.mxu0 0.0
    %1511 = vmatpush1.msra.mxu0 0.0
    %1512 = vmatprep.subr.mxu0 0.0
    %1513 = vmatpush1.msra.mxu0 0.0
    %1514 = vmatprep.subr.mxu0 0.0
    %1515 = vmatpush1.msra.mxu0 0.0
    %1516 = vmatprep.subr.mxu0 0.0
    %1517 = vmatpush1.msra.mxu0 0.0
    %1518 = vmatprep.subr.mxu0 0.0
    %1519 = vmatpush1.msra.mxu0 0.0
    %1520 = vmatprep.subr.mxu0 0.0
    %1521 = vmatpush1.msra.mxu0 0.0
    %1522 = vmatprep.subr.mxu0 0.0
    %1523 = vmatpush1.msra.mxu0 0.0
    %1524 = vmatprep.subr.mxu0 0.0
    %1525 = vmatpush1.msra.mxu0 0.0
    %1526 = vmatprep.subr.mxu0 0.0
    %1527 = vmatpush1.msra.mxu0 0.0
    %1528 = vmatprep.subr.mxu0 0.0
    %1529 = vmatpush1.msra.mxu0 0.0
    %1530 = vmatprep.subr.mxu0 0.0
    %1531 = vmatpush1.msra.mxu0 0.0
    %1532 = vmatprep.subr.mxu0 0.0
    %1533 = vmatpush1.msra.mxu0 0.0
    %1534 = vmatprep.subr.mxu0 0.0
    %1535 = vmatpush1.msra.mxu0 0.0
    %1536 = vmatprep.subr.mxu0 0.0
    %1537 = vmatpush1.msra.mxu0 0.0
    %1538 = vmatprep.subr.mxu0 0.0
    %1539 = vmatpush1.msra.mxu0 0.0
    %1540 = vmatprep.subr.mxu0 0.0
    %1541 = vmatpush1.msra.mxu0 0.0
    %1542 = vmatprep.subr.mxu0 0.0
    %1543 = vmatpush1.msra.mxu0 0.0
    %1544 = vmatprep.subr.mxu0 0.0
    %1545 = vmatpush1.msra.mxu0 0.0
    %1546 = vmatprep.subr.mxu0 0.0
    %1547 = vmatpush1.msra.mxu0 0.0
    %1548 = vmatprep.subr.mxu0 0.0
    %1549 = vmatpush1.msra.mxu0 0.0
    %1550 = vmatprep.subr.mxu0 0.0
    %1551 = vmatpush1.msra.mxu0 0.0
    %1552 = vmatprep.subr.mxu0 0.0
    %1553 = vmatpush1.msra.mxu0 0.0
    %1554 = vmatprep.subr.mxu0 0.0
    %1555 = vmatpush1.msra.mxu0 0.0
    %1556 = vmatprep.subr.mxu0 0.0
    %1557 = vmatpush1.msra.mxu0 0.0
    %1558 = vmatprep.subr.mxu0 0.0
    %1559 = vmatpush1.msra.mxu0 0.0
    %1560 = vmatprep.subr.mxu0 0.0
    %1561 = vmatpush1.msra.mxu0 0.0
    %1562 = vmatprep.subr.mxu0 0.0
    %1563 = vmatpush1.msra.mxu0 0.0
    %1564 = vmatprep.subr.mxu0 0.0
    %1565 = vmatpush1.msra.mxu0 0.0
    %1566 = vmatprep.mubr.f32.mxu0 0.0
    %1567 = vmatmul.mubr.f32.gmra.mrb[0].mxu0 %v1423
    %v1568 = vpop.f32.mrb[0].mxu0
    %v1569 = vadd.f32 0.0, %v1568
    %v1570 = vpop.f32.mrb[0].mxu0
    %1571 = vdwg.mxu0
    %v1572 = vadd.f32 %v1403, %v1498
    %v1573 = vadd.f32 %v1404, %v1500
    %v1574 = vadd.f32 %v1405, %v1569
    %v1575 = vmul.f32 %v1572, %v70
    %v1576 = vmul.f32 %v1573, %v71
    %v1577 = vmul.f32 %v1574, %v72
    %v1578 = vadd.f32 %v1575, %v1576
    %vm1579 = vcmask 261120
    %v1580 = vsel %vm1579, %v1577, 0.0
    %v1581 = vadd.f32 %v1578, %v1580
    %1582 = vadd.xlane.f32.xlu0 %v1581
    %v1583 = vpop.xlane.xlu0 %1582
    %v1584 = vmul.f32 %v1583, 0.00390625
    %v1585 = vsub.f32 %v1572, %v1584
    %v1586 = vsub.f32 %v1573, %v1584
    %v1587 = vsub.f32 %v1574, %v1584
    %v1588 = vmul.f32 %v1585, %v1585
    %v1589 = vmul.f32 %v1586, %v1586
    %v1590 = vmul.f32 %v1587, %v1587
    %v1591 = vmul.f32 %v1588, %v70
    %v1592 = vmul.f32 %v1589, %v71
    %v1593 = vmul.f32 %v1590, %v72
    %v1594 = vadd.f32 %v1591, %v1592
    %v1595 = vsel %vm1579, %v1593, 0.0
    %v1596 = vadd.f32 %v1594, %v1595
    %1597 = vadd.xlane.f32.xlu0 %v1596
    %v1598 = vpop.xlane.xlu0 %1597
    %v1599 = vmul.f32 %v1598, 0.00390625
    %v1600 = vadd.f32 %v1599, 1e-05
    %v1601 = vrsqrt.pop %v1600
    %v1602 = vmul.f32 %v1585, %v1601
    %v1603 = vmul.f32 %v1586, %v1601
    %v1604 = vmul.f32 %v1587, %v1601
    %v1605 = vmax.f32 %v1602, 0.0
    %v1606 = vmax.f32 %v1603, 0.0
    %v1607 = vmax.f32 %v1604, 0.0
    %1608 = vst [vmem:[#allocation2] sm:$0xff] %v1605
    %1609 = vst [vmem:[#allocation2 + $0x8] sm:$0xff] %v1606
    %1610 = vst.msk [vmem:[#allocation2 + $0x10] sm:$0xff] %vm1579, %v1607
    %v1611 = vld [vmem:[%s1] sm:$0xff]
    %s1612 = scalar_lea.vmem %s0, 12
    %v1613 = vld [vmem:[%s1612] sm:$0xff]
    %v1614 = vld [vmem:[%s1612 + $0x8] sm:$0xf]
    %v1615 = vld [vmem:[%s76] sm:$0xff]
    %v1618 = vcombine.high %v1613, %v1613
    %1619 = vrot.lane.b32.xlu0 %v1613, 127
    %v1620 = vpop.permute.xlu0 %1619
    %1621 = vrot.lane.b32.xlu0 %v1618, 127
    %v1622 = vpop.permute.xlu0 %1621
    %1623 = vrot.lane.b32.xlu0 %v1614, 127
    %v1624 = vpop.permute.xlu0 %1623
    %v1625 = vsel %vm87, %v1620, %v1622
    %v1626 = vsel %vm87, %v1622, %v1624
    %v1628 = vsel %vm90, %v1615, 0
    %v1630 = vsel %vm94, %v1625, 0
    %v1632 = vsel %vm94, %v1626, 0
    %v1634 = vsel %vm94, %v1624, 0
    %1636 = vmatprep.subr.mxu0 %v1632
    %1637 = vmatpush1.msra.mxu0 %v1630
    %1638 = vmatprep.subr.mxu0 0.0
    %1639 = vmatpush1.msra.mxu0 0.0
    %1640 = vmatprep.subr.mxu0 0.0
    %1641 = vmatpush1.msra.mxu0 0.0
    %1642 = vmatprep.subr.mxu0 0.0
    %1643 = vmatpush1.msra.mxu0 0.0
    %1644 = vmatprep.subr.mxu0 0.0
    %1645 = vmatpush1.msra.mxu0 0.0
    %1646 = vmatprep.subr.mxu0 0.0
    %1647 = vmatpush1.msra.mxu0 0.0
    %1648 = vmatprep.subr.mxu0 0.0
    %1649 = vmatpush1.msra.mxu0 0.0
    %1650 = vmatprep.subr.mxu0 0.0
    %1651 = vmatpush1.msra.mxu0 0.0
    %1652 = vmatprep.subr.mxu0 0.0
    %1653 = vmatpush1.msra.mxu0 0.0
    %1654 = vmatprep.subr.mxu0 0.0
    %1655 = vmatpush1.msra.mxu0 0.0
    %1656 = vmatprep.subr.mxu0 0.0
    %1657 = vmatpush1.msra.mxu0 0.0
    %1658 = vmatprep.subr.mxu0 0.0
    %1659 = vmatpush1.msra.mxu0 0.0
    %1660 = vmatprep.subr.mxu0 0.0
    %1661 = vmatpush1.msra.mxu0 0.0
    %1662 = vmatprep.subr.mxu0 0.0
    %1663 = vmatpush1.msra.mxu0 0.0
    %1664 = vmatprep.subr.mxu0 0.0
    %1665 = vmatpush1.msra.mxu0 0.0
    %1666 = vmatprep.subr.mxu0 0.0
    %1667 = vmatpush1.msra.mxu0 0.0
    %1668 = vmatprep.subr.mxu0 0.0
    %1669 = vmatpush1.msra.mxu0 0.0
    %1670 = vmatprep.subr.mxu0 0.0
    %1671 = vmatpush1.msra.mxu0 0.0
    %1672 = vmatprep.subr.mxu0 0.0
    %1673 = vmatpush1.msra.mxu0 0.0
    %1674 = vmatprep.subr.mxu0 0.0
    %1675 = vmatpush1.msra.mxu0 0.0
    %1676 = vmatprep.subr.mxu0 0.0
    %1677 = vmatpush1.msra.mxu0 0.0
    %1678 = vmatprep.subr.mxu0 0.0
    %1679 = vmatpush1.msra.mxu0 0.0
    %1680 = vmatprep.subr.mxu0 0.0
    %1681 = vmatpush1.msra.mxu0 0.0
    %1682 = vmatprep.subr.mxu0 0.0
    %1683 = vmatpush1.msra.mxu0 0.0
    %1684 = vmatprep.subr.mxu0 0.0
    %1685 = vmatpush1.msra.mxu0 0.0
    %1686 = vmatprep.subr.mxu0 0.0
    %1687 = vmatpush1.msra.mxu0 0.0
    %1688 = vmatprep.subr.mxu0 0.0
    %1689 = vmatpush1.msra.mxu0 0.0
    %1690 = vmatprep.subr.mxu0 0.0
    %1691 = vmatpush1.msra.mxu0 0.0
    %1692 = vmatprep.subr.mxu0 0.0
    %1693 = vmatpush1.msra.mxu0 0.0
    %1694 = vmatprep.subr.mxu0 0.0
    %1695 = vmatpush1.msra.mxu0 0.0
    %1696 = vmatprep.subr.mxu0 0.0
    %1697 = vmatpush1.msra.mxu0 0.0
    %1698 = vmatprep.subr.mxu0 0.0
    %1699 = vmatpush1.msra.mxu0 0.0
    %1700 = vmatprep.mubr.f32.mxu0 0.0
    %1701 = vmatmul.mubr.f32.gmra.mrb[0].mxu0 %v1628
    %v1702 = vpop.f32.mrb[0].mxu0
    %v1703 = vadd.f32 0.0, %v1702
    %v1704 = vpop.f32.mrb[0].mxu0
    %v1705 = vadd.f32 0.0, %v1704
    %1706 = vdwg.mxu0
    %1707 = vmatprep.subr.mxu0 0.0
    %1708 = vmatpush1.msra.mxu0 %v1634
    %1709 = vmatprep.subr.mxu0 0.0
    %1710 = vmatpush1.msra.mxu0 0.0
    %1711 = vmatprep.subr.mxu0 0.0
    %1712 = vmatpush1.msra.mxu0 0.0
    %1713 = vmatprep.subr.mxu0 0.0
    %1714 = vmatpush1.msra.mxu0 0.0
    %1715 = vmatprep.subr.mxu0 0.0
    %1716 = vmatpush1.msra.mxu0 0.0
    %1717 = vmatprep.subr.mxu0 0.0
    %1718 = vmatpush1.msra.mxu0 0.0
    %1719 = vmatprep.subr.mxu0 0.0
    %1720 = vmatpush1.msra.mxu0 0.0
    %1721 = vmatprep.subr.mxu0 0.0
    %1722 = vmatpush1.msra.mxu0 0.0
    %1723 = vmatprep.subr.mxu0 0.0
    %1724 = vmatpush1.msra.mxu0 0.0
    %1725 = vmatprep.subr.mxu0 0.0
    %1726 = vmatpush1.msra.mxu0 0.0
    %1727 = vmatprep.subr.mxu0 0.0
    %1728 = vmatpush1.msra.mxu0 0.0
    %1729 = vmatprep.subr.mxu0 0.0
    %1730 = vmatpush1.msra.mxu0 0.0
    %1731 = vmatprep.subr.mxu0 0.0
    %1732 = vmatpush1.msra.mxu0 0.0
    %1733 = vmatprep.subr.mxu0 0.0
    %1734 = vmatpush1.msra.mxu0 0.0
    %1735 = vmatprep.subr.mxu0 0.0
    %1736 = vmatpush1.msra.mxu0 0.0
    %1737 = vmatprep.subr.mxu0 0.0
    %1738 = vmatpush1.msra.mxu0 0.0
    %1739 = vmatprep.subr.mxu0 0.0
    %1740 = vmatpush1.msra.mxu0 0.0
    %1741 = vmatprep.subr.mxu0 0.0
    %1742 = vmatpush1.msra.mxu0 0.0
    %1743 = vmatprep.subr.mxu0 0.0
    %1744 = vmatpush1.msra.mxu0 0.0
    %1745 = vmatprep.subr.mxu0 0.0
    %1746 = vmatpush1.msra.mxu0 0.0
    %1747 = vmatprep.subr.mxu0 0.0
    %1748 = vmatpush1.msra.mxu0 0.0
    %1749 = vmatprep.subr.mxu0 0.0
    %1750 = vmatpush1.msra.mxu0 0.0
    %1751 = vmatprep.subr.mxu0 0.0
    %1752 = vmatpush1.msra.mxu0 0.0
    %1753 = vmatprep.subr.mxu0 0.0
    %1754 = vmatpush1.msra.mxu0 0.0
    %1755 = vmatprep.subr.mxu0 0.0
    %1756 = vmatpush1.msra.mxu0 0.0
    %1757 = vmatprep.subr.mxu0 0.0
    %1758 = vmatpush1.msra.mxu0 0.0
    %1759 = vmatprep.subr.mxu0 0.0
    %1760 = vmatpush1.msra.mxu0 0.0
    %1761 = vmatprep.subr.mxu0 0.0
    %1762 = vmatpush1.msra.mxu0 0.0
    %1763 = vmatprep.subr.mxu0 0.0
    %1764 = vmatpush1.msra.mxu0 0.0
    %1765 = vmatprep.subr.mxu0 0.0
    %1766 = vmatpush1.msra.mxu0 0.0
    %1767 = vmatprep.subr.mxu0 0.0
    %1768 = vmatpush1.msra.mxu0 0.0
    %1769 = vmatprep.subr.mxu0 0.0
    %1770 = vmatpush1.msra.mxu0 0.0
    %1771 = vmatprep.mubr.f32.mxu0 0.0
    %1772 = vmatmul.mubr.f32.gmra.mrb[0].mxu0 %v1628
    %v1773 = vpop.f32.mrb[0].mxu0
    %v1774 = vadd.f32 0.0, %v1773
    %v1775 = vpop.f32.mrb[0].mxu0
    %1776 = vdwg.mxu0
    %v1778 = vsel %vm90, %v1611, 0
    %v1780 = vsel %vm94, %v1613, 0
    %v1782 = vsel %vm94, %v1618, 0
    %v1784 = vsel %vm94, %v1614, 0
    %1786 = vmatprep.subr.mxu0 %v1782
    %1787 = vmatpush1.msra.mxu0 %v1780
    %1788 = vmatprep.subr.mxu0 0.0
    %1789 = vmatpush1.msra.mxu0 0.0
    %1790 = vmatprep.subr.mxu0 0.0
    %1791 = vmatpush1.msra.mxu0 0.0
    %1792 = vmatprep.subr.mxu0 0.0
    %1793 = vmatpush1.msra.mxu0 0.0
    %1794 = vmatprep.subr.mxu0 0.0
    %1795 = vmatpush1.msra.mxu0 0.0
    %1796 = vmatprep.subr.mxu0 0.0
    %1797 = vmatpush1.msra.mxu0 0.0
    %1798 = vmatprep.subr.mxu0 0.0
    %1799 = vmatpush1.msra.mxu0 0.0
    %1800 = vmatprep.subr.mxu0 0.0
    %1801 = vmatpush1.msra.mxu0 0.0
    %1802 = vmatprep.subr.mxu0 0.0
    %1803 = vmatpush1.msra.mxu0 0.0
    %1804 = vmatprep.subr.mxu0 0.0
    %1805 = vmatpush1.msra.mxu0 0.0
    %1806 = vmatprep.subr.mxu0 0.0
    %1807 = vmatpush1.msra.mxu0 0.0
    %1808 = vmatprep.subr.mxu0 0.0
    %1809 = vmatpush1.msra.mxu0 0.0
    %1810 = vmatprep.subr.mxu0 0.0
    %1811 = vmatpush1.msra.mxu0 0.0
    %1812 = vmatprep.subr.mxu0 0.0
    %1813 = vmatpush1.msra.mxu0 0.0
    %1814 = vmatprep.subr.mxu0 0.0
    %1815 = vmatpush1.msra.mxu0 0.0
    %1816 = vmatprep.subr.mxu0 0.0
    %1817 = vmatpush1.msra.mxu0 0.0
    %1818 = vmatprep.subr.mxu0 0.0
    %1819 = vmatpush1.msra.mxu0 0.0
    %1820 = vmatprep.subr.mxu0 0.0
    %1821 = vmatpush1.msra.mxu0 0.0
    %1822 = vmatprep.subr.mxu0 0.0
    %1823 = vmatpush1.msra.mxu0 0.0
    %1824 = vmatprep.subr.mxu0 0.0
    %1825 = vmatpush1.msra.mxu0 0.0
    %1826 = vmatprep.subr.mxu0 0.0
    %1827 = vmatpush1.msra.mxu0 0.0
    %1828 = vmatprep.subr.mxu0 0.0
    %1829 = vmatpush1.msra.mxu0 0.0
    %1830 = vmatprep.subr.mxu0 0.0
    %1831 = vmatpush1.msra.mxu0 0.0
    %1832 = vmatprep.subr.mxu0 0.0
    %1833 = vmatpush1.msra.mxu0 0.0
    %1834 = vmatprep.subr.mxu0 0.0
    %1835 = vmatpush1.msra.mxu0 0.0
    %1836 = vmatprep.subr.mxu0 0.0
    %1837 = vmatpush1.msra.mxu0 0.0
    %1838 = vmatprep.subr.mxu0 0.0
    %1839 = vmatpush1.msra.mxu0 0.0
    %1840 = vmatprep.subr.mxu0 0.0
    %1841 = vmatpush1.msra.mxu0 0.0
    %1842 = vmatprep.subr.mxu0 0.0
    %1843 = vmatpush1.msra.mxu0 0.0
    %1844 = vmatprep.subr.mxu0 0.0
    %1845 = vmatpush1.msra.mxu0 0.0
    %1846 = vmatprep.subr.mxu0 0.0
    %1847 = vmatpush1.msra.mxu0 0.0
    %1848 = vmatprep.subr.mxu0 0.0
    %1849 = vmatpush1.msra.mxu0 0.0
    %1850 = vmatprep.mubr.f32.mxu0 0.0
    %1851 = vmatmul.mubr.f32.gmra.mrb[0].mxu0 %v1778
    %v1852 = vpop.f32.mrb[0].mxu0
    %v1853 = vadd.f32 %v1703, %v1852
    %v1854 = vpop.f32.mrb[0].mxu0
    %v1855 = vadd.f32 %v1705, %v1854
    %1856 = vdwg.mxu0
    %1857 = vmatprep.subr.mxu0 0.0
    %1858 = vmatpush1.msra.mxu0 %v1784
    %1859 = vmatprep.subr.mxu0 0.0
    %1860 = vmatpush1.msra.mxu0 0.0
    %1861 = vmatprep.subr.mxu0 0.0
    %1862 = vmatpush1.msra.mxu0 0.0
    %1863 = vmatprep.subr.mxu0 0.0
    %1864 = vmatpush1.msra.mxu0 0.0
    %1865 = vmatprep.subr.mxu0 0.0
    %1866 = vmatpush1.msra.mxu0 0.0
    %1867 = vmatprep.subr.mxu0 0.0
    %1868 = vmatpush1.msra.mxu0 0.0
    %1869 = vmatprep.subr.mxu0 0.0
    %1870 = vmatpush1.msra.mxu0 0.0
    %1871 = vmatprep.subr.mxu0 0.0
    %1872 = vmatpush1.msra.mxu0 0.0
    %1873 = vmatprep.subr.mxu0 0.0
    %1874 = vmatpush1.msra.mxu0 0.0
    %1875 = vmatprep.subr.mxu0 0.0
    %1876 = vmatpush1.msra.mxu0 0.0
    %1877 = vmatprep.subr.mxu0 0.0
    %1878 = vmatpush1.msra.mxu0 0.0
    %1879 = vmatprep.subr.mxu0 0.0
    %1880 = vmatpush1.msra.mxu0 0.0
    %1881 = vmatprep.subr.mxu0 0.0
    %1882 = vmatpush1.msra.mxu0 0.0
    %1883 = vmatprep.subr.mxu0 0.0
    %1884 = vmatpush1.msra.mxu0 0.0
    %1885 = vmatprep.subr.mxu0 0.0
    %1886 = vmatpush1.msra.mxu0 0.0
    %1887 = vmatprep.subr.mxu0 0.0
    %1888 = vmatpush1.msra.mxu0 0.0
    %1889 = vmatprep.subr.mxu0 0.0
    %1890 = vmatpush1.msra.mxu0 0.0
    %1891 = vmatprep.subr.mxu0 0.0
    %1892 = vmatpush1.msra.mxu0 0.0
    %1893 = vmatprep.subr.mxu0 0.0
    %1894 = vmatpush1.msra.mxu0 0.0
    %1895 = vmatprep.subr.mxu0 0.0
    %1896 = vmatpush1.msra.mxu0 0.0
    %1897 = vmatprep.subr.mxu0 0.0
    %1898 = vmatpush1.msra.mxu0 0.0
    %1899 = vmatprep.subr.mxu0 0.0
    %1900 = vmatpush1.msra.mxu0 0.0
    %1901 = vmatprep.subr.mxu0 0.0
    %1902 = vmatpush1.msra.mxu0 0.0
    %1903 = vmatprep.subr.mxu0 0.0
    %1904 = vmatpush1.msra.mxu0 0.0
    %1905 = vmatprep.subr.mxu0 0.0
    %1906 = vmatpush1.msra.mxu0 0.0
    %1907 = vmatprep.subr.mxu0 0.0
    %1908 = vmatpush1.msra.mxu0 0.0
    %1909 = vmatprep.subr.mxu0 0.0
    %1910 = vmatpush1.msra.mxu0 0.0
    %1911 = vmatprep.subr.mxu0 0.0
    %1912 = vmatpush1.msra.mxu0 0.0
    %1913 = vmatprep.subr.mxu0 0.0
    %1914 = vmatpush1.msra.mxu0 0.0
    %1915 = vmatprep.subr.mxu0 0.0
    %1916 = vmatpush1.msra.mxu0 0.0
    %1917 = vmatprep.subr.mxu0 0.0
    %1918 = vmatpush1.msra.mxu0 0.0
    %1919 = vmatprep.subr.mxu0 0.0
    %1920 = vmatpush1.msra.mxu0 0.0
    %1921 = vmatprep.mubr.f32.mxu0 0.0
    %1922 = vmatmul.mubr.f32.gmra.mrb[0].mxu0 %v1778
    %v1923 = vpop.f32.mrb[0].mxu0
    %v1924 = vadd.f32 %v1774, %v1923
    %v1925 = vpop.f32.mrb[0].mxu0
    %1926 = vdwg.mxu0
    %v1927 = vld [vmem:[%s392] sm:$0xff]
    %v1928 = vld [vmem:[%s1612] sm:$0xff]
    %v1929 = vld [vmem:[%s1612 + $0x8] sm:$0xf]
    %v1932 = vcombine.high %v1928, %v1928
    %1933 = vrot.lane.b32.xlu0 %v1928, 126
    %v1934 = vpop.permute.xlu0 %1933
    %1935 = vrot.lane.b32.xlu0 %v1932, 126
    %v1936 = vpop.permute.xlu0 %1935
    %1937 = vrot.lane.b32.xlu0 %v1929, 126
    %v1938 = vpop.permute.xlu0 %1937
    %v1939 = vsel %vm405, %v1934, %v1936
    %v1940 = vsel %vm405, %v1936, %v1938
    %v1942 = vsel %vm90, %v1927, 0
    %v1944 = vsel %vm94, %v1939, 0
    %v1946 = vsel %vm94, %v1940, 0
    %v1948 = vsel %vm94, %v1938, 0
    %1950 = vmatprep.subr.mxu0 %v1946
    %1951 = vmatpush1.msra.mxu0 %v1944
    %1952 = vmatprep.subr.mxu0 0.0
    %1953 = vmatpush1.msra.mxu0 0.0
    %1954 = vmatprep.subr.mxu0 0.0
    %1955 = vmatpush1.msra.mxu0 0.0
    %1956 = vmatprep.subr.mxu0 0.0
    %1957 = vmatpush1.msra.mxu0 0.0
    %1958 = vmatprep.subr.mxu0 0.0
    %1959 = vmatpush1.msra.mxu0 0.0
    %1960 = vmatprep.subr.mxu0 0.0
    %1961 = vmatpush1.msra.mxu0 0.0
    %1962 = vmatprep.subr.mxu0 0.0
    %1963 = vmatpush1.msra.mxu0 0.0
    %1964 = vmatprep.subr.mxu0 0.0
    %1965 = vmatpush1.msra.mxu0 0.0
    %1966 = vmatprep.subr.mxu0 0.0
    %1967 = vmatpush1.msra.mxu0 0.0
    %1968 = vmatprep.subr.mxu0 0.0
    %1969 = vmatpush1.msra.mxu0 0.0
    %1970 = vmatprep.subr.mxu0 0.0
    %1971 = vmatpush1.msra.mxu0 0.0
    %1972 = vmatprep.subr.mxu0 0.0
    %1973 = vmatpush1.msra.mxu0 0.0
    %1974 = vmatprep.subr.mxu0 0.0
    %1975 = vmatpush1.msra.mxu0 0.0
    %1976 = vmatprep.subr.mxu0 0.0
    %1977 = vmatpush1.msra.mxu0 0.0
    %1978 = vmatprep.subr.mxu0 0.0
    %1979 = vmatpush1.msra.mxu0 0.0
    %1980 = vmatprep.subr.mxu0 0.0
    %1981 = vmatpush1.msra.mxu0 0.0
    %1982 = vmatprep.subr.mxu0 0.0
    %1983 = vmatpush1.msra.mxu0 0.0
    %1984 = vmatprep.subr.mxu0 0.0
    %1985 = vmatpush1.msra.mxu0 0.0
    %1986 = vmatprep.subr.mxu0 0.0
    %1987 = vmatpush1.msra.mxu0 0.0
    %1988 = vmatprep.subr.mxu0 0.0
    %1989 = vmatpush1.msra.mxu0 0.0
    %1990 = vmatprep.subr.mxu0 0.0
    %1991 = vmatpush1.msra.mxu0 0.0
    %1992 = vmatprep.subr.mxu0 0.0
    %1993 = vmatpush1.msra.mxu0 0.0
    %1994 = vmatprep.subr.mxu0 0.0
    %1995 = vmatpush1.msra.mxu0 0.0
    %1996 = vmatprep.subr.mxu0 0.0
    %1997 = vmatpush1.msra.mxu0 0.0
    %1998 = vmatprep.subr.mxu0 0.0
    %1999 = vmatpush1.msra.mxu0 0.0
    %2000 = vmatprep.subr.mxu0 0.0
    %2001 = vmatpush1.msra.mxu0 0.0
    %2002 = vmatprep.subr.mxu0 0.0
    %2003 = vmatpush1.msra.mxu0 0.0
    %2004 = vmatprep.subr.mxu0 0.0
    %2005 = vmatpush1.msra.mxu0 0.0
    %2006 = vmatprep.subr.mxu0 0.0
    %2007 = vmatpush1.msra.mxu0 0.0
    %2008 = vmatprep.subr.mxu0 0.0
    %2009 = vmatpush1.msra.mxu0 0.0
    %2010 = vmatprep.subr.mxu0 0.0
    %2011 = vmatpush1.msra.mxu0 0.0
    %2012 = vmatprep.subr.mxu0 0.0
    %2013 = vmatpush1.msra.mxu0 0.0
    %2014 = vmatprep.mubr.f32.mxu0 0.0
    %2015 = vmatmul.mubr.f32.gmra.mrb[0].mxu0 %v1942
    %v2016 = vpop.f32.mrb[0].mxu0
    %v2017 = vadd.f32 0.0, %v2016
    %v2018 = vpop.f32.mrb[0].mxu0
    %v2019 = vadd.f32 0.0, %v2018
    %2020 = vdwg.mxu0
    %2021 = vmatprep.subr.mxu0 0.0
    %2022 = vmatpush1.msra.mxu0 %v1948
    %2023 = vmatprep.subr.mxu0 0.0
    %2024 = vmatpush1.msra.mxu0 0.0
    %2025 = vmatprep.subr.mxu0 0.0
    %2026 = vmatpush1.msra.mxu0 0.0
    %2027 = vmatprep.subr.mxu0 0.0
    %2028 = vmatpush1.msra.mxu0 0.0
    %2029 = vmatprep.subr.mxu0 0.0
    %2030 = vmatpush1.msra.mxu0 0.0
    %2031 = vmatprep.subr.mxu0 0.0
    %2032 = vmatpush1.msra.mxu0 0.0
    %2033 = vmatprep.subr.mxu0 0.0
    %2034 = vmatpush1.msra.mxu0 0.0
    %2035 = vmatprep.subr.mxu0 0.0
    %2036 = vmatpush1.msra.mxu0 0.0
    %2037 = vmatprep.subr.mxu0 0.0
    %2038 = vmatpush1.msra.mxu0 0.0
    %2039 = vmatprep.subr.mxu0 0.0
    %2040 = vmatpush1.msra.mxu0 0.0
    %2041 = vmatprep.subr.mxu0 0.0
    %2042 = vmatpush1.msra.mxu0 0.0
    %2043 = vmatprep.subr.mxu0 0.0
    %2044 = vmatpush1.msra.mxu0 0.0
    %2045 = vmatprep.subr.mxu0 0.0
    %2046 = vmatpush1.msra.mxu0 0.0
    %2047 = vmatprep.subr.mxu0 0.0
    %2048 = vmatpush1.msra.mxu0 0.0
    %2049 = vmatprep.subr.mxu0 0.0
    %2050 = vmatpush1.msra.mxu0 0.0
    %2051 = vmatprep.subr.mxu0 0.0
    %2052 = vmatpush1.msra.mxu0 0.0
    %2053 = vmatprep.subr.mxu0 0.0
    %2054 = vmatpush1.msra.mxu0 0.0
    %2055 = vmatprep.subr.mxu0 0.0
    %2056 = vmatpush1.msra.mxu0 0.0
    %2057 = vmatprep.subr.mxu0 0.0
    %2058 = vmatpush1.msra.mxu0 0.0
    %2059 = vmatprep.subr.mxu0 0.0
    %2060 = vmatpush1.msra.mxu0 0.0
    %2061 = vmatprep.subr.mxu0 0.0
    %2062 = vmatpush1.msra.mxu0 0.0
    %2063 = vmatprep.subr.mxu0 0.0
    %2064 = vmatpush1.msra.mxu0 0.0
    %2065 = vmatprep.subr.mxu0 0.0
    %2066 = vmatpush1.msra.mxu0 0.0
    %2067 = vmatprep.subr.mxu0 0.0
    %2068 = vmatpush1.msra.mxu0 0.0
    %2069 = vmatprep.subr.mxu0 0.0
    %2070 = vmatpush1.msra.mxu0 0.0
    %2071 = vmatprep.subr.mxu0 0.0
    %2072 = vmatpush1.msra.mxu0 0.0
    %2073 = vmatprep.subr.mxu0 0.0
    %2074 = vmatpush1.msra.mxu0 0.0
    %2075 = vmatprep.subr.mxu0 0.0
    %2076 = vmatpush1.msra.mxu0 0.0
    %2077 = vmatprep.subr.mxu0 0.0
    %2078 = vmatpush1.msra.mxu0 0.0
    %2079 = vmatprep.subr.mxu0 0.0
    %2080 = vmatpush1.msra.mxu0 0.0
    %2081 = vmatprep.subr.mxu0 0.0
    %2082 = vmatpush1.msra.mxu0 0.0
    %2083 = vmatprep.subr.mxu0 0.0
    %2084 = vmatpush1.msra.mxu0 0.0
    %2085 = vmatprep.mubr.f32.mxu0 0.0
    %2086 = vmatmul.mubr.f32.gmra.mrb[0].mxu0 %v1942
    %v2087 = vpop.f32.mrb[0].mxu0
    %v2088 = vadd.f32 0.0, %v2087
    %v2089 = vpop.f32.mrb[0].mxu0
    %2090 = vdwg.mxu0
    %v2091 = vadd.f32 %v1853, %v2017
    %v2092 = vadd.f32 %v1855, %v2019
    %v2093 = vadd.f32 %v1924, %v2088
    %v2094 = vld [vmem:[%s561] sm:$0xff]
    %v2095 = vld [vmem:[%s1612] sm:$0xff]
    %v2096 = vld [vmem:[%s1612 + $0x8] sm:$0xf]
    %v2099 = vcombine.high %v2095, %v2095
    %2100 = vrot.lane.b32.xlu0 %v2095, 110
    %v2101 = vpop.permute.xlu0 %2100
    %2102 = vrot.lane.b32.xlu0 %v2099, 110
    %v2103 = vpop.permute.xlu0 %2102
    %2104 = vrot.lane.b32.xlu0 %v2096, 110
    %v2105 = vpop.permute.xlu0 %2104
    %v2106 = vsel %vm574, %v2101, %v2103
    %v2107 = vsel %vm574, %v2103, %v2105
    %v2109 = vsel %vm90, %v2094, 0
    %v2111 = vsel %vm94, %v2106, 0
    %v2113 = vsel %vm94, %v2107, 0
    %v2115 = vsel %vm94, %v2105, 0
    %2117 = vmatprep.subr.mxu0 %v2113
    %2118 = vmatpush1.msra.mxu0 %v2111
    %2119 = vmatprep.subr.mxu0 0.0
    %2120 = vmatpush1.msra.mxu0 0.0
    %2121 = vmatprep.subr.mxu0 0.0
    %2122 = vmatpush1.msra.mxu0 0.0
    %2123 = vmatprep.subr.mxu0 0.0
    %2124 = vmatpush1.msra.mxu0 0.0
    %2125 = vmatprep.subr.mxu0 0.0
    %2126 = vmatpush1.msra.mxu0 0.0
    %2127 = vmatprep.subr.mxu0 0.0
    %2128 = vmatpush1.msra.mxu0 0.0
    %2129 = vmatprep.subr.mxu0 0.0
    %2130 = vmatpush1.msra.mxu0 0.0
    %2131 = vmatprep.subr.mxu0 0.0
    %2132 = vmatpush1.msra.mxu0 0.0
    %2133 = vmatprep.subr.mxu0 0.0
    %2134 = vmatpush1.msra.mxu0 0.0
    %2135 = vmatprep.subr.mxu0 0.0
    %2136 = vmatpush1.msra.mxu0 0.0
    %2137 = vmatprep.subr.mxu0 0.0
    %2138 = vmatpush1.msra.mxu0 0.0
    %2139 = vmatprep.subr.mxu0 0.0
    %2140 = vmatpush1.msra.mxu0 0.0
    %2141 = vmatprep.subr.mxu0 0.0
    %2142 = vmatpush1.msra.mxu0 0.0
    %2143 = vmatprep.subr.mxu0 0.0
    %2144 = vmatpush1.msra.mxu0 0.0
    %2145 = vmatprep.subr.mxu0 0.0
    %2146 = vmatpush1.msra.mxu0 0.0
    %2147 = vmatprep.subr.mxu0 0.0
    %2148 = vmatpush1.msra.mxu0 0.0
    %2149 = vmatprep.subr.mxu0 0.0
    %2150 = vmatpush1.msra.mxu0 0.0
    %2151 = vmatprep.subr.mxu0 0.0
    %2152 = vmatpush1.msra.mxu0 0.0
    %2153 = vmatprep.subr.mxu0 0.0
    %2154 = vmatpush1.msra.mxu0 0.0
    %2155 = vmatprep.subr.mxu0 0.0
    %2156 = vmatpush1.msra.mxu0 0.0
    %2157 = vmatprep.subr.mxu0 0.0
    %2158 = vmatpush1.msra.mxu0 0.0
    %2159 = vmatprep.subr.mxu0 0.0
    %2160 = vmatpush1.msra.mxu0 0.0
    %2161 = vmatprep.subr.mxu0 0.0
    %2162 = vmatpush1.msra.mxu0 0.0
    %2163 = vmatprep.subr.mxu0 0.0
    %2164 = vmatpush1.msra.mxu0 0.0
    %2165 = vmatprep.subr.mxu0 0.0
    %2166 = vmatpush1.msra.mxu0 0.0
    %2167 = vmatprep.subr.mxu0 0.0
    %2168 = vmatpush1.msra.mxu0 0.0
    %2169 = vmatprep.subr.mxu0 0.0
    %2170 = vmatpush1.msra.mxu0 0.0
    %2171 = vmatprep.subr.mxu0 0.0
    %2172 = vmatpush1.msra.mxu0 0.0
    %2173 = vmatprep.subr.mxu0 0.0
    %2174 = vmatpush1.msra.mxu0 0.0
    %2175 = vmatprep.subr.mxu0 0.0
    %2176 = vmatpush1.msra.mxu0 0.0
    %2177 = vmatprep.subr.mxu0 0.0
    %2178 = vmatpush1.msra.mxu0 0.0
    %2179 = vmatprep.subr.mxu0 0.0
    %2180 = vmatpush1.msra.mxu0 0.0
    %2181 = vmatprep.mubr.f32.mxu0 0.0
    %2182 = vmatmul.mubr.f32.gmra.mrb[0].mxu0 %v2109
    %v2183 = vpop.f32.mrb[0].mxu0
    %v2184 = vadd.f32 0.0, %v2183
    %v2185 = vpop.f32.mrb[0].mxu0
    %v2186 = vadd.f32 0.0, %v2185
    %2187 = vdwg.mxu0
    %2188 = vmatprep.subr.mxu0 0.0
    %2189 = vmatpush1.msra.mxu0 %v2115
    %2190 = vmatprep.subr.mxu0 0.0
    %2191 = vmatpush1.msra.mxu0 0.0
    %2192 = vmatprep.subr.mxu0 0.0
    %2193 = vmatpush1.msra.mxu0 0.0
    %2194 = vmatprep.subr.mxu0 0.0
    %2195 = vmatpush1.msra.mxu0 0.0
    %2196 = vmatprep.subr.mxu0 0.0
    %2197 = vmatpush1.msra.mxu0 0.0
    %2198 = vmatprep.subr.mxu0 0.0
    %2199 = vmatpush1.msra.mxu0 0.0
    %2200 = vmatprep.subr.mxu0 0.0
    %2201 = vmatpush1.msra.mxu0 0.0
    %2202 = vmatprep.subr.mxu0 0.0
    %2203 = vmatpush1.msra.mxu0 0.0
    %2204 = vmatprep.subr.mxu0 0.0
    %2205 = vmatpush1.msra.mxu0 0.0
    %2206 = vmatprep.subr.mxu0 0.0
    %2207 = vmatpush1.msra.mxu0 0.0
    %2208 = vmatprep.subr.mxu0 0.0
    %2209 = vmatpush1.msra.mxu0 0.0
    %2210 = vmatprep.subr.mxu0 0.0
    %2211 = vmatpush1.msra.mxu0 0.0
    %2212 = vmatprep.subr.mxu0 0.0
    %2213 = vmatpush1.msra.mxu0 0.0
    %2214 = vmatprep.subr.mxu0 0.0
    %2215 = vmatpush1.msra.mxu0 0.0
    %2216 = vmatprep.subr.mxu0 0.0
    %2217 = vmatpush1.msra.mxu0 0.0
    %2218 = vmatprep.subr.mxu0 0.0
    %2219 = vmatpush1.msra.mxu0 0.0
    %2220 = vmatprep.subr.mxu0 0.0
    %2221 = vmatpush1.msra.mxu0 0.0
    %2222 = vmatprep.subr.mxu0 0.0
    %2223 = vmatpush1.msra.mxu0 0.0
    %2224 = vmatprep.subr.mxu0 0.0
    %2225 = vmatpush1.msra.mxu0 0.0
    %2226 = vmatprep.subr.mxu0 0.0
    %2227 = vmatpush1.msra.mxu0 0.0
    %2228 = vmatprep.subr.mxu0 0.0
    %2229 = vmatpush1.msra.mxu0 0.0
    %2230 = vmatprep.subr.mxu0 0.0
    %2231 = vmatpush1.msra.mxu0 0.0
    %2232 = vmatprep.subr.mxu0 0.0
    %2233 = vmatpush1.msra.mxu0 0.0
    %2234 = vmatprep.subr.mxu0 0.0
    %2235 = vmatpush1.msra.mxu0 0.0
    %2236 = vmatprep.subr.mxu0 0.0
    %2237 = vmatpush1.msra.mxu0 0.0
    %2238 = vmatprep.subr.mxu0 0.0
    %2239 = vmatpush1.msra.mxu0 0.0
    %2240 = vmatprep.subr.mxu0 0.0
    %2241 = vmatpush1.msra.mxu0 0.0
    %2242 = vmatprep.subr.mxu0 0.0
    %2243 = vmatpush1.msra.mxu0 0.0
    %2244 = vmatprep.subr.mxu0 0.0
    %2245 = vmatpush1.msra.mxu0 0.0
    %2246 = vmatprep.subr.mxu0 0.0
    %2247 = vmatpush1.msra.mxu0 0.0
    %2248 = vmatprep.subr.mxu0 0.0
    %2249 = vmatpush1.msra.mxu0 0.0
    %2250 = vmatprep.subr.mxu0 0.0
    %2251 = vmatpush1.msra.mxu0 0.0
    %2252 = vmatprep.mubr.f32.mxu0 0.0
    %2253 = vmatmul.mubr.f32.gmra.mrb[0].mxu0 %v2109
    %v2254 = vpop.f32.mrb[0].mxu0
    %v2255 = vadd.f32 0.0, %v2254
    %v2256 = vpop.f32.mrb[0].mxu0
    %2257 = vdwg.mxu0
    %v2258 = vadd.f32 %v2091, %v2184
    %v2259 = vadd.f32 %v2092, %v2186
    %v2260 = vadd.f32 %v2093, %v2255
    %v2261 = vld [vmem:[%s730] sm:$0xff]
    %v2262 = vld [vmem:[%s1612] sm:$0xff]
    %v2263 = vld [vmem:[%s1612 + $0x8] sm:$0xf]
    %v2266 = vcombine.high %v2262, %v2262
    %2267 = vrot.lane.b32.xlu0 %v2262, 109
    %v2268 = vpop.permute.xlu0 %2267
    %2269 = vrot.lane.b32.xlu0 %v2266, 109
    %v2270 = vpop.permute.xlu0 %2269
    %2271 = vrot.lane.b32.xlu0 %v2263, 109
    %v2272 = vpop.permute.xlu0 %2271
    %v2273 = vsel %vm743, %v2268, %v2270
    %v2274 = vsel %vm743, %v2270, %v2272
    %v2276 = vsel %vm90, %v2261, 0
    %v2278 = vsel %vm94, %v2273, 0
    %v2280 = vsel %vm94, %v2274, 0
    %v2282 = vsel %vm94, %v2272, 0
    %2284 = vmatprep.subr.mxu0 %v2280
    %2285 = vmatpush1.msra.mxu0 %v2278
    %2286 = vmatprep.subr.mxu0 0.0
    %2287 = vmatpush1.msra.mxu0 0.0
    %2288 = vmatprep.subr.mxu0 0.0
    %2289 = vmatpush1.msra.mxu0 0.0
    %2290 = vmatprep.subr.mxu0 0.0
    %2291 = vmatpush1.msra.mxu0 0.0
    %2292 = vmatprep.subr.mxu0 0.0
    %2293 = vmatpush1.msra.mxu0 0.0
    %2294 = vmatprep.subr.mxu0 0.0
    %2295 = vmatpush1.msra.mxu0 0.0
    %2296 = vmatprep.subr.mxu0 0.0
    %2297 = vmatpush1.msra.mxu0 0.0
    %2298 = vmatprep.subr.mxu0 0.0
    %2299 = vmatpush1.msra.mxu0 0.0
    %2300 = vmatprep.subr.mxu0 0.0
    %2301 = vmatpush1.msra.mxu0 0.0
    %2302 = vmatprep.subr.mxu0 0.0
    %2303 = vmatpush1.msra.mxu0 0.0
    %2304 = vmatprep.subr.mxu0 0.0
    %2305 = vmatpush1.msra.mxu0 0.0
    %2306 = vmatprep.subr.mxu0 0.0
    %2307 = vmatpush1.msra.mxu0 0.0
    %2308 = vmatprep.subr.mxu0 0.0
    %2309 = vmatpush1.msra.mxu0 0.0
    %2310 = vmatprep.subr.mxu0 0.0
    %2311 = vmatpush1.msra.mxu0 0.0
    %2312 = vmatprep.subr.mxu0 0.0
    %2313 = vmatpush1.msra.mxu0 0.0
    %2314 = vmatprep.subr.mxu0 0.0
    %2315 = vmatpush1.msra.mxu0 0.0
    %2316 = vmatprep.subr.mxu0 0.0
    %2317 = vmatpush1.msra.mxu0 0.0
    %2318 = vmatprep.subr.mxu0 0.0
    %2319 = vmatpush1.msra.mxu0 0.0
    %2320 = vmatprep.subr.mxu0 0.0
    %2321 = vmatpush1.msra.mxu0 0.0
    %2322 = vmatprep.subr.mxu0 0.0
    %2323 = vmatpush1.msra.mxu0 0.0
    %2324 = vmatprep.subr.mxu0 0.0
    %2325 = vmatpush1.msra.mxu0 0.0
    %2326 = vmatprep.subr.mxu0 0.0
    %2327 = vmatpush1.msra.mxu0 0.0
    %2328 = vmatprep.subr.mxu0 0.0
    %2329 = vmatpush1.msra.mxu0 0.0
    %2330 = vmatprep.subr.mxu0 0.0
    %2331 = vmatpush1.msra.mxu0 0.0
    %2332 = vmatprep.subr.mxu0 0.0
    %2333 = vmatpush1.msra.mxu0 0.0
    %2334 = vmatprep.subr.mxu0 0.0
    %2335 = vmatpush1.msra.mxu0 0.0
    %2336 = vmatprep.subr.mxu0 0.0
    %2337 = vmatpush1.msra.mxu0 0.0
    %2338 = vmatprep.subr.mxu0 0.0
    %2339 = vmatpush1.msra.mxu0 0.0
    %2340 = vmatprep.subr.mxu0 0.0
    %2341 = vmatpush1.msra.mxu0 0.0
    %2342 = vmatprep.subr.mxu0 0.0
    %2343 = vmatpush1.msra.mxu0 0.0
    %2344 = vmatprep.subr.mxu0 0.0
    %2345 = vmatpush1.msra.mxu0 0.0
    %2346 = vmatprep.subr.mxu0 0.0
    %2347 = vmatpush1.msra.mxu0 0.0
    %2348 = vmatprep.mubr.f32.mxu0 0.0
    %2349 = vmatmul.mubr.f32.gmra.mrb[0].mxu0 %v2276
    %v2350 = vpop.f32.mrb[0].mxu0
    %v2351 = vadd.f32 0.0, %v2350
    %v2352 = vpop.f32.mrb[0].mxu0
    %v2353 = vadd.f32 0.0, %v2352
    %2354 = vdwg.mxu0
    %2355 = vmatprep.subr.mxu0 0.0
    %2356 = vmatpush1.msra.mxu0 %v2282
    %2357 = vmatprep.subr.mxu0 0.0
    %2358 = vmatpush1.msra.mxu0 0.0
    %2359 = vmatprep.subr.mxu0 0.0
    %2360 = vmatpush1.msra.mxu0 0.0
    %2361 = vmatprep.subr.mxu0 0.0
    %2362 = vmatpush1.msra.mxu0 0.0
    %2363 = vmatprep.subr.mxu0 0.0
    %2364 = vmatpush1.msra.mxu0 0.0
    %2365 = vmatprep.subr.mxu0 0.0
    %2366 = vmatpush1.msra.mxu0 0.0
    %2367 = vmatprep.subr.mxu0 0.0
    %2368 = vmatpush1.msra.mxu0 0.0
    %2369 = vmatprep.subr.mxu0 0.0
    %2370 = vmatpush1.msra.mxu0 0.0
    %2371 = vmatprep.subr.mxu0 0.0
    %2372 = vmatpush1.msra.mxu0 0.0
    %2373 = vmatprep.subr.mxu0 0.0
    %2374 = vmatpush1.msra.mxu0 0.0
    %2375 = vmatprep.subr.mxu0 0.0
    %2376 = vmatpush1.msra.mxu0 0.0
    %2377 = vmatprep.subr.mxu0 0.0
    %2378 = vmatpush1.msra.mxu0 0.0
    %2379 = vmatprep.subr.mxu0 0.0
    %2380 = vmatpush1.msra.mxu0 0.0
    %2381 = vmatprep.subr.mxu0 0.0
    %2382 = vmatpush1.msra.mxu0 0.0
    %2383 = vmatprep.subr.mxu0 0.0
    %2384 = vmatpush1.msra.mxu0 0.0
    %2385 = vmatprep.subr.mxu0 0.0
    %2386 = vmatpush1.msra.mxu0 0.0
    %2387 = vmatprep.subr.mxu0 0.0
    %2388 = vmatpush1.msra.mxu0 0.0
    %2389 = vmatprep.subr.mxu0 0.0
    %2390 = vmatpush1.msra.mxu0 0.0
    %2391 = vmatprep.subr.mxu0 0.0
    %2392 = vmatpush1.msra.mxu0 0.0
    %2393 = vmatprep.subr.mxu0 0.0
    %2394 = vmatpush1.msra.mxu0 0.0
    %2395 = vmatprep.subr.mxu0 0.0
    %2396 = vmatpush1.msra.mxu0 0.0
    %2397 = vmatprep.subr.mxu0 0.0
    %2398 = vmatpush1.msra.mxu0 0.0
    %2399 = vmatprep.subr.mxu0 0.0
    %2400 = vmatpush1.msra.mxu0 0.0
    %2401 = vmatprep.subr.mxu0 0.0
    %2402 = vmatpush1.msra.mxu0 0.0
    %2403 = vmatprep.subr.mxu0 0.0
    %2404 = vmatpush1.msra.mxu0 0.0
    %2405 = vmatprep.subr.mxu0 0.0
    %2406 = vmatpush1.msra.mxu0 0.0
    %2407 = vmatprep.subr.mxu0 0.0
    %2408 = vmatpush1.msra.mxu0 0.0
    %2409 = vmatprep.subr.mxu0 0.0
    %2410 = vmatpush1.msra.mxu0 0.0
    %2411 = vmatprep.subr.mxu0 0.0
    %2412 = vmatpush1.msra.mxu0 0.0
    %2413 = vmatprep.subr.mxu0 0.0
    %2414 = vmatpush1.msra.mxu0 0.0
    %2415 = vmatprep.subr.mxu0 0.0
    %2416 = vmatpush1.msra.mxu0 0.0
    %2417 = vmatprep.subr.mxu0 0.0
    %2418 = vmatpush1.msra.mxu0 0.0
    %2419 = vmatprep.mubr.f32.mxu0 0.0
    %2420 = vmatmul.mubr.f32.gmra.mrb[0].mxu0 %v2276
    %v2421 = vpop.f32.mrb[0].mxu0
    %v2422 = vadd.f32 0.0, %v2421
    %v2423 = vpop.f32.mrb[0].mxu0
    %2424 = vdwg.mxu0
    %v2425 = vadd.f32 %v2258, %v2351
    %v2426 = vadd.f32 %v2259, %v2353
    %v2427 = vadd.f32 %v2260, %v2422
    %v2428 = vld [vmem:[%s899] sm:$0xff]
    %v2429 = vld [vmem:[%s1612] sm:$0xff]
    %v2430 = vld [vmem:[%s1612 + $0x8] sm:$0xf]
    %v2433 = vcombine.high %v2429, %v2429
    %2434 = vrot.lane.b32.xlu0 %v2429, 108
    %v2435 = vpop.permute.xlu0 %2434
    %2436 = vrot.lane.b32.xlu0 %v2433, 108
    %v2437 = vpop.permute.xlu0 %2436
    %2438 = vrot.lane.b32.xlu0 %v2430, 108
    %v2439 = vpop.permute.xlu0 %2438
    %v2440 = vsel %vm912, %v2435, %v2437
    %v2441 = vsel %vm912, %v2437, %v2439
    %v2443 = vsel %vm90, %v2428, 0
    %v2445 = vsel %vm94, %v2440, 0
    %v2447 = vsel %vm94, %v2441, 0
    %v2449 = vsel %vm94, %v2439, 0
    %2451 = vmatprep.subr.mxu0 %v2447
    %2452 = vmatpush1.msra.mxu0 %v2445
    %2453 = vmatprep.subr.mxu0 0.0
    %2454 = vmatpush1.msra.mxu0 0.0
    %2455 = vmatprep.subr.mxu0 0.0
    %2456 = vmatpush1.msra.mxu0 0.0
    %2457 = vmatprep.subr.mxu0 0.0
    %2458 = vmatpush1.msra.mxu0 0.0
    %2459 = vmatprep.subr.mxu0 0.0
    %2460 = vmatpush1.msra.mxu0 0.0
    %2461 = vmatprep.subr.mxu0 0.0
    %2462 = vmatpush1.msra.mxu0 0.0
    %2463 = vmatprep.subr.mxu0 0.0
    %2464 = vmatpush1.msra.mxu0 0.0
    %2465 = vmatprep.subr.mxu0 0.0
    %2466 = vmatpush1.msra.mxu0 0.0
    %2467 = vmatprep.subr.mxu0 0.0
    %2468 = vmatpush1.msra.mxu0 0.0
    %2469 = vmatprep.subr.mxu0 0.0
    %2470 = vmatpush1.msra.mxu0 0.0
    %2471 = vmatprep.subr.mxu0 0.0
    %2472 = vmatpush1.msra.mxu0 0.0
    %2473 = vmatprep.subr.mxu0 0.0
    %2474 = vmatpush1.msra.mxu0 0.0
    %2475 = vmatprep.subr.mxu0 0.0
    %2476 = vmatpush1.msra.mxu0 0.0
    %2477 = vmatprep.subr.mxu0 0.0
    %2478 = vmatpush1.msra.mxu0 0.0
    %2479 = vmatprep.subr.mxu0 0.0
    %2480 = vmatpush1.msra.mxu0 0.0
    %2481 = vmatprep.subr.mxu0 0.0
    %2482 = vmatpush1.msra.mxu0 0.0
    %2483 = vmatprep.subr.mxu0 0.0
    %2484 = vmatpush1.msra.mxu0 0.0
    %2485 = vmatprep.subr.mxu0 0.0
    %2486 = vmatpush1.msra.mxu0 0.0
    %2487 = vmatprep.subr.mxu0 0.0
    %2488 = vmatpush1.msra.mxu0 0.0
    %2489 = vmatprep.subr.mxu0 0.0
    %2490 = vmatpush1.msra.mxu0 0.0
    %2491 = vmatprep.subr.mxu0 0.0
    %2492 = vmatpush1.msra.mxu0 0.0
    %2493 = vmatprep.subr.mxu0 0.0
    %2494 = vmatpush1.msra.mxu0 0.0
    %2495 = vmatprep.subr.mxu0 0.0
    %2496 = vmatpush1.msra.mxu0 0.0
    %2497 = vmatprep.subr.mxu0 0.0
    %2498 = vmatpush1.msra.mxu0 0.0
    %2499 = vmatprep.subr.mxu0 0.0
    %2500 = vmatpush1.msra.mxu0 0.0
    %2501 = vmatprep.subr.mxu0 0.0
    %2502 = vmatpush1.msra.mxu0 0.0
    %2503 = vmatprep.subr.mxu0 0.0
    %2504 = vmatpush1.msra.mxu0 0.0
    %2505 = vmatprep.subr.mxu0 0.0
    %2506 = vmatpush1.msra.mxu0 0.0
    %2507 = vmatprep.subr.mxu0 0.0
    %2508 = vmatpush1.msra.mxu0 0.0
    %2509 = vmatprep.subr.mxu0 0.0
    %2510 = vmatpush1.msra.mxu0 0.0
    %2511 = vmatprep.subr.mxu0 0.0
    %2512 = vmatpush1.msra.mxu0 0.0
    %2513 = vmatprep.subr.mxu0 0.0
    %2514 = vmatpush1.msra.mxu0 0.0
    %2515 = vmatprep.mubr.f32.mxu0 0.0
    %2516 = vmatmul.mubr.f32.gmra.mrb[0].mxu0 %v2443
    %v2517 = vpop.f32.mrb[0].mxu0
    %v2518 = vadd.f32 0.0, %v2517
    %v2519 = vpop.f32.mrb[0].mxu0
    %v2520 = vadd.f32 0.0, %v2519
    %2521 = vdwg.mxu0
    %2522 = vmatprep.subr.mxu0 0.0
    %2523 = vmatpush1.msra.mxu0 %v2449
    %2524 = vmatprep.subr.mxu0 0.0
    %2525 = vmatpush1.msra.mxu0 0.0
    %2526 = vmatprep.subr.mxu0 0.0
    %2527 = vmatpush1.msra.mxu0 0.0
    %2528 = vmatprep.subr.mxu0 0.0
    %2529 = vmatpush1.msra.mxu0 0.0
    %2530 = vmatprep.subr.mxu0 0.0
    %2531 = vmatpush1.msra.mxu0 0.0
    %2532 = vmatprep.subr.mxu0 0.0
    %2533 = vmatpush1.msra.mxu0 0.0
    %2534 = vmatprep.subr.mxu0 0.0
    %2535 = vmatpush1.msra.mxu0 0.0
    %2536 = vmatprep.subr.mxu0 0.0
    %2537 = vmatpush1.msra.mxu0 0.0
    %2538 = vmatprep.subr.mxu0 0.0
    %2539 = vmatpush1.msra.mxu0 0.0
    %2540 = vmatprep.subr.mxu0 0.0
    %2541 = vmatpush1.msra.mxu0 0.0
    %2542 = vmatprep.subr.mxu0 0.0
    %2543 = vmatpush1.msra.mxu0 0.0
    %2544 = vmatprep.subr.mxu0 0.0
    %2545 = vmatpush1.msra.mxu0 0.0
    %2546 = vmatprep.subr.mxu0 0.0
    %2547 = vmatpush1.msra.mxu0 0.0
    %2548 = vmatprep.subr.mxu0 0.0
    %2549 = vmatpush1.msra.mxu0 0.0
    %2550 = vmatprep.subr.mxu0 0.0
    %2551 = vmatpush1.msra.mxu0 0.0
    %2552 = vmatprep.subr.mxu0 0.0
    %2553 = vmatpush1.msra.mxu0 0.0
    %2554 = vmatprep.subr.mxu0 0.0
    %2555 = vmatpush1.msra.mxu0 0.0
    %2556 = vmatprep.subr.mxu0 0.0
    %2557 = vmatpush1.msra.mxu0 0.0
    %2558 = vmatprep.subr.mxu0 0.0
    %2559 = vmatpush1.msra.mxu0 0.0
    %2560 = vmatprep.subr.mxu0 0.0
    %2561 = vmatpush1.msra.mxu0 0.0
    %2562 = vmatprep.subr.mxu0 0.0
    %2563 = vmatpush1.msra.mxu0 0.0
    %2564 = vmatprep.subr.mxu0 0.0
    %2565 = vmatpush1.msra.mxu0 0.0
    %2566 = vmatprep.subr.mxu0 0.0
    %2567 = vmatpush1.msra.mxu0 0.0
    %2568 = vmatprep.subr.mxu0 0.0
    %2569 = vmatpush1.msra.mxu0 0.0
    %2570 = vmatprep.subr.mxu0 0.0
    %2571 = vmatpush1.msra.mxu0 0.0
    %2572 = vmatprep.subr.mxu0 0.0
    %2573 = vmatpush1.msra.mxu0 0.0
    %2574 = vmatprep.subr.mxu0 0.0
    %2575 = vmatpush1.msra.mxu0 0.0
    %2576 = vmatprep.subr.mxu0 0.0
    %2577 = vmatpush1.msra.mxu0 0.0
    %2578 = vmatprep.subr.mxu0 0.0
    %2579 = vmatpush1.msra.mxu0 0.0
    %2580 = vmatprep.subr.mxu0 0.0
    %2581 = vmatpush1.msra.mxu0 0.0
    %2582 = vmatprep.subr.mxu0 0.0
    %2583 = vmatpush1.msra.mxu0 0.0
    %2584 = vmatprep.subr.mxu0 0.0
    %2585 = vmatpush1.msra.mxu0 0.0
    %2586 = vmatprep.mubr.f32.mxu0 0.0
    %2587 = vmatmul.mubr.f32.gmra.mrb[0].mxu0 %v2443
    %v2588 = vpop.f32.mrb[0].mxu0
    %v2589 = vadd.f32 0.0, %v2588
    %v2590 = vpop.f32.mrb[0].mxu0
    %2591 = vdwg.mxu0
    %v2592 = vadd.f32 %v2425, %v2518
    %v2593 = vadd.f32 %v2426, %v2520
    %v2594 = vadd.f32 %v2427, %v2589
    %v2595 = vld [vmem:[%s1068] sm:$0xff]
    %v2596 = vld [vmem:[%s1612] sm:$0xff]
    %v2597 = vld [vmem:[%s1612 + $0x8] sm:$0xf]
    %v2600 = vcombine.high %v2596, %v2596
    %2601 = vrot.lane.b32.xlu0 %v2596, 92
    %v2602 = vpop.permute.xlu0 %2601
    %2603 = vrot.lane.b32.xlu0 %v2600, 92
    %v2604 = vpop.permute.xlu0 %2603
    %2605 = vrot.lane.b32.xlu0 %v2597, 92
    %v2606 = vpop.permute.xlu0 %2605
    %v2607 = vsel %vm1081, %v2602, %v2604
    %v2608 = vsel %vm1081, %v2604, %v2606
    %v2610 = vsel %vm90, %v2595, 0
    %v2612 = vsel %vm94, %v2607, 0
    %v2614 = vsel %vm94, %v2608, 0
    %v2616 = vsel %vm94, %v2606, 0
    %2618 = vmatprep.subr.mxu0 %v2614
    %2619 = vmatpush1.msra.mxu0 %v2612
    %2620 = vmatprep.subr.mxu0 0.0
    %2621 = vmatpush1.msra.mxu0 0.0
    %2622 = vmatprep.subr.mxu0 0.0
    %2623 = vmatpush1.msra.mxu0 0.0
    %2624 = vmatprep.subr.mxu0 0.0
    %2625 = vmatpush1.msra.mxu0 0.0
    %2626 = vmatprep.subr.mxu0 0.0
    %2627 = vmatpush1.msra.mxu0 0.0
    %2628 = vmatprep.subr.mxu0 0.0
    %2629 = vmatpush1.msra.mxu0 0.0
    %2630 = vmatprep.subr.mxu0 0.0
    %2631 = vmatpush1.msra.mxu0 0.0
    %2632 = vmatprep.subr.mxu0 0.0
    %2633 = vmatpush1.msra.mxu0 0.0
    %2634 = vmatprep.subr.mxu0 0.0
    %2635 = vmatpush1.msra.mxu0 0.0
    %2636 = vmatprep.subr.mxu0 0.0
    %2637 = vmatpush1.msra.mxu0 0.0
    %2638 = vmatprep.subr.mxu0 0.0
    %2639 = vmatpush1.msra.mxu0 0.0
    %2640 = vmatprep.subr.mxu0 0.0
    %2641 = vmatpush1.msra.mxu0 0.0
    %2642 = vmatprep.subr.mxu0 0.0
    %2643 = vmatpush1.msra.mxu0 0.0
    %2644 = vmatprep.subr.mxu0 0.0
    %2645 = vmatpush1.msra.mxu0 0.0
    %2646 = vmatprep.subr.mxu0 0.0
    %2647 = vmatpush1.msra.mxu0 0.0
    %2648 = vmatprep.subr.mxu0 0.0
    %2649 = vmatpush1.msra.mxu0 0.0
    %2650 = vmatprep.subr.mxu0 0.0
    %2651 = vmatpush1.msra.mxu0 0.0
    %2652 = vmatprep.subr.mxu0 0.0
    %2653 = vmatpush1.msra.mxu0 0.0
    %2654 = vmatprep.subr.mxu0 0.0
    %2655 = vmatpush1.msra.mxu0 0.0
    %2656 = vmatprep.subr.mxu0 0.0
    %2657 = vmatpush1.msra.mxu0 0.0
    %2658 = vmatprep.subr.mxu0 0.0
    %2659 = vmatpush1.msra.mxu0 0.0
    %2660 = vmatprep.subr.mxu0 0.0
    %2661 = vmatpush1.msra.mxu0 0.0
    %2662 = vmatprep.subr.mxu0 0.0
    %2663 = vmatpush1.msra.mxu0 0.0
    %2664 = vmatprep.subr.mxu0 0.0
    %2665 = vmatpush1.msra.mxu0 0.0
    %2666 = vmatprep.subr.mxu0 0.0
    %2667 = vmatpush1.msra.mxu0 0.0
    %2668 = vmatprep.subr.mxu0 0.0
    %2669 = vmatpush1.msra.mxu0 0.0
    %2670 = vmatprep.subr.mxu0 0.0
    %2671 = vmatpush1.msra.mxu0 0.0
    %2672 = vmatprep.subr.mxu0 0.0
    %2673 = vmatpush1.msra.mxu0 0.0
    %2674 = vmatprep.subr.mxu0 0.0
    %2675 = vmatpush1.msra.mxu0 0.0
    %2676 = vmatprep.subr.mxu0 0.0
    %2677 = vmatpush1.msra.mxu0 0.0
    %2678 = vmatprep.subr.mxu0 0.0
    %2679 = vmatpush1.msra.mxu0 0.0
    %2680 = vmatprep.subr.mxu0 0.0
    %2681 = vmatpush1.msra.mxu0 0.0
    %2682 = vmatprep.mubr.f32.mxu0 0.0
    %2683 = vmatmul.mubr.f32.gmra.mrb[0].mxu0 %v2610
    %v2684 = vpop.f32.mrb[0].mxu0
    %v2685 = vadd.f32 0.0, %v2684
    %v2686 = vpop.f32.mrb[0].mxu0
    %v2687 = vadd.f32 0.0, %v2686
    %2688 = vdwg.mxu0
    %2689 = vmatprep.subr.mxu0 0.0
    %2690 = vmatpush1.msra.mxu0 %v2616
    %2691 = vmatprep.subr.mxu0 0.0
    %2692 = vmatpush1.msra.mxu0 0.0
    %2693 = vmatprep.subr.mxu0 0.0
    %2694 = vmatpush1.msra.mxu0 0.0
    %2695 = vmatprep.subr.mxu0 0.0
    %2696 = vmatpush1.msra.mxu0 0.0
    %2697 = vmatprep.subr.mxu0 0.0
    %2698 = vmatpush1.msra.mxu0 0.0
    %2699 = vmatprep.subr.mxu0 0.0
    %2700 = vmatpush1.msra.mxu0 0.0
    %2701 = vmatprep.subr.mxu0 0.0
    %2702 = vmatpush1.msra.mxu0 0.0
    %2703 = vmatprep.subr.mxu0 0.0
    %2704 = vmatpush1.msra.mxu0 0.0
    %2705 = vmatprep.subr.mxu0 0.0
    %2706 = vmatpush1.msra.mxu0 0.0
    %2707 = vmatprep.subr.mxu0 0.0
    %2708 = vmatpush1.msra.mxu0 0.0
    %2709 = vmatprep.subr.mxu0 0.0
    %2710 = vmatpush1.msra.mxu0 0.0
    %2711 = vmatprep.subr.mxu0 0.0
    %2712 = vmatpush1.msra.mxu0 0.0
    %2713 = vmatprep.subr.mxu0 0.0
    %2714 = vmatpush1.msra.mxu0 0.0
    %2715 = vmatprep.subr.mxu0 0.0
    %2716 = vmatpush1.msra.mxu0 0.0
    %2717 = vmatprep.subr.mxu0 0.0
    %2718 = vmatpush1.msra.mxu0 0.0
    %2719 = vmatprep.subr.mxu0 0.0
    %2720 = vmatpush1.msra.mxu0 0.0
    %2721 = vmatprep.subr.mxu0 0.0
    %2722 = vmatpush1.msra.mxu0 0.0
    %2723 = vmatprep.subr.mxu0 0.0
    %2724 = vmatpush1.msra.mxu0 0.0
    %2725 = vmatprep.subr.mxu0 0.0
    %2726 = vmatpush1.msra.mxu0 0.0
    %2727 = vmatprep.subr.mxu0 0.0
    %2728 = vmatpush1.msra.mxu0 0.0
    %2729 = vmatprep.subr.mxu0 0.0
    %2730 = vmatpush1.msra.mxu0 0.0
    %2731 = vmatprep.subr.mxu0 0.0
    %2732 = vmatpush1.msra.mxu0 0.0
    %2733 = vmatprep.subr.mxu0 0.0
    %2734 = vmatpush1.msra.mxu0 0.0
    %2735 = vmatprep.subr.mxu0 0.0
    %2736 = vmatpush1.msra.mxu0 0.0
    %2737 = vmatprep.subr.mxu0 0.0
    %2738 = vmatpush1.msra.mxu0 0.0
    %2739 = vmatprep.subr.mxu0 0.0
    %2740 = vmatpush1.msra.mxu0 0.0
    %2741 = vmatprep.subr.mxu0 0.0
    %2742 = vmatpush1.msra.mxu0 0.0
    %2743 = vmatprep.subr.mxu0 0.0
    %2744 = vmatpush1.msra.mxu0 0.0
    %2745 = vmatprep.subr.mxu0 0.0
    %2746 = vmatpush1.msra.mxu0 0.0
    %2747 = vmatprep.subr.mxu0 0.0
    %2748 = vmatpush1.msra.mxu0 0.0
    %2749 = vmatprep.subr.mxu0 0.0
    %2750 = vmatpush1.msra.mxu0 0.0
    %2751 = vmatprep.subr.mxu0 0.0
    %2752 = vmatpush1.msra.mxu0 0.0
    %2753 = vmatprep.mubr.f32.mxu0 0.0
    %2754 = vmatmul.mubr.f32.gmra.mrb[0].mxu0 %v2610
    %v2755 = vpop.f32.mrb[0].mxu0
    %v2756 = vadd.f32 0.0, %v2755
    %v2757 = vpop.f32.mrb[0].mxu0
    %2758 = vdwg.mxu0
    %v2759 = vadd.f32 %v2592, %v2685
    %v2760 = vadd.f32 %v2593, %v2687
    %v2761 = vadd.f32 %v2594, %v2756
    %v2762 = vld [vmem:[%s1237] sm:$0xff]
    %v2763 = vld [vmem:[%s1612] sm:$0xff]
    %v2764 = vld [vmem:[%s1612 + $0x8] sm:$0xf]
    %v2767 = vcombine.high %v2763, %v2763
    %2768 = vrot.lane.b32.xlu0 %v2763, 91
    %v2769 = vpop.permute.xlu0 %2768
    %2770 = vrot.lane.b32.xlu0 %v2767, 91
    %v2771 = vpop.permute.xlu0 %2770
    %2772 = vrot.lane.b32.xlu0 %v2764, 91
    %v2773 = vpop.permute.xlu0 %2772
    %v2774 = vsel %vm1250, %v2769, %v2771
    %v2775 = vsel %vm1250, %v2771, %v2773
    %v2777 = vsel %vm90, %v2762, 0
    %v2779 = vsel %vm94, %v2774, 0
    %v2781 = vsel %vm94, %v2775, 0
    %v2783 = vsel %vm94, %v2773, 0
    %2785 = vmatprep.subr.mxu0 %v2781
    %2786 = vmatpush1.msra.mxu0 %v2779
    %2787 = vmatprep.subr.mxu0 0.0
    %2788 = vmatpush1.msra.mxu0 0.0
    %2789 = vmatprep.subr.mxu0 0.0
    %2790 = vmatpush1.msra.mxu0 0.0
    %2791 = vmatprep.subr.mxu0 0.0
    %2792 = vmatpush1.msra.mxu0 0.0
    %2793 = vmatprep.subr.mxu0 0.0
    %2794 = vmatpush1.msra.mxu0 0.0
    %2795 = vmatprep.subr.mxu0 0.0
    %2796 = vmatpush1.msra.mxu0 0.0
    %2797 = vmatprep.subr.mxu0 0.0
    %2798 = vmatpush1.msra.mxu0 0.0
    %2799 = vmatprep.subr.mxu0 0.0
    %2800 = vmatpush1.msra.mxu0 0.0
    %2801 = vmatprep.subr.mxu0 0.0
    %2802 = vmatpush1.msra.mxu0 0.0
    %2803 = vmatprep.subr.mxu0 0.0
    %2804 = vmatpush1.msra.mxu0 0.0
    %2805 = vmatprep.subr.mxu0 0.0
    %2806 = vmatpush1.msra.mxu0 0.0
    %2807 = vmatprep.subr.mxu0 0.0
    %2808 = vmatpush1.msra.mxu0 0.0
    %2809 = vmatprep.subr.mxu0 0.0
    %2810 = vmatpush1.msra.mxu0 0.0
    %2811 = vmatprep.subr.mxu0 0.0
    %2812 = vmatpush1.msra.mxu0 0.0
    %2813 = vmatprep.subr.mxu0 0.0
    %2814 = vmatpush1.msra.mxu0 0.0
    %2815 = vmatprep.subr.mxu0 0.0
    %2816 = vmatpush1.msra.mxu0 0.0
    %2817 = vmatprep.subr.mxu0 0.0
    %2818 = vmatpush1.msra.mxu0 0.0
    %2819 = vmatprep.subr.mxu0 0.0
    %2820 = vmatpush1.msra.mxu0 0.0
    %2821 = vmatprep.subr.mxu0 0.0
    %2822 = vmatpush1.msra.mxu0 0.0
    %2823 = vmatprep.subr.mxu0 0.0
    %2824 = vmatpush1.msra.mxu0 0.0
    %2825 = vmatprep.subr.mxu0 0.0
    %2826 = vmatpush1.msra.mxu0 0.0
    %2827 = vmatprep.subr.mxu0 0.0
    %2828 = vmatpush1.msra.mxu0 0.0
    %2829 = vmatprep.subr.mxu0 0.0
    %2830 = vmatpush1.msra.mxu0 0.0
    %2831 = vmatprep.subr.mxu0 0.0
    %2832 = vmatpush1.msra.mxu0 0.0
    %2833 = vmatprep.subr.mxu0 0.0
    %2834 = vmatpush1.msra.mxu0 0.0
    %2835 = vmatprep.subr.mxu0 0.0
    %2836 = vmatpush1.msra.mxu0 0.0
    %2837 = vmatprep.subr.mxu0 0.0
    %2838 = vmatpush1.msra.mxu0 0.0
    %2839 = vmatprep.subr.mxu0 0.0
    %2840 = vmatpush1.msra.mxu0 0.0
    %2841 = vmatprep.subr.mxu0 0.0
    %2842 = vmatpush1.msra.mxu0 0.0
    %2843 = vmatprep.subr.mxu0 0.0
    %2844 = vmatpush1.msra.mxu0 0.0
    %2845 = vmatprep.subr.mxu0 0.0
    %2846 = vmatpush1.msra.mxu0 0.0
    %2847 = vmatprep.subr.mxu0 0.0
    %2848 = vmatpush1.msra.mxu0 0.0
    %2849 = vmatprep.mubr.f32.mxu0 0.0
    %2850 = vmatmul.mubr.f32.gmra.mrb[0].mxu0 %v2777
    %v2851 = vpop.f32.mrb[0].mxu0
    %v2852 = vadd.f32 0.0, %v2851
    %v2853 = vpop.f32.mrb[0].mxu0
    %v2854 = vadd.f32 0.0, %v2853
    %2855 = vdwg.mxu0
    %2856 = vmatprep.subr.mxu0 0.0
    %2857 = vmatpush1.msra.mxu0 %v2783
    %2858 = vmatprep.subr.mxu0 0.0
    %2859 = vmatpush1.msra.mxu0 0.0
    %2860 = vmatprep.subr.mxu0 0.0
    %2861 = vmatpush1.msra.mxu0 0.0
    %2862 = vmatprep.subr.mxu0 0.0
    %2863 = vmatpush1.msra.mxu0 0.0
    %2864 = vmatprep.subr.mxu0 0.0
    %2865 = vmatpush1.msra.mxu0 0.0
    %2866 = vmatprep.subr.mxu0 0.0
    %2867 = vmatpush1.msra.mxu0 0.0
    %2868 = vmatprep.subr.mxu0 0.0
    %2869 = vmatpush1.msra.mxu0 0.0
    %2870 = vmatprep.subr.mxu0 0.0
    %2871 = vmatpush1.msra.mxu0 0.0
    %2872 = vmatprep.subr.mxu0 0.0
    %2873 = vmatpush1.msra.mxu0 0.0
    %2874 = vmatprep.subr.mxu0 0.0
    %2875 = vmatpush1.msra.mxu0 0.0
    %2876 = vmatprep.subr.mxu0 0.0
    %2877 = vmatpush1.msra.mxu0 0.0
    %2878 = vmatprep.subr.mxu0 0.0
    %2879 = vmatpush1.msra.mxu0 0.0
    %2880 = vmatprep.subr.mxu0 0.0
    %2881 = vmatpush1.msra.mxu0 0.0
    %2882 = vmatprep.subr.mxu0 0.0
    %2883 = vmatpush1.msra.mxu0 0.0
    %2884 = vmatprep.subr.mxu0 0.0
    %2885 = vmatpush1.msra.mxu0 0.0
    %2886 = vmatprep.subr.mxu0 0.0
    %2887 = vmatpush1.msra.mxu0 0.0
    %2888 = vmatprep.subr.mxu0 0.0
    %2889 = vmatpush1.msra.mxu0 0.0
    %2890 = vmatprep.subr.mxu0 0.0
    %2891 = vmatpush1.msra.mxu0 0.0
    %2892 = vmatprep.subr.mxu0 0.0
    %2893 = vmatpush1.msra.mxu0 0.0
    %2894 = vmatprep.subr.mxu0 0.0
    %2895 = vmatpush1.msra.mxu0 0.0
    %2896 = vmatprep.subr.mxu0 0.0
    %2897 = vmatpush1.msra.mxu0 0.0
    %2898 = vmatprep.subr.mxu0 0.0
    %2899 = vmatpush1.msra.mxu0 0.0
    %2900 = vmatprep.subr.mxu0 0.0
    %2901 = vmatpush1.msra.mxu0 0.0
    %2902 = vmatprep.subr.mxu0 0.0
    %2903 = vmatpush1.msra.mxu0 0.0
    %2904 = vmatprep.subr.mxu0 0.0
    %2905 = vmatpush1.msra.mxu0 0.0
    %2906 = vmatprep.subr.mxu0 0.0
    %2907 = vmatpush1.msra.mxu0 0.0
    %2908 = vmatprep.subr.mxu0 0.0
    %2909 = vmatpush1.msra.mxu0 0.0
    %2910 = vmatprep.subr.mxu0 0.0
    %2911 = vmatpush1.msra.mxu0 0.0
    %2912 = vmatprep.subr.mxu0 0.0
    %2913 = vmatpush1.msra.mxu0 0.0
    %2914 = vmatprep.subr.mxu0 0.0
    %2915 = vmatpush1.msra.mxu0 0.0
    %2916 = vmatprep.subr.mxu0 0.0
    %2917 = vmatpush1.msra.mxu0 0.0
    %2918 = vmatprep.subr.mxu0 0.0
    %2919 = vmatpush1.msra.mxu0 0.0
    %2920 = vmatprep.mubr.f32.mxu0 0.0
    %2921 = vmatmul.mubr.f32.gmra.mrb[0].mxu0 %v2777
    %v2922 = vpop.f32.mrb[0].mxu0
    %v2923 = vadd.f32 0.0, %v2922
    %v2924 = vpop.f32.mrb[0].mxu0
    %2925 = vdwg.mxu0
    %v2926 = vadd.f32 %v2759, %v2852
    %v2927 = vadd.f32 %v2760, %v2854
    %v2928 = vadd.f32 %v2761, %v2923
    %v2929 = vld [vmem:[%s1406] sm:$0xff]
    %v2930 = vld [vmem:[%s1612] sm:$0xff]
    %v2931 = vld [vmem:[%s1612 + $0x8] sm:$0xf]
    %v2934 = vcombine.high %v2930, %v2930
    %2935 = vrot.lane.b32.xlu0 %v2930, 90
    %v2936 = vpop.permute.xlu0 %2935
    %2937 = vrot.lane.b32.xlu0 %v2934, 90
    %v2938 = vpop.permute.xlu0 %2937
    %2939 = vrot.lane.b32.xlu0 %v2931, 90
    %v2940 = vpop.permute.xlu0 %2939
    %v2941 = vsel %vm1419, %v2936, %v2938
    %v2942 = vsel %vm1419, %v2938, %v2940
    %v2944 = vsel %vm90, %v2929, 0
    %v2946 = vsel %vm94, %v2941, 0
    %v2948 = vsel %vm94, %v2942, 0
    %v2950 = vsel %vm94, %v2940, 0
    %2952 = vmatprep.subr.mxu0 %v2948
    %2953 = vmatpush1.msra.mxu0 %v2946
    %2954 = vmatprep.subr.mxu0 0.0
    %2955 = vmatpush1.msra.mxu0 0.0
    %2956 = vmatprep.subr.mxu0 0.0
    %2957 = vmatpush1.msra.mxu0 0.0
    %2958 = vmatprep.subr.mxu0 0.0
    %2959 = vmatpush1.msra.mxu0 0.0
    %2960 = vmatprep.subr.mxu0 0.0
    %2961 = vmatpush1.msra.mxu0 0.0
    %2962 = vmatprep.subr.mxu0 0.0
    %2963 = vmatpush1.msra.mxu0 0.0
    %2964 = vmatprep.subr.mxu0 0.0
    %2965 = vmatpush1.msra.mxu0 0.0
    %2966 = vmatprep.subr.mxu0 0.0
    %2967 = vmatpush1.msra.mxu0 0.0
    %2968 = vmatprep.subr.mxu0 0.0
    %2969 = vmatpush1.msra.mxu0 0.0
    %2970 = vmatprep.subr.mxu0 0.0
    %2971 = vmatpush1.msra.mxu0 0.0
    %2972 = vmatprep.subr.mxu0 0.0
    %2973 = vmatpush1.msra.mxu0 0.0
    %2974 = vmatprep.subr.mxu0 0.0
    %2975 = vmatpush1.msra.mxu0 0.0
    %2976 = vmatprep.subr.mxu0 0.0
    %2977 = vmatpush1.msra.mxu0 0.0
    %2978 = vmatprep.subr.mxu0 0.0
    %2979 = vmatpush1.msra.mxu0 0.0
    %2980 = vmatprep.subr.mxu0 0.0
    %2981 = vmatpush1.msra.mxu0 0.0
    %2982 = vmatprep.subr.mxu0 0.0
    %2983 = vmatpush1.msra.mxu0 0.0
    %2984 = vmatprep.subr.mxu0 0.0
    %2985 = vmatpush1.msra.mxu0 0.0
    %2986 = vmatprep.subr.mxu0 0.0
    %2987 = vmatpush1.msra.mxu0 0.0
    %2988 = vmatprep.subr.mxu0 0.0
    %2989 = vmatpush1.msra.mxu0 0.0
    %2990 = vmatprep.subr.mxu0 0.0
    %2991 = vmatpush1.msra.mxu0 0.0
    %2992 = vmatprep.subr.mxu0 0.0
    %2993 = vmatpush1.msra.mxu0 0.0
    %2994 = vmatprep.subr.mxu0 0.0
    %2995 = vmatpush1.msra.mxu0 0.0
    %2996 = vmatprep.subr.mxu0 0.0
    %2997 = vmatpush1.msra.mxu0 0.0
    %2998 = vmatprep.subr.mxu0 0.0
    %2999 = vmatpush1.msra.mxu0 0.0
    %3000 = vmatprep.subr.mxu0 0.0
    %3001 = vmatpush1.msra.mxu0 0.0
    %3002 = vmatprep.subr.mxu0 0.0
    %3003 = vmatpush1.msra.mxu0 0.0
    %3004 = vmatprep.subr.mxu0 0.0
    %3005 = vmatpush1.msra.mxu0 0.0
    %3006 = vmatprep.subr.mxu0 0.0
    %3007 = vmatpush1.msra.mxu0 0.0
    %3008 = vmatprep.subr.mxu0 0.0
    %3009 = vmatpush1.msra.mxu0 0.0
    %3010 = vmatprep.subr.mxu0 0.0
    %3011 = vmatpush1.msra.mxu0 0.0
    %3012 = vmatprep.subr.mxu0 0.0
    %3013 = vmatpush1.msra.mxu0 0.0
    %3014 = vmatprep.subr.mxu0 0.0
    %3015 = vmatpush1.msra.mxu0 0.0
    %3016 = vmatprep.mubr.f32.mxu0 0.0
    %3017 = vmatmul.mubr.f32.gmra.mrb[0].mxu0 %v2944
    %v3018 = vpop.f32.mrb[0].mxu0
    %v3019 = vadd.f32 0.0, %v3018
    %v3020 = vpop.f32.mrb[0].mxu0
    %v3021 = vadd.f32 0.0, %v3020
    %3022 = vdwg.mxu0
    %3023 = vmatprep.subr.mxu0 0.0
    %3024 = vmatpush1.msra.mxu0 %v2950
    %3025 = vmatprep.subr.mxu0 0.0
    %3026 = vmatpush1.msra.mxu0 0.0
    %3027 = vmatprep.subr.mxu0 0.0
    %3028 = vmatpush1.msra.mxu0 0.0
    %3029 = vmatprep.subr.mxu0 0.0
    %3030 = vmatpush1.msra.mxu0 0.0
    %3031 = vmatprep.subr.mxu0 0.0
    %3032 = vmatpush1.msra.mxu0 0.0
    %3033 = vmatprep.subr.mxu0 0.0
    %3034 = vmatpush1.msra.mxu0 0.0
    %3035 = vmatprep.subr.mxu0 0.0
    %3036 = vmatpush1.msra.mxu0 0.0
    %3037 = vmatprep.subr.mxu0 0.0
    %3038 = vmatpush1.msra.mxu0 0.0
    %3039 = vmatprep.subr.mxu0 0.0
    %3040 = vmatpush1.msra.mxu0 0.0
    %3041 = vmatprep.subr.mxu0 0.0
    %3042 = vmatpush1.msra.mxu0 0.0
    %3043 = vmatprep.subr.mxu0 0.0
    %3044 = vmatpush1.msra.mxu0 0.0
    %3045 = vmatprep.subr.mxu0 0.0
    %3046 = vmatpush1.msra.mxu0 0.0
    %3047 = vmatprep.subr.mxu0 0.0
    %3048 = vmatpush1.msra.mxu0 0.0
    %3049 = vmatprep.subr.mxu0 0.0
    %3050 = vmatpush1.msra.mxu0 0.0
    %3051 = vmatprep.subr.mxu0 0.0
    %3052 = vmatpush1.msra.mxu0 0.0
    %3053 = vmatprep.subr.mxu0 0.0
    %3054 = vmatpush1.msra.mxu0 0.0
    %3055 = vmatprep.subr.mxu0 0.0
    %3056 = vmatpush1.msra.mxu0 0.0
    %3057 = vmatprep.subr.mxu0 0.0
    %3058 = vmatpush1.msra.mxu0 0.0
    %3059 = vmatprep.subr.mxu0 0.0
    %3060 = vmatpush1.msra.mxu0 0.0
    %3061 = vmatprep.subr.mxu0 0.0
    %3062 = vmatpush1.msra.mxu0 0.0
    %3063 = vmatprep.subr.mxu0 0.0
    %3064 = vmatpush1.msra.mxu0 0.0
    %3065 = vmatprep.subr.mxu0 0.0
    %3066 = vmatpush1.msra.mxu0 0.0
    %3067 = vmatprep.subr.mxu0 0.0
    %3068 = vmatpush1.msra.mxu0 0.0
    %3069 = vmatprep.subr.mxu0 0.0
    %3070 = vmatpush1.msra.mxu0 0.0
    %3071 = vmatprep.subr.mxu0 0.0
    %3072 = vmatpush1.msra.mxu0 0.0
    %3073 = vmatprep.subr.mxu0 0.0
    %3074 = vmatpush1.msra.mxu0 0.0
    %3075 = vmatprep.subr.mxu0 0.0
    %3076 = vmatpush1.msra.mxu0 0.0
    %3077 = vmatprep.subr.mxu0 0.0
    %3078 = vmatpush1.msra.mxu0 0.0
    %3079 = vmatprep.subr.mxu0 0.0
    %3080 = vmatpush1.msra.mxu0 0.0
    %3081 = vmatprep.subr.mxu0 0.0
    %3082 = vmatpush1.msra.mxu0 0.0
    %3083 = vmatprep.subr.mxu0 0.0
    %3084 = vmatpush1.msra.mxu0 0.0
    %3085 = vmatprep.subr.mxu0 0.0
    %3086 = vmatpush1.msra.mxu0 0.0
    %3087 = vmatprep.mubr.f32.mxu0 0.0
    %3088 = vmatmul.mubr.f32.gmra.mrb[0].mxu0 %v2944
    %v3089 = vpop.f32.mrb[0].mxu0
    %v3090 = vadd.f32 0.0, %v3089
    %v3091 = vpop.f32.mrb[0].mxu0
    %3092 = vdwg.mxu0
    %v3093 = vadd.f32 %v2926, %v3019
    %v3094 = vadd.f32 %v2927, %v3021
    %v3095 = vadd.f32 %v2928, %v3090
    %v3096 = vmul.f32 %v3093, %v70
    %v3097 = vmul.f32 %v3094, %v71
    %v3098 = vmul.f32 %v3095, %v72
    %v3099 = vadd.f32 %v3096, %v3097
    %v3100 = vsel %vm1579, %v3098, 0.0
    %v3101 = vadd.f32 %v3099, %v3100
    %3102 = vadd.xlane.f32.xlu0 %v3101
    %v3103 = vpop.xlane.xlu0 %3102
    %v3104 = vmul.f32 %v3103, 0.00390625
    %v3105 = vsub.f32 %v3093, %v3104
    %v3106 = vsub.f32 %v3094, %v3104
    %v3107 = vsub.f32 %v3095, %v3104
    %v3108 = vmul.f32 %v3105, %v3105
    %v3109 = vmul.f32 %v3106, %v3106
    %v3110 = vmul.f32 %v3107, %v3107
    %v3111 = vmul.f32 %v3108, %v70
    %v3112 = vmul.f32 %v3109, %v71
    %v3113 = vmul.f32 %v3110, %v72
    %v3114 = vadd.f32 %v3111, %v3112
    %v3115 = vsel %vm1579, %v3113, 0.0
    %v3116 = vadd.f32 %v3114, %v3115
    %3117 = vadd.xlane.f32.xlu0 %v3116
    %v3118 = vpop.xlane.xlu0 %3117
    %v3119 = vmul.f32 %v3118, 0.00390625
    %v3120 = vadd.f32 %v3119, 1e-05
    %v3121 = vrsqrt.pop %v3120
    %v3122 = vmul.f32 %v3105, %v3121
    %v3123 = vmul.f32 %v3106, %v3121
    %v3124 = vmul.f32 %v3107, %v3121
    %v3125 = vmax.f32 %v3122, 0.0
    %v3126 = vmax.f32 %v3123, 0.0
    %v3127 = vmax.f32 %v3124, 0.0
    %s3128 = scalar_lea.vmem [#allocation2], 24
    %3129 = vst [vmem:[%s3128] sm:$0xff] %v3125
    %3130 = vst [vmem:[%s3128 + $0x8] sm:$0xff] %v3126
    %3131 = vst.msk [vmem:[%s3128 + $0x10] sm:$0xff] %vm1579, %v3127
    // Predicated region
    $region10: #{tpu_custom_call.1} parent=1 // pred_check
      _
    $region11: #{tpu_custom_call.1} parent=1 // pred_check_branch
      %3133 = sbr.rel (0) target = $region13
    $region12: #{tpu_custom_call.1} parent=1 // pred_region
      %s3135 = ssub.s32 768, 768
      %3136 = vsyncadd [#allocation3], %s3135
      %s3137 = sshll.u32 [#allocation2], 4
      %s3138 = int_to_ptr.vmem [resolvable:$true] %s3137
      %3143 = dma.vmem_to_hbm [thread:$0]  %s3138, 768, %s2, [#allocation3], 384, 384, 24
    $region13: #{tpu_custom_call.1} parent=1 // pred_fallthru
      _
    // Predicated region
    $region14: #{tpu_custom_call.1} parent=1 // pred_check
      _
    $region15: #{tpu_custom_call.1} parent=1 // pred_check_branch
      %3145 = sbr.rel (0) target = $region17
    $region16: #{tpu_custom_call.1} parent=1 // pred_region
      %3146 = dma.done [#allocation3], 768
    $region17: #{tpu_custom_call.1} parent=1 // pred_fallthru
      _
    %3147 = vsyncpa [#allocation3], 1

</llo_original>
